<compile_context>
chip_gen: v5e
topology: v5e:2x2
jax: 0.10.0
libtpu: 0.0.40
codegen_flags: <defaults>
</compile_context>

<pallas_src>
import functools
import numpy as np

import jax
import jax.numpy as jnp
from jax.experimental import pallas as pl
from jax.experimental.pallas import tpu as pltpu


# ----------------------------- Pallas kernel --------------------------------
def gmmsrn_kernel(x_ref, c_ref, q_ref, lc_ref,
                  a_ref, wx_ref, b1_ref, w2_ref, b2_ref, w3_ref, b3_ref,
                  o_ref, *, D):
    x = x_ref[...]                                         # [D, TN] lane-dense

    # per-coordinate diffs against gaussian centers: each [G, TN]
    d = [x[i:i + 1, :] - c_ref[:, i:i + 1] for i in range(D)]

    # arg = -1/2 (x-c)^T P (x-c) + log(coeff), symmetric packed coefficients
    # (the -1/2, the P_ij+P_ji folding and log(coeff) are baked in host-side).
    arg = lc_ref[...]                                      # [G, 1] -> broadcast
    k = 0
    for i in range(D):
        for j in range(i, D):
            arg = arg + d[i] * d[j] * q_ref[:, k:k + 1]
            k += 1
    result = jnp.exp(arg)                                  # [G, TN]

    # ---- SIREN decoder (omega0, sqrt(6/G) and feats@W1 fused into params) ----
    z1 = jnp.dot(a_ref[...], result,
                 preferred_element_type=jnp.float32) + b1_ref[...]   # [H, TN]
    for i in range(D):                                     # tiny D: VPU broadcast
        z1 = z1 + wx_ref[:, i:i + 1] * x[i:i + 1, :]
    h1 = jnp.sin(z1)

    h2 = jnp.sin(jnp.dot(w2_ref[...], h1,
                         preferred_element_type=jnp.float32) + b2_ref[...])

    z3 = jnp.dot(w3_ref[...], h2,
                 preferred_element_type=jnp.float32) + b3_ref[...]   # [O, TN]
    o_ref[...] = jnp.tanh(z3)                              # unmasked lane-dense store


def gmmsrn_forward(x, params, *, tile_n=2048):
    (centers, qcoef, log_coeff, A, Wx, b1, W2, b2, W3, b3) = params
    N, D = x.shape
    O = W3.shape[0]
    assert tile_n % 128 == 0

    # lane-aligned tile, padded N (no divisibility requirement on the caller)
    tn = min(tile_n, pl.cdiv(N, 128) * 128)
    n_pad = pl.cdiv(N, tn) * tn

    xT = jnp.pad(x.T.astype(jnp.float32), ((0, 0), (0, n_pad - N)))

    # constant index_map -> weights stay resident in VMEM across grid steps
    full = lambda a: pl.BlockSpec(a.shape, lambda i: (0,) * a.ndim)

    kernel = functools.partial(gmmsrn_kernel, D=D)
    yT = pl.pallas_call(
        kernel,
        out_shape=jax.ShapeDtypeStruct((O, n_pad), jnp.float32),
        grid_spec=pltpu.PrefetchScalarGridSpec(
            num_scalar_prefetch=0,
            grid=(n_pad // tn,),
            in_specs=[
                pl.BlockSpec((D, tn), lambda i: (0, i)),     # x (points on lanes)
                full(centers), full(qcoef), full(log_coeff),
                full(A), full(Wx), full(b1),
                full(W2), full(b2), full(W3), full(b3),
            ],
            out_specs=pl.BlockSpec((O, tn), lambda i: (0, i)),
        ),
        compiler_params=pltpu.CompilerParams(
            dimension_semantics=("parallel",)),
    )(xT, centers, qcoef, log_coeff, A, Wx, b1, W2, b2, W3, b3)

    return yT[:, :N].T                                     # back to [N, O]


# ------------------------- deterministic parameter init ---------------------
def init_raw_params(key, *, n_gaussians, n_dims, n_features,
                    nodes_per_layer, n_outputs, omega0=30.0):
    """Raw parameters exactly as the PyTorch module would create them."""
    G, D, F, H, O = n_gaussians, n_dims, n_features, nodes_per_layer, n_outputs
    ks = jax.random.split(key, 9)

    centers = jax.random.uniform(ks[0], (G, D), minval=-1.0, maxval=1.0)

    # covariance = Q S Q^T, S = I/G, Q Householder; precision = inv(cov)
    S = jnp.eye(D)[None].repeat(G, axis=0) / G
    v = jax.random.uniform(ks[1], (G, D, 1))
    v = v / jnp.linalg.norm(v, axis=1, keepdims=True)
    Q = jnp.eye(D)[None] - 2.0 * jnp.matmul(v, jnp.swapaxes(v, 1, 2))
    cov = jnp.matmul(jnp.matmul(Q, S), jnp.swapaxes(Q, 1, 2))
    precision = jnp.linalg.inv(cov)                        # [G, D, D]

    feats = jax.random.normal(ks[2], (G, F))               # gaussian_features

    in1 = F + D
    # SineLayer(is_first=True): W ~ U(-1/in, 1/in)
    W1 = jax.random.uniform(ks[3], (H, in1), minval=-1.0 / in1, maxval=1.0 / in1)
    b1 = jax.random.uniform(ks[4], (H,), minval=-1.0 / np.sqrt(in1),
                            maxval=1.0 / np.sqrt(in1))
    # hidden SineLayer: W ~ U(-sqrt(6/H)/omega0, sqrt(6/H)/omega0)
    lim2 = np.sqrt(6.0 / H) / omega0
    W2 = jax.random.uniform(ks[5], (H, H), minval=-lim2, maxval=lim2)
    b2 = jax.random.uniform(ks[6], (H,), minval=-1.0 / np.sqrt(H),
                            maxval=1.0 / np.sqrt(H))
    # final Linear: xavier_normal weights, default-style bias
    std3 = np.sqrt(2.0 / (H + O))
    W3 = jax.random.normal(ks[7], (O, H)) * std3
    b3 = jax.random.uniform(ks[8], (O,), minval=-1.0 / np.sqrt(H),
                            maxval=1.0 / np.sqrt(H))
    return (centers, precision, feats, W1, b1, W2, b2, W3, b3)


def pack_params(raw, *, omega0=30.0):
    """Fold constants / fuse the feature projection into kernel-friendly params."""
    centers, precision, feats, W1, b1, W2, b2, W3, b3 = raw
    G, D = centers.shape
    F = feats.shape[1]
    H = W1.shape[0]
    O = W3.shape[0]

    # coeff computed exactly as the module does (det(inv(precision)))
    coeff = 1.0 / ((2.0 * np.pi) ** (D / 2.0)
                   * jnp.sqrt(jnp.linalg.det(jnp.linalg.inv(precision))))
    log_coeff = jnp.log(coeff).reshape(G, 1)

    # packed quadratic-form coefficients with the -1/2 folded in
    # (d_i d_j P_ij + d_j d_i P_ji collapses exactly to (P_ij + P_ji) d_i d_j)
    qcols = []
    for i in range(D):
        for j in range(i, D):
            if i == j:
                qcols.append(-0.5 * precision[:, i, i])
            else:
                qcols.append(-0.5 * (precision[:, i, j] + precision[:, j, i]))
    qcoef = jnp.stack(qcols, axis=1)                       # [G, D(D+1)/2]

    # fused first layer: z1 = A @ result + (omega0*W1x) @ x + omega0*b1
    w1f = W1[:, :F]                                        # [H, F]
    w1x = W1[:, F:]                                        # [H, D]
    A = omega0 * (6.0 / G) ** 0.5 * (w1f @ feats.T)        # [H, G]
    Wx = omega0 * w1x                                      # [H, D]
    b1p = (omega0 * b1).reshape(H, 1)
    W2p = omega0 * W2                                      # [H, H]
    b2p = (omega0 * b2).reshape(H, 1)
    b3p = b3.reshape(O, 1)

    f32 = lambda a: a.astype(jnp.float32)
    return tuple(map(f32, (centers, qcoef, log_coeff,
                           A, Wx, b1p, W2p, b2p, W3, b3p)))


# ---------------------------- pure-JAX reference -----------------------------
def ref_forward(x, raw, omega0=30.0):
    """Faithful re-implementation of the PyTorch forward from raw params."""
    centers, precision, feats, W1, b1, W2, b2, W3, b3 = raw
    G, D = centers.shape
    coeff = 1.0 / ((2.0 * np.pi) ** (D / 2.0)
                   * jnp.sqrt(jnp.linalg.det(jnp.linalg.inv(precision))))
    diff = x[:, None, :] - centers[None, :, :]             # [N, G, D]
    quad = jnp.einsum('ngi,gij,ngj->ng', diff, precision, diff)
    result = coeff[None, :] * jnp.exp(-0.5 * quad)         # [N, G]
    fv = (result @ feats) * (6.0 / G) ** 0.5               # [N, F]
    inp = jnp.concatenate([fv, x], axis=1)                 # [N, F+D]
    h1 = jnp.sin(omega0 * (inp @ W1.T + b1))
    h2 = jnp.sin(omega0 * (h1 @ W2.T + b2))
    return jnp.tanh(h2 @ W3.T + b3)


# ---------------------------------- main -------------------------------------
if __name__ == "__main__":
    # opt: n_gaussians=8, n_dims=2, n_features=16, n_layers=2,
    #      nodes_per_layer=32, n_outputs=3
    # N deliberately NOT a multiple of the tile size to exercise padding.
    N, D, G, F, H, O = 300, 2, 8, 16, 32, 3

    key = jax.random.PRNGKey(0)
    kx, kp = jax.random.split(key)
    x = jax.random.uniform(kx, (N, D), minval=-1.0, maxval=1.0,
                           dtype=jnp.float32)

    raw = init_raw_params(kp, n_gaussians=G, n_dims=D, n_features=F,
                          nodes_per_layer=H, n_outputs=O, omega0=30.0)
    params = pack_params(raw, omega0=30.0)

    y = gmmsrn_forward(x, params)
    y = jax.block_until_ready(y)

    y_ref = ref_forward(x, raw, omega0=30.0)
    assert y.shape == (N, O)
    np.testing.assert_allclose(np.asarray(y), np.asarray(y_ref),
                               rtol=1e-3, atol=2e-4)
    print("KERNEL_OK")
</pallas_src>

<mosaic_0001>
module attributes {stable_mosaic.version = 11 : i64} {
  func.func @gmmsrn_kernel(%arg0: i32, %arg1: memref<2x384xf32, #tpu.memory_space<vmem>>, %arg2: memref<8x2xf32, #tpu.memory_space<vmem>>, %arg3: memref<8x3xf32, #tpu.memory_space<vmem>>, %arg4: memref<8x1xf32, #tpu.memory_space<vmem>>, %arg5: memref<32x8xf32, #tpu.memory_space<vmem>>, %arg6: memref<32x2xf32, #tpu.memory_space<vmem>>, %arg7: memref<32x1xf32, #tpu.memory_space<vmem>>, %arg8: memref<32x32xf32, #tpu.memory_space<vmem>>, %arg9: memref<32x1xf32, #tpu.memory_space<vmem>>, %arg10: memref<3x32xf32, #tpu.memory_space<vmem>>, %arg11: memref<3x1xf32, #tpu.memory_space<vmem>>, %arg12: memref<3x384xf32, #tpu.memory_space<vmem>>) attributes {dimension_semantics = [#tpu.dimension_semantics<parallel>], iteration_bounds = array<i64: 1>, scalar_prefetch = 0 : i64, scratch_operands = 0 : i64, tpu.core_type = #tpu.core_type<tc>, window_params = [{transform_indices = @transform_0, window_bounds = array<i64: 2, 384>}, {pipeline_mode = #tpu.pipeline_mode<synchronous>, transform_indices = @transform_1, window_bounds = array<i64: 8, 2>}, {pipeline_mode = #tpu.pipeline_mode<synchronous>, transform_indices = @transform_2, window_bounds = array<i64: 8, 3>}, {pipeline_mode = #tpu.pipeline_mode<synchronous>, transform_indices = @transform_3, window_bounds = array<i64: 8, 1>}, {pipeline_mode = #tpu.pipeline_mode<synchronous>, transform_indices = @transform_4, window_bounds = array<i64: 32, 8>}, {pipeline_mode = #tpu.pipeline_mode<synchronous>, transform_indices = @transform_5, window_bounds = array<i64: 32, 2>}, {pipeline_mode = #tpu.pipeline_mode<synchronous>, transform_indices = @transform_6, window_bounds = array<i64: 32, 1>}, {pipeline_mode = #tpu.pipeline_mode<synchronous>, transform_indices = @transform_7, window_bounds = array<i64: 32, 32>}, {pipeline_mode = #tpu.pipeline_mode<synchronous>, transform_indices = @transform_8, window_bounds = array<i64: 32, 1>}, {pipeline_mode = #tpu.pipeline_mode<synchronous>, transform_indices = @transform_9, window_bounds = array<i64: 3, 32>}, {pipeline_mode = #tpu.pipeline_mode<synchronous>, transform_indices = @transform_10, window_bounds = array<i64: 3, 1>}, {transform_indices = @transform_11, window_bounds = array<i64: 3, 384>}]} {
    %c0 = arith.constant 0 : index
    %c0_0 = arith.constant 0 : index
    %0 = vector.load %arg1[%c0, %c0_0] : memref<2x384xf32, #tpu.memory_space<vmem>>, vector<2x384xf32>
    %1 = vector.extract_strided_slice %0 {offsets = [0, 0], sizes = [1, 384], strides = [1, 1]} : vector<2x384xf32> to vector<1x384xf32>
    %c0_1 = arith.constant 0 : index
    %c0_2 = arith.constant 0 : index
    %2 = vector.load %arg2[%c0_1, %c0_2] : memref<8x2xf32, #tpu.memory_space<vmem>>, vector<8x1xf32>
    %3 = vector.broadcast %1 : vector<1x384xf32> to vector<8x384xf32>
    %4 = vector.broadcast %2 : vector<8x1xf32> to vector<8x384xf32>
    %5 = arith.subf %3, %4 : vector<8x384xf32>
    %6 = vector.extract_strided_slice %0 {offsets = [1, 0], sizes = [1, 384], strides = [1, 1]} : vector<2x384xf32> to vector<1x384xf32>
    %c0_3 = arith.constant 0 : index
    %c1 = arith.constant 1 : index
    %7 = vector.load %arg2[%c0_3, %c1] : memref<8x2xf32, #tpu.memory_space<vmem>>, vector<8x1xf32>
    %8 = vector.broadcast %6 : vector<1x384xf32> to vector<8x384xf32>
    %9 = vector.broadcast %7 : vector<8x1xf32> to vector<8x384xf32>
    %10 = arith.subf %8, %9 : vector<8x384xf32>
    %c0_4 = arith.constant 0 : index
    %c0_5 = arith.constant 0 : index
    %11 = vector.load %arg4[%c0_4, %c0_5] : memref<8x1xf32, #tpu.memory_space<vmem>>, vector<8x1xf32>
    %12 = arith.mulf %5, %5 : vector<8x384xf32>
    %c0_6 = arith.constant 0 : index
    %c0_7 = arith.constant 0 : index
    %13 = vector.load %arg3[%c0_6, %c0_7] : memref<8x3xf32, #tpu.memory_space<vmem>>, vector<8x1xf32>
    %14 = vector.broadcast %13 : vector<8x1xf32> to vector<8x384xf32>
    %15 = arith.mulf %12, %14 : vector<8x384xf32>
    %16 = vector.broadcast %11 : vector<8x1xf32> to vector<8x384xf32>
    %17 = arith.addf %16, %15 : vector<8x384xf32>
    %18 = arith.mulf %5, %10 : vector<8x384xf32>
    %c0_8 = arith.constant 0 : index
    %c1_9 = arith.constant 1 : index
    %19 = vector.load %arg3[%c0_8, %c1_9] : memref<8x3xf32, #tpu.memory_space<vmem>>, vector<8x1xf32>
    %20 = vector.broadcast %19 : vector<8x1xf32> to vector<8x384xf32>
    %21 = arith.mulf %18, %20 : vector<8x384xf32>
    %22 = arith.addf %17, %21 : vector<8x384xf32>
    %23 = arith.mulf %10, %10 : vector<8x384xf32>
    %c0_10 = arith.constant 0 : index
    %c2 = arith.constant 2 : index
    %24 = vector.load %arg3[%c0_10, %c2] : memref<8x3xf32, #tpu.memory_space<vmem>>, vector<8x1xf32>
    %25 = vector.broadcast %24 : vector<8x1xf32> to vector<8x384xf32>
    %26 = arith.mulf %23, %25 : vector<8x384xf32>
    %27 = arith.addf %22, %26 : vector<8x384xf32>
    %28 = math.exp %27 : vector<8x384xf32>
    %c0_11 = arith.constant 0 : index
    %c0_12 = arith.constant 0 : index
    %29 = vector.load %arg5[%c0_11, %c0_12] : memref<32x8xf32, #tpu.memory_space<vmem>>, vector<32x8xf32>
    %cst = arith.constant dense<0.000000e+00> : vector<32x384xf32>
    %30 = tpu.matmul %29, %28, %cst {dimension_numbers = #tpu.dot_dimension_numbers<[1], [0], [0], [1], [0, 0, 1, 1], [], []>} : vector<32x8xf32>, vector<8x384xf32>, vector<32x384xf32> -> vector<32x384xf32>
    %c0_13 = arith.constant 0 : index
    %c0_14 = arith.constant 0 : index
    %31 = vector.load %arg7[%c0_13, %c0_14] : memref<32x1xf32, #tpu.memory_space<vmem>>, vector<32x1xf32>
    %32 = vector.broadcast %31 : vector<32x1xf32> to vector<32x384xf32>
    %33 = arith.addf %30, %32 : vector<32x384xf32>
    %c0_15 = arith.constant 0 : index
    %c0_16 = arith.constant 0 : index
    %34 = vector.load %arg6[%c0_15, %c0_16] : memref<32x2xf32, #tpu.memory_space<vmem>>, vector<32x1xf32>
    %35 = vector.extract_strided_slice %0 {offsets = [0, 0], sizes = [1, 384], strides = [1, 1]} : vector<2x384xf32> to vector<1x384xf32>
    %36 = vector.broadcast %34 : vector<32x1xf32> to vector<32x384xf32>
    %37 = vector.broadcast %35 : vector<1x384xf32> to vector<32x384xf32>
    %38 = arith.mulf %36, %37 : vector<32x384xf32>
    %39 = arith.addf %33, %38 : vector<32x384xf32>
    %c0_17 = arith.constant 0 : index
    %c1_18 = arith.constant 1 : index
    %40 = vector.load %arg6[%c0_17, %c1_18] : memref<32x2xf32, #tpu.memory_space<vmem>>, vector<32x1xf32>
    %41 = vector.extract_strided_slice %0 {offsets = [1, 0], sizes = [1, 384], strides = [1, 1]} : vector<2x384xf32> to vector<1x384xf32>
    %42 = vector.broadcast %40 : vector<32x1xf32> to vector<32x384xf32>
    %43 = vector.broadcast %41 : vector<1x384xf32> to vector<32x384xf32>
    %44 = arith.mulf %42, %43 : vector<32x384xf32>
    %45 = arith.addf %39, %44 : vector<32x384xf32>
    %46 = math.sin %45 : vector<32x384xf32>
    %c0_19 = arith.constant 0 : index
    %c0_20 = arith.constant 0 : index
    %47 = vector.load %arg8[%c0_19, %c0_20] : memref<32x32xf32, #tpu.memory_space<vmem>>, vector<32x32xf32>
    %cst_21 = arith.constant dense<0.000000e+00> : vector<32x384xf32>
    %48 = tpu.matmul %47, %46, %cst_21 {dimension_numbers = #tpu.dot_dimension_numbers<[1], [0], [0], [1], [0, 0, 1, 1], [], []>} : vector<32x32xf32>, vector<32x384xf32>, vector<32x384xf32> -> vector<32x384xf32>
    %c0_22 = arith.constant 0 : index
    %c0_23 = arith.constant 0 : index
    %49 = vector.load %arg9[%c0_22, %c0_23] : memref<32x1xf32, #tpu.memory_space<vmem>>, vector<32x1xf32>
    %50 = vector.broadcast %49 : vector<32x1xf32> to vector<32x384xf32>
    %51 = arith.addf %48, %50 : vector<32x384xf32>
    %52 = math.sin %51 : vector<32x384xf32>
    %c0_24 = arith.constant 0 : index
    %c0_25 = arith.constant 0 : index
    %53 = vector.load %arg10[%c0_24, %c0_25] : memref<3x32xf32, #tpu.memory_space<vmem>>, vector<3x32xf32>
    %cst_26 = arith.constant dense<0.000000e+00> : vector<3x384xf32>
    %54 = tpu.matmul %53, %52, %cst_26 {dimension_numbers = #tpu.dot_dimension_numbers<[1], [0], [0], [1], [0, 0, 1, 1], [], []>} : vector<3x32xf32>, vector<32x384xf32>, vector<3x384xf32> -> vector<3x384xf32>
    %c0_27 = arith.constant 0 : index
    %c0_28 = arith.constant 0 : index
    %55 = vector.load %arg11[%c0_27, %c0_28] : memref<3x1xf32, #tpu.memory_space<vmem>>, vector<3x1xf32>
    %56 = vector.broadcast %55 : vector<3x1xf32> to vector<3x384xf32>
    %57 = arith.addf %54, %56 : vector<3x384xf32>
    %58 = math.tanh %57 : vector<3x384xf32>
    %c0_29 = arith.constant 0 : index
    %c0_30 = arith.constant 0 : index
    %59 = vector.load %arg12[%c0_29, %c0_30] : memref<3x384xf32, #tpu.memory_space<vmem>>, vector<3x384xf32>
    tpu.vector_store %arg12[%c0_29, %c0_30], %58 {strides = array<i32>} : memref<3x384xf32, #tpu.memory_space<vmem>>, vector<3x384xf32>,
    return
  }
  func.func @transform_0(%arg0: i32) -> (i32, i32) {
    %c0_i32 = arith.constant 0 : i32
    %c0_i32_0 = arith.constant 0 : i32
    return %c0_i32, %arg0 : i32, i32
  }
  func.func @transform_1(%arg0: i32) -> (i32, i32) {
    %c0_i32 = arith.constant 0 : i32
    %c0_i32_0 = arith.constant 0 : i32
    %c0_i32_1 = arith.constant 0 : i32
    return %c0_i32, %c0_i32_0 : i32, i32
  }
  func.func @transform_2(%arg0: i32) -> (i32, i32) {
    %c0_i32 = arith.constant 0 : i32
    %c0_i32_0 = arith.constant 0 : i32
    %c0_i32_1 = arith.constant 0 : i32
    return %c0_i32, %c0_i32_0 : i32, i32
  }
  func.func @transform_3(%arg0: i32) -> (i32, i32) {
    %c0_i32 = arith.constant 0 : i32
    %c0_i32_0 = arith.constant 0 : i32
    %c0_i32_1 = arith.constant 0 : i32
    return %c0_i32, %c0_i32_0 : i32, i32
  }
  func.func @transform_4(%arg0: i32) -> (i32, i32) {
    %c0_i32 = arith.constant 0 : i32
    %c0_i32_0 = arith.constant 0 : i32
    %c0_i32_1 = arith.constant 0 : i32
    return %c0_i32, %c0_i32_0 : i32, i32
  }
  func.func @transform_5(%arg0: i32) -> (i32, i32) {
    %c0_i32 = arith.constant 0 : i32
    %c0_i32_0 = arith.constant 0 : i32
    %c0_i32_1 = arith.constant 0 : i32
    return %c0_i32, %c0_i32_0 : i32, i32
  }
  func.func @transform_6(%arg0: i32) -> (i32, i32) {
    %c0_i32 = arith.constant 0 : i32
    %c0_i32_0 = arith.constant 0 : i32
    %c0_i32_1 = arith.constant 0 : i32
    return %c0_i32, %c0_i32_0 : i32, i32
  }
  func.func @transform_7(%arg0: i32) -> (i32, i32) {
    %c0_i32 = arith.constant 0 : i32
    %c0_i32_0 = arith.constant 0 : i32
    %c0_i32_1 = arith.constant 0 : i32
    return %c0_i32, %c0_i32_0 : i32, i32
  }
  func.func @transform_8(%arg0: i32) -> (i32, i32) {
    %c0_i32 = arith.constant 0 : i32
    %c0_i32_0 = arith.constant 0 : i32
    %c0_i32_1 = arith.constant 0 : i32
    return %c0_i32, %c0_i32_0 : i32, i32
  }
  func.func @transform_9(%arg0: i32) -> (i32, i32) {
    %c0_i32 = arith.constant 0 : i32
    %c0_i32_0 = arith.constant 0 : i32
    %c0_i32_1 = arith.constant 0 : i32
    return %c0_i32, %c0_i32_0 : i32, i32
  }
  func.func @transform_10(%arg0: i32) -> (i32, i32) {
    %c0_i32 = arith.constant 0 : i32
    %c0_i32_0 = arith.constant 0 : i32
    %c0_i32_1 = arith.constant 0 : i32
    return %c0_i32, %c0_i32_0 : i32, i32
  }
  func.func @transform_11(%arg0: i32) -> (i32, i32) {
    %c0_i32 = arith.constant 0 : i32
    %c0_i32_0 = arith.constant 0 : i32
    return %c0_i32, %arg0 : i32, i32
  }
}

</mosaic_0001>

<llo_original>
// kernel: tpu_custom_call.1
$region0: #{tpu_custom_call.1}
  #allocation0 [shape = 'u32[]', space=smem, size = 0x4, offset = 0x4, fixed_abs, tag = 'smem constant byte address 0x4 - core index']
  #allocation1 [shape = 'u32[72,128]{1,0:T(1,128)}', space=vmem, size = 0x9000, scoped, tag = 'internal scratch']
  %s0 = inlined_call_operand.vmem [shape: f32[2,384], index: 0, kind: input, shape index: {}]
  %s1 = inlined_call_operand.vmem [shape: f32[8,2], index: 1, kind: input, shape index: {}]
  %s2 = inlined_call_operand.vmem [shape: f32[8,3], index: 2, kind: input, shape index: {}]
  %s3 = inlined_call_operand.vmem [shape: f32[8,1], index: 3, kind: input, shape index: {}]
  %s4 = inlined_call_operand.vmem [shape: f32[32,8], index: 4, kind: input, shape index: {}]
  %s5 = inlined_call_operand.vmem [shape: f32[32,2], index: 5, kind: input, shape index: {}]
  %s6 = inlined_call_operand.vmem [shape: f32[32,1], index: 6, kind: input, shape index: {}]
  %s7 = inlined_call_operand.vmem [shape: f32[32,32], index: 7, kind: input, shape index: {}]
  %s8 = inlined_call_operand.vmem [shape: f32[32,1], index: 8, kind: input, shape index: {}]
  %s9 = inlined_call_operand.vmem [shape: f32[3,32], index: 9, kind: input, shape index: {}]
  %s10 = inlined_call_operand.vmem [shape: f32[3,1], index: 10, kind: input, shape index: {}]
  %s11 = inlined_call_operand.hbm [shape: f32[3,384], index: 11, kind: output, shape index: {}]
  %s12 = sld [smem:[#allocation0]]
  $region54: #{tpu_custom_call.1} parent=0
    _
  %s14 = ssub.s32 1, %s12
  %s15 = scalar_select 0, %s14, %s12
  $region1: #{tpu_custom_call.1} parent=0
    #allocation2 [shape = 'u8[6144]{0}', space=vmem, size = 0x1800, scoped, tag = 'output window, operand 0, single buffered']
    #allocation3 [shape = 's32[1]{0}', space=sflag, size = 0x4, scoped, tag = 'scoped memory for tpu_custom_call.1']
    %16 = vsyncpa [#allocation3], 0
    // Predicated region
    $region2: #{tpu_custom_call.1} parent=1 // pred_check
      _
    $region3: #{tpu_custom_call.1} parent=1 // pred_check_branch
      %18 = sbr.rel (0) target = $region5
    $region4: #{tpu_custom_call.1} parent=1 // pred_region
      _
    $region5: #{tpu_custom_call.1} parent=1 // pred_fallthru
      _
    // Predicated region
    $region6: #{tpu_custom_call.1} parent=1 // pred_check
      _
    $region7: #{tpu_custom_call.1} parent=1 // pred_check_branch
      %20 = sbr.rel (0) target = $region9
    $region8: #{tpu_custom_call.1} parent=1 // pred_region
      _
    $region9: #{tpu_custom_call.1} parent=1 // pred_fallthru
      _
    // Predicated region
    $region10: #{tpu_custom_call.1} parent=1 // pred_check
      _
    $region11: #{tpu_custom_call.1} parent=1 // pred_check_branch
      %22 = sbr.rel (0) target = $region13
    $region12: #{tpu_custom_call.1} parent=1 // pred_region
      _
    $region13: #{tpu_custom_call.1} parent=1 // pred_fallthru
      _
    // Predicated region
    $region14: #{tpu_custom_call.1} parent=1 // pred_check
      _
    $region15: #{tpu_custom_call.1} parent=1 // pred_check_branch
      %24 = sbr.rel (0) target = $region17
    $region16: #{tpu_custom_call.1} parent=1 // pred_region
      _
    $region17: #{tpu_custom_call.1} parent=1 // pred_fallthru
      _
    // Predicated region
    $region18: #{tpu_custom_call.1} parent=1 // pred_check
      _
    $region19: #{tpu_custom_call.1} parent=1 // pred_check_branch
      %26 = sbr.rel (0) target = $region21
    $region20: #{tpu_custom_call.1} parent=1 // pred_region
      _
    $region21: #{tpu_custom_call.1} parent=1 // pred_fallthru
      _
    // Predicated region
    $region22: #{tpu_custom_call.1} parent=1 // pred_check
      _
    $region23: #{tpu_custom_call.1} parent=1 // pred_check_branch
      %28 = sbr.rel (0) target = $region25
    $region24: #{tpu_custom_call.1} parent=1 // pred_region
      _
    $region25: #{tpu_custom_call.1} parent=1 // pred_fallthru
      _
    // Predicated region
    $region26: #{tpu_custom_call.1} parent=1 // pred_check
      _
    $region27: #{tpu_custom_call.1} parent=1 // pred_check_branch
      %30 = sbr.rel (0) target = $region29
    $region28: #{tpu_custom_call.1} parent=1 // pred_region
      _
    $region29: #{tpu_custom_call.1} parent=1 // pred_fallthru
      _
    // Predicated region
    $region30: #{tpu_custom_call.1} parent=1 // pred_check
      _
    $region31: #{tpu_custom_call.1} parent=1 // pred_check_branch
      %32 = sbr.rel (0) target = $region33
    $region32: #{tpu_custom_call.1} parent=1 // pred_region
      _
    $region33: #{tpu_custom_call.1} parent=1 // pred_fallthru
      _
    // Predicated region
    $region34: #{tpu_custom_call.1} parent=1 // pred_check
      _
    $region35: #{tpu_custom_call.1} parent=1 // pred_check_branch
      %34 = sbr.rel (0) target = $region37
    $region36: #{tpu_custom_call.1} parent=1 // pred_region
      _
    $region37: #{tpu_custom_call.1} parent=1 // pred_fallthru
      _
    // Predicated region
    $region38: #{tpu_custom_call.1} parent=1 // pred_check
      _
    $region39: #{tpu_custom_call.1} parent=1 // pred_check_branch
      %36 = sbr.rel (0) target = $region41
    $region40: #{tpu_custom_call.1} parent=1 // pred_region
      _
    $region41: #{tpu_custom_call.1} parent=1 // pred_fallthru
      _
    // Predicated region
    $region42: #{tpu_custom_call.1} parent=1 // pred_check
      _
    $region43: #{tpu_custom_call.1} parent=1 // pred_check_branch
      %38 = sbr.rel (0) target = $region45
    $region44: #{tpu_custom_call.1} parent=1 // pred_region
      _
    $region45: #{tpu_custom_call.1} parent=1 // pred_fallthru
      _
    %v39 = vld [vmem:[%s0] sm:$0x3f]
    %v40 = vld [vmem:[%s1] sm:$0xff]
    %v42 = vperm.slane %v39, 0
    %v43 = vperm.slane %v39, 2
    %v44 = vperm.slane %v39, 4
    %v48 = vperm.slane %v42, 0
    %v49 = vperm.slane %v43, 0
    %v50 = vperm.slane %v44, 0
    %52 = vset.pattern.permute.xlu0 0
    %53 = vperm.xlu0 %52, %v40
    %v54 = vpop.permute.xlu0 %53
    %v56 = vsub.f32 %v48, %v54
    %v57 = vsub.f32 %v49, %v54
    %v58 = vsub.f32 %v50, %v54
    %v59 = vperm.slane %v39, 1
    %v60 = vperm.slane %v39, 3
    %v61 = vperm.slane %v39, 5
    %v65 = vperm.slane %v59, 1
    %v66 = vperm.slane %v60, 1
    %v67 = vperm.slane %v61, 1
    %68 = vset.pattern.permute.xlu0 1
    %69 = vperm.xlu0 %68, %v40
    %v70 = vpop.permute.xlu0 %69
    %v72 = vsub.f32 %v65, %v70
    %v73 = vsub.f32 %v66, %v70
    %v74 = vsub.f32 %v67, %v70
    %v75 = vld [vmem:[%s3] sm:$0xff]
    %v76 = vmul.f32 %v56, %v56
    %v77 = vmul.f32 %v57, %v57
    %v78 = vmul.f32 %v58, %v58
    %v79 = vld [vmem:[%s2] sm:$0xff]
    %81 = vset.pattern.permute.xlu0 0
    %82 = vperm.xlu0 %81, %v79
    %v83 = vpop.permute.xlu0 %82
    %v85 = vmul.f32 %v76, %v83
    %v86 = vmul.f32 %v77, %v83
    %v87 = vmul.f32 %v78, %v83
    %89 = vset.pattern.permute.xlu0 0
    %90 = vperm.xlu0 %89, %v75
    %v91 = vpop.permute.xlu0 %90
    %v93 = vadd.f32 %v91, %v85
    %v94 = vadd.f32 %v91, %v86
    %v95 = vadd.f32 %v91, %v87
    %v96 = vmul.f32 %v56, %v72
    %v97 = vmul.f32 %v57, %v73
    %v98 = vmul.f32 %v58, %v74
    %99 = vset.pattern.permute.xlu0 1
    %100 = vperm.xlu0 %99, %v79
    %v101 = vpop.permute.xlu0 %100
    %v103 = vmul.f32 %v96, %v101
    %v104 = vmul.f32 %v97, %v101
    %v105 = vmul.f32 %v98, %v101
    %v106 = vadd.f32 %v93, %v103
    %v107 = vadd.f32 %v94, %v104
    %v108 = vadd.f32 %v95, %v105
    %v109 = vmul.f32 %v72, %v72
    %v110 = vmul.f32 %v73, %v73
    %v111 = vmul.f32 %v74, %v74
    %112 = vset.pattern.permute.xlu0 2
    %113 = vperm.xlu0 %112, %v79
    %v114 = vpop.permute.xlu0 %113
    %v116 = vmul.f32 %v109, %v114
    %v117 = vmul.f32 %v110, %v114
    %v118 = vmul.f32 %v111, %v114
    %v119 = vadd.f32 %v106, %v116
    %v120 = vadd.f32 %v107, %v117
    %v121 = vadd.f32 %v108, %v118
    %v122 = vmul.f32 %v119, 1.442695
    %v123 = vpow.pop %v122
    %v124 = vmul.f32 %v120, 1.442695
    %v125 = vpow.pop %v124
    %v126 = vmul.f32 %v121, 1.442695
    %v127 = vpow.pop %v126
    %v128 = vld [vmem:[%s4] sm:$0xff]
    %v129 = vld [vmem:[%s4 + $0x8] sm:$0xff]
    %v130 = vld [vmem:[%s4 + $0x10] sm:$0xff]
    %v131 = vld [vmem:[%s4 + $0x18] sm:$0xff]
    %v132 = vld [vmem:[%s6] sm:$0xff]
    %v133 = vld [vmem:[%s6 + $0x8] sm:$0xff]
    %v134 = vld [vmem:[%s6 + $0x10] sm:$0xff]
    %v135 = vld [vmem:[%s6 + $0x18] sm:$0xff]
    %137 = vset.pattern.permute.xlu0 0
    %138 = vperm.xlu0 %137, %v132
    %v139 = vpop.permute.xlu0 %138
    %142 = vset.pattern.permute.xlu0 0
    %143 = vperm.xlu0 %142, %v133
    %v144 = vpop.permute.xlu0 %143
    %147 = vset.pattern.permute.xlu0 0
    %148 = vperm.xlu0 %147, %v134
    %v149 = vpop.permute.xlu0 %148
    %152 = vset.pattern.permute.xlu0 0
    %153 = vperm.xlu0 %152, %v135
    %v154 = vpop.permute.xlu0 %153
    %vm156 = vcmask 64512
    %v158 = vsel %vm156, %v128, 0
    %v161 = vsel %vm156, %v129, 0
    %v164 = vsel %vm156, %v130, 0
    %v167 = vsel %vm156, %v131, 0
    %169 = vmatpush.msra.mxu0 0.0
    %170 = vmatpush.msra.mxu0 0.0
    %171 = vmatpush.msra.mxu0 0.0
    %172 = vmatpush.msra.mxu0 0.0
    %173 = vmatpush.msra.mxu0 0.0
    %174 = vmatpush.msra.mxu0 0.0
    %175 = vmatpush.msra.mxu0 0.0
    %176 = vmatpush.msra.mxu0 0.0
    %177 = vmatpush.msra.mxu0 0.0
    %178 = vmatpush.msra.mxu0 0.0
    %179 = vmatpush.msra.mxu0 0.0
    %180 = vmatpush.msra.mxu0 0.0
    %181 = vmatpush.msra.mxu0 0.0
    %182 = vmatpush.msra.mxu0 0.0
    %183 = vmatpush.msra.mxu0 0.0
    %184 = vmatpush.msra.mxu0 %v123
    %185 = vmatmul.f32.gmra.mxu0 %v158
    %v186 = vpop.f32.mrf.mxu0
    %v187 = vadd.f32 %v139, %v186
    %188 = vmatmul.f32.gmra.mxu0 %v161
    %v189 = vpop.f32.mrf.mxu0
    %v190 = vadd.f32 %v144, %v189
    %191 = vmatmul.f32.gmra.mxu0 %v164
    %v192 = vpop.f32.mrf.mxu0
    %v193 = vadd.f32 %v149, %v192
    %194 = vmatmul.f32.gmra.mxu0 %v167
    %v195 = vpop.f32.mrf.mxu0
    %v196 = vadd.f32 %v154, %v195
    %197 = vdwg.mxu0
    %198 = vmatpush.msra.mxu0 0.0
    %199 = vmatpush.msra.mxu0 0.0
    %200 = vmatpush.msra.mxu0 0.0
    %201 = vmatpush.msra.mxu0 0.0
    %202 = vmatpush.msra.mxu0 0.0
    %203 = vmatpush.msra.mxu0 0.0
    %204 = vmatpush.msra.mxu0 0.0
    %205 = vmatpush.msra.mxu0 0.0
    %206 = vmatpush.msra.mxu0 0.0
    %207 = vmatpush.msra.mxu0 0.0
    %208 = vmatpush.msra.mxu0 0.0
    %209 = vmatpush.msra.mxu0 0.0
    %210 = vmatpush.msra.mxu0 0.0
    %211 = vmatpush.msra.mxu0 0.0
    %212 = vmatpush.msra.mxu0 0.0
    %213 = vmatpush.msra.mxu0 %v125
    %214 = vmatmul.f32.gmra.mxu0 %v158
    %v215 = vpop.f32.mrf.mxu0
    %v216 = vadd.f32 %v139, %v215
    %217 = vmatmul.f32.gmra.mxu0 %v161
    %v218 = vpop.f32.mrf.mxu0
    %v219 = vadd.f32 %v144, %v218
    %220 = vmatmul.f32.gmra.mxu0 %v164
    %v221 = vpop.f32.mrf.mxu0
    %v222 = vadd.f32 %v149, %v221
    %223 = vmatmul.f32.gmra.mxu0 %v167
    %v224 = vpop.f32.mrf.mxu0
    %v225 = vadd.f32 %v154, %v224
    %226 = vdwg.mxu0
    %227 = vmatpush.msra.mxu0 0.0
    %228 = vmatpush.msra.mxu0 0.0
    %229 = vmatpush.msra.mxu0 0.0
    %230 = vmatpush.msra.mxu0 0.0
    %231 = vmatpush.msra.mxu0 0.0
    %232 = vmatpush.msra.mxu0 0.0
    %233 = vmatpush.msra.mxu0 0.0
    %234 = vmatpush.msra.mxu0 0.0
    %235 = vmatpush.msra.mxu0 0.0
    %236 = vmatpush.msra.mxu0 0.0
    %237 = vmatpush.msra.mxu0 0.0
    %238 = vmatpush.msra.mxu0 0.0
    %239 = vmatpush.msra.mxu0 0.0
    %240 = vmatpush.msra.mxu0 0.0
    %241 = vmatpush.msra.mxu0 0.0
    %242 = vmatpush.msra.mxu0 %v127
    %243 = vmatmul.f32.gmra.mxu0 %v158
    %v244 = vpop.f32.mrf.mxu0
    %v245 = vadd.f32 %v139, %v244
    %246 = vmatmul.f32.gmra.mxu0 %v161
    %v247 = vpop.f32.mrf.mxu0
    %v248 = vadd.f32 %v144, %v247
    %249 = vmatmul.f32.gmra.mxu0 %v164
    %v250 = vpop.f32.mrf.mxu0
    %v251 = vadd.f32 %v149, %v250
    %252 = vmatmul.f32.gmra.mxu0 %v167
    %v253 = vpop.f32.mrf.mxu0
    %v254 = vadd.f32 %v154, %v253
    %255 = vdwg.mxu0
    %v256 = vld [vmem:[%s5] sm:$0xff]
    %v257 = vld [vmem:[%s5 + $0x8] sm:$0xff]
    %v258 = vld [vmem:[%s5 + $0x10] sm:$0xff]
    %v259 = vld [vmem:[%s5 + $0x18] sm:$0xff]
    %261 = vset.pattern.permute.xlu0 0
    %262 = vperm.xlu0 %261, %v256
    %v263 = vpop.permute.xlu0 %262
    %266 = vset.pattern.permute.xlu0 0
    %267 = vperm.xlu0 %266, %v257
    %v268 = vpop.permute.xlu0 %267
    %271 = vset.pattern.permute.xlu0 0
    %272 = vperm.xlu0 %271, %v258
    %v273 = vpop.permute.xlu0 %272
    %276 = vset.pattern.permute.xlu0 0
    %277 = vperm.xlu0 %276, %v259
    %v278 = vpop.permute.xlu0 %277
    %v280 = vmul.f32 %v263, %v48
    %v281 = vmul.f32 %v263, %v49
    %v282 = vmul.f32 %v263, %v50
    %v283 = vmul.f32 %v268, %v48
    %v284 = vmul.f32 %v268, %v49
    %v285 = vmul.f32 %v268, %v50
    %v286 = vmul.f32 %v273, %v48
    %v287 = vmul.f32 %v273, %v49
    %v288 = vmul.f32 %v273, %v50
    %v289 = vmul.f32 %v278, %v48
    %v290 = vmul.f32 %v278, %v49
    %v291 = vmul.f32 %v278, %v50
    %v292 = vadd.f32 %v187, %v280
    %v293 = vadd.f32 %v216, %v281
    %v294 = vadd.f32 %v245, %v282
    %v295 = vadd.f32 %v190, %v283
    %v296 = vadd.f32 %v219, %v284
    %v297 = vadd.f32 %v248, %v285
    %v298 = vadd.f32 %v193, %v286
    %v299 = vadd.f32 %v222, %v287
    %v300 = vadd.f32 %v251, %v288
    %v301 = vadd.f32 %v196, %v289
    %v302 = vadd.f32 %v225, %v290
    %v303 = vadd.f32 %v254, %v291
    %304 = vset.pattern.permute.xlu0 1
    %305 = vperm.xlu0 %304, %v256
    %v306 = vpop.permute.xlu0 %305
    %308 = vset.pattern.permute.xlu0 1
    %309 = vperm.xlu0 %308, %v257
    %v310 = vpop.permute.xlu0 %309
    %312 = vset.pattern.permute.xlu0 1
    %313 = vperm.xlu0 %312, %v258
    %v314 = vpop.permute.xlu0 %313
    %316 = vset.pattern.permute.xlu0 1
    %317 = vperm.xlu0 %316, %v259
    %v318 = vpop.permute.xlu0 %317
    %v320 = vmul.f32 %v306, %v65
    %v321 = vmul.f32 %v306, %v66
    %v322 = vmul.f32 %v306, %v67
    %v323 = vmul.f32 %v310, %v65
    %v324 = vmul.f32 %v310, %v66
    %v325 = vmul.f32 %v310, %v67
    %v326 = vmul.f32 %v314, %v65
    %v327 = vmul.f32 %v314, %v66
    %v328 = vmul.f32 %v314, %v67
    %v329 = vmul.f32 %v318, %v65
    %v330 = vmul.f32 %v318, %v66
    %v331 = vmul.f32 %v318, %v67
    %v332 = vadd.f32 %v292, %v320
    %v333 = vadd.f32 %v293, %v321
    %v334 = vadd.f32 %v294, %v322
    %v335 = vadd.f32 %v295, %v323
    %v336 = vadd.f32 %v296, %v324
    %v337 = vadd.f32 %v297, %v325
    %v338 = vadd.f32 %v298, %v326
    %v339 = vadd.f32 %v299, %v327
    %v340 = vadd.f32 %v300, %v328
    %v341 = vadd.f32 %v301, %v329
    %v342 = vadd.f32 %v302, %v330
    %v343 = vadd.f32 %v303, %v331
    %v344 = vand.u32 2147483647, %v332
    %vm345 = vcmp.le.f32.partialorder %v344, 0.7853982
    %vm346 = vcmp.lt.s32.totalorder %v332, 0
    %v347 = vand.u32 %v332, 2139095040
    %v348 = vshrl.u32 %v347, 23
    %v349 = vsub.s32 %v348, 127
    %v350 = vand.u32 2147483647, %v332
    %v351 = vand.u32 %v350, 8388607
    %v352 = vor.u32 %v351, 8388608
    %v353 = vsub.s32 0, %v352
    %v354 = vadd.s32 %v349, 1
    %vm355 = vcmp.gt.s32.totalorder %v354, 0
    %v356 = vsel %vm355, %v354, 0
    %v357 = vshrl.u32 %v356, 5
    %v358 = vand.u32 %v356, 31
    %v359 = vsub.s32 32, %v358
    %v360 = vshrl.u32 683565275, %v359
    %v361 = vshll.u32 683565275, %v358
    %v362 = vshrl.u32 2475754826, %v359
    %v363 = vor.u32 %v361, %v362
    %v364 = vshll.u32 2475754826, %v358
    %v365 = vshrl.u32 2131351028, %v359
    %v366 = vor.u32 %v364, %v365
    %v367 = vshll.u32 2131351028, %v358
    %v368 = vshrl.u32 2102212464, %v359
    %v369 = vor.u32 %v367, %v368
    %v370 = vshll.u32 2102212464, %v358
    %v371 = vshrl.u32 920167782, %v359
    %v372 = vor.u32 %v370, %v371
    %v373 = vshll.u32 920167782, %v358
    %v374 = vshrl.u32 1326507024, %v359
    %v375 = vor.u32 %v373, %v374
    %vm376 = vcmp.lt.s32.totalorder %v357, 1
    %vm377 = vcmp.lt.s32.totalorder %v357, 2
    %vm378 = vcmp.lt.s32.totalorder %v357, 3
    %vm379 = vcmp.lt.s32.totalorder %v357, 4
    %v380 = vsel %vm376, %v360, %v363
    %v381 = vsel %vm379, %v369, 2102212464
    %v382 = vsel %vm378, %v366, %v381
    %v383 = vsel %vm377, %v380, %v382
    %v384 = vsel %vm376, %v363, %v366
    %v385 = vsel %vm379, %v372, 920167782
    %v386 = vsel %vm378, %v369, %v385
    %v387 = vsel %vm377, %v384, %v386
    %v388 = vsel %vm376, %v366, %v369
    %v389 = vsel %vm379, %v375, 1326507024
    %v390 = vsel %vm378, %v372, %v389
    %v391 = vsel %vm377, %v388, %v390
    %v392 = vshll.u32 %v352, 8
    %v393 = vand.u32 %v392, 65535
    %v394 = vshrl.u32 %v392, 16
    %v395 = vand.u32 %v391, 65535
    %v396 = vshrl.u32 %v391, 16
    %v397 = vmul.u32 %v393, %v395
    %v398 = vmul.u32 %v393, %v396
    %v399 = vmul.u32 %v394, %v395
    %v400 = vmul.u32 %v394, %v396
    %v401 = vshll.u32 %v398, 16
    %v402 = vshrl.u32 %v398, 16
    %v403 = vshll.u32 %v399, 16
    %v404 = vshrl.u32 %v399, 16
    %vm405 = vc.u32 %v397, %v401
    %v406 = vsel %vm405, 1, 0
    %v407 = vadd.s32 %v397, %v401
    %v408 = vadd.s32 %v400, %v406
    %vm409 = vc.u32 %v407, %v403
    %v410 = vsel %vm409, 1, 0
    %v411 = vadd.s32 %v407, %v403
    %v412 = vadd.s32 %v408, %v410
    %v413 = vadd.s32 %v412, %v402
    %v414 = vadd.s32 %v413, %v404
    %v415 = vand.u32 %v392, 65535
    %v416 = vshrl.u32 %v392, 16
    %v417 = vand.u32 %v387, 65535
    %v418 = vshrl.u32 %v387, 16
    %v419 = vmul.u32 %v415, %v417
    %v420 = vmul.u32 %v415, %v418
    %v421 = vmul.u32 %v416, %v417
    %v422 = vmul.u32 %v416, %v418
    %v423 = vshll.u32 %v420, 16
    %v424 = vshrl.u32 %v420, 16
    %v425 = vshll.u32 %v421, 16
    %v426 = vshrl.u32 %v421, 16
    %vm427 = vc.u32 %v419, %v423
    %v428 = vsel %vm427, 1, 0
    %v429 = vadd.s32 %v419, %v423
    %v430 = vadd.s32 %v422, %v428
    %vm431 = vc.u32 %v429, %v425
    %v432 = vsel %vm431, 1, 0
    %v433 = vadd.s32 %v429, %v425
    %v434 = vadd.s32 %v430, %v432
    %v435 = vadd.s32 %v434, %v424
    %v436 = vadd.s32 %v435, %v426
    %v437 = vmul.u32 %v392, %v383
    %v438 = vadd.s32 %v414, %v433
    %vm439 = vc.u32 %v414, %v433
    %v440 = vadd.s32 %v436, 1
    %v441 = vsel %vm439, %v440, %v436
    %v442 = vadd.s32 %v437, %v441
    %v443 = vadd.s32 %v442, 536870912
    %v444 = vshrl.u32 %v443, 30
    %v445 = vshll.u32 %v444, 30
    %v446 = vsub.s32 %v442, %v445
    %vm447 = vcmp.lt.s32.totalorder %v446, 0
    %v448 = vsub.s32 0, %v446
    %v449 = vsel %vm447, %v448, %v446
    %v450 = vclz %v449
    %v451 = vsub.s32 %v450, 2
    %vm452 = vcmp.gt.s32.totalorder 0, %v451
    %v453 = vsel %vm452, 0, %v451
    %v454 = vsub.s32 32, %v453
    %v455 = vshll.u32 %v446, %v453
    %v456 = vshrl.u32 %v438, %v454
    %v457 = vor.u32 %v455, %v456
    %v458 = vsub.s32 4294967266, %v453
    %v459 = vadd.s32 %v458, 127
    %v460 = vshll.u32 %v459, 23
    %v461 = vor.u32 4788187, %v460
    %v462 = vand.u32 2147483647, %v461
    %v464 = vcvt.s32.f32 %v457
    %v465 = vmul.f32 %v464, %v462
    %v466 = vxor.u32 %v465, 2147483648
    %v467 = vsel %vm346, %v466, %v465
    %v468 = vsub.s32 4, %v444
    %v469 = vsel %vm346, %v468, %v444
    %v470 = vsel %vm345, %v332, %v467
    %v471 = vsel %vm345, 0, %v469
    %v472 = vmul.f32 %v470, %v470
    %v473 = vmul.f32 %v472, -0.001358992
    %v474 = vadd.f32 %v473, 0.041655596
    %v475 = vmul.f32 %v472, %v474
    %v476 = vadd.f32 %v475, -0.4999988
    %v477 = vmul.f32 %v472, %v476
    %v478 = vadd.f32 1.0, %v477
    %v479 = vmul.f32 %v470, %v470
    %v480 = vmul.f32 %v479, -0.00019511016
    %v481 = vadd.f32 %v480, 0.008332121
    %v482 = vmul.f32 %v479, %v481
    %v483 = vadd.f32 %v482, -0.16666654
    %v484 = vmul.f32 %v479, %v483
    %v485 = vadd.f32 %v484, 1.0
    %v486 = vmul.f32 %v485, %v470
    %vm487 = vweird.f32 %v332
    %v488 = vadd.s32 %v471, 3
    %v489 = vand.u32 %v488, 3
    %vm490 = vcmp.lt.s32.totalorder %v489, 2
    %vm491 = vcmp.eq.s32.totalorder %v489, 0
    %v492 = vxor.u32 %v486, 2147483648
    %v493 = vsel %vm491, %v478, %v492
    %vm494 = vcmp.eq.s32.totalorder %v489, 2
    %v495 = vxor.u32 %v478, 2147483648
    %v496 = vsel %vm494, %v495, %v486
    %v497 = vsel %vm490, %v493, %v496
    %v498 = vsel %vm487, nan, %v497
    %v499 = vand.u32 2147483647, %v333
    %vm500 = vcmp.le.f32.partialorder %v499, 0.7853982
    %vm501 = vcmp.lt.s32.totalorder %v333, 0
    %v502 = vand.u32 %v333, 2139095040
    %v503 = vshrl.u32 %v502, 23
    %v504 = vsub.s32 %v503, 127
    %v505 = vand.u32 2147483647, %v333
    %v506 = vand.u32 %v505, 8388607
    %v507 = vor.u32 %v506, 8388608
    %v508 = vsub.s32 0, %v507
    %v509 = vadd.s32 %v504, 1
    %vm510 = vcmp.gt.s32.totalorder %v509, 0
    %v511 = vsel %vm510, %v509, 0
    %v512 = vshrl.u32 %v511, 5
    %v513 = vand.u32 %v511, 31
    %v514 = vsub.s32 32, %v513
    %v515 = vshrl.u32 683565275, %v514
    %v516 = vshll.u32 683565275, %v513
    %v517 = vshrl.u32 2475754826, %v514
    %v518 = vor.u32 %v516, %v517
    %v519 = vshll.u32 2475754826, %v513
    %v520 = vshrl.u32 2131351028, %v514
    %v521 = vor.u32 %v519, %v520
    %v522 = vshll.u32 2131351028, %v513
    %v523 = vshrl.u32 2102212464, %v514
    %v524 = vor.u32 %v522, %v523
    %v525 = vshll.u32 2102212464, %v513
    %v526 = vshrl.u32 920167782, %v514
    %v527 = vor.u32 %v525, %v526
    %v528 = vshll.u32 920167782, %v513
    %v529 = vshrl.u32 1326507024, %v514
    %v530 = vor.u32 %v528, %v529
    %vm531 = vcmp.lt.s32.totalorder %v512, 1
    %vm532 = vcmp.lt.s32.totalorder %v512, 2
    %vm533 = vcmp.lt.s32.totalorder %v512, 3
    %vm534 = vcmp.lt.s32.totalorder %v512, 4
    %v535 = vsel %vm531, %v515, %v518
    %v536 = vsel %vm534, %v524, 2102212464
    %v537 = vsel %vm533, %v521, %v536
    %v538 = vsel %vm532, %v535, %v537
    %v539 = vsel %vm531, %v518, %v521
    %v540 = vsel %vm534, %v527, 920167782
    %v541 = vsel %vm533, %v524, %v540
    %v542 = vsel %vm532, %v539, %v541
    %v543 = vsel %vm531, %v521, %v524
    %v544 = vsel %vm534, %v530, 1326507024
    %v545 = vsel %vm533, %v527, %v544
    %v546 = vsel %vm532, %v543, %v545
    %v547 = vshll.u32 %v507, 8
    %v548 = vand.u32 %v547, 65535
    %v549 = vshrl.u32 %v547, 16
    %v550 = vand.u32 %v546, 65535
    %v551 = vshrl.u32 %v546, 16
    %v552 = vmul.u32 %v548, %v550
    %v553 = vmul.u32 %v548, %v551
    %v554 = vmul.u32 %v549, %v550
    %v555 = vmul.u32 %v549, %v551
    %v556 = vshll.u32 %v553, 16
    %v557 = vshrl.u32 %v553, 16
    %v558 = vshll.u32 %v554, 16
    %v559 = vshrl.u32 %v554, 16
    %vm560 = vc.u32 %v552, %v556
    %v561 = vsel %vm560, 1, 0
    %v562 = vadd.s32 %v552, %v556
    %v563 = vadd.s32 %v555, %v561
    %vm564 = vc.u32 %v562, %v558
    %v565 = vsel %vm564, 1, 0
    %v566 = vadd.s32 %v562, %v558
    %v567 = vadd.s32 %v563, %v565
    %v568 = vadd.s32 %v567, %v557
    %v569 = vadd.s32 %v568, %v559
    %v570 = vand.u32 %v547, 65535
    %v571 = vshrl.u32 %v547, 16
    %v572 = vand.u32 %v542, 65535
    %v573 = vshrl.u32 %v542, 16
    %v574 = vmul.u32 %v570, %v572
    %v575 = vmul.u32 %v570, %v573
    %v576 = vmul.u32 %v571, %v572
    %v577 = vmul.u32 %v571, %v573
    %v578 = vshll.u32 %v575, 16
    %v579 = vshrl.u32 %v575, 16
    %v580 = vshll.u32 %v576, 16
    %v581 = vshrl.u32 %v576, 16
    %vm582 = vc.u32 %v574, %v578
    %v583 = vsel %vm582, 1, 0
    %v584 = vadd.s32 %v574, %v578
    %v585 = vadd.s32 %v577, %v583
    %vm586 = vc.u32 %v584, %v580
    %v587 = vsel %vm586, 1, 0
    %v588 = vadd.s32 %v584, %v580
    %v589 = vadd.s32 %v585, %v587
    %v590 = vadd.s32 %v589, %v579
    %v591 = vadd.s32 %v590, %v581
    %v592 = vmul.u32 %v547, %v538
    %v593 = vadd.s32 %v569, %v588
    %vm594 = vc.u32 %v569, %v588
    %v595 = vadd.s32 %v591, 1
    %v596 = vsel %vm594, %v595, %v591
    %v597 = vadd.s32 %v592, %v596
    %v598 = vadd.s32 %v597, 536870912
    %v599 = vshrl.u32 %v598, 30
    %v600 = vshll.u32 %v599, 30
    %v601 = vsub.s32 %v597, %v600
    %vm602 = vcmp.lt.s32.totalorder %v601, 0
    %v603 = vsub.s32 0, %v601
    %v604 = vsel %vm602, %v603, %v601
    %v605 = vclz %v604
    %v606 = vsub.s32 %v605, 2
    %vm607 = vcmp.gt.s32.totalorder 0, %v606
    %v608 = vsel %vm607, 0, %v606
    %v609 = vsub.s32 32, %v608
    %v610 = vshll.u32 %v601, %v608
    %v611 = vshrl.u32 %v593, %v609
    %v612 = vor.u32 %v610, %v611
    %v613 = vsub.s32 4294967266, %v608
    %v614 = vadd.s32 %v613, 127
    %v615 = vshll.u32 %v614, 23
    %v616 = vor.u32 4788187, %v615
    %v617 = vand.u32 2147483647, %v616
    %v619 = vcvt.s32.f32 %v612
    %v620 = vmul.f32 %v619, %v617
    %v621 = vxor.u32 %v620, 2147483648
    %v622 = vsel %vm501, %v621, %v620
    %v623 = vsub.s32 4, %v599
    %v624 = vsel %vm501, %v623, %v599
    %v625 = vsel %vm500, %v333, %v622
    %v626 = vsel %vm500, 0, %v624
    %v627 = vmul.f32 %v625, %v625
    %v628 = vmul.f32 %v627, -0.001358992
    %v629 = vadd.f32 %v628, 0.041655596
    %v630 = vmul.f32 %v627, %v629
    %v631 = vadd.f32 %v630, -0.4999988
    %v632 = vmul.f32 %v627, %v631
    %v633 = vadd.f32 1.0, %v632
    %v634 = vmul.f32 %v625, %v625
    %v635 = vmul.f32 %v634, -0.00019511016
    %v636 = vadd.f32 %v635, 0.008332121
    %v637 = vmul.f32 %v634, %v636
    %v638 = vadd.f32 %v637, -0.16666654
    %v639 = vmul.f32 %v634, %v638
    %v640 = vadd.f32 %v639, 1.0
    %v641 = vmul.f32 %v640, %v625
    %vm642 = vweird.f32 %v333
    %v643 = vadd.s32 %v626, 3
    %v644 = vand.u32 %v643, 3
    %vm645 = vcmp.lt.s32.totalorder %v644, 2
    %vm646 = vcmp.eq.s32.totalorder %v644, 0
    %v647 = vxor.u32 %v641, 2147483648
    %v648 = vsel %vm646, %v633, %v647
    %vm649 = vcmp.eq.s32.totalorder %v644, 2
    %v650 = vxor.u32 %v633, 2147483648
    %v651 = vsel %vm649, %v650, %v641
    %v652 = vsel %vm645, %v648, %v651
    %v653 = vsel %vm642, nan, %v652
    %v654 = vand.u32 2147483647, %v334
    %vm655 = vcmp.le.f32.partialorder %v654, 0.7853982
    %vm656 = vcmp.lt.s32.totalorder %v334, 0
    %v657 = vand.u32 %v334, 2139095040
    %v658 = vshrl.u32 %v657, 23
    %v659 = vsub.s32 %v658, 127
    %v660 = vand.u32 2147483647, %v334
    %v661 = vand.u32 %v660, 8388607
    %v662 = vor.u32 %v661, 8388608
    %v663 = vsub.s32 0, %v662
    %v664 = vadd.s32 %v659, 1
    %vm665 = vcmp.gt.s32.totalorder %v664, 0
    %v666 = vsel %vm665, %v664, 0
    %v667 = vshrl.u32 %v666, 5
    %v668 = vand.u32 %v666, 31
    %v669 = vsub.s32 32, %v668
    %v670 = vshrl.u32 683565275, %v669
    %v671 = vshll.u32 683565275, %v668
    %v672 = vshrl.u32 2475754826, %v669
    %v673 = vor.u32 %v671, %v672
    %v674 = vshll.u32 2475754826, %v668
    %v675 = vshrl.u32 2131351028, %v669
    %v676 = vor.u32 %v674, %v675
    %v677 = vshll.u32 2131351028, %v668
    %v678 = vshrl.u32 2102212464, %v669
    %v679 = vor.u32 %v677, %v678
    %v680 = vshll.u32 2102212464, %v668
    %v681 = vshrl.u32 920167782, %v669
    %v682 = vor.u32 %v680, %v681
    %v683 = vshll.u32 920167782, %v668
    %v684 = vshrl.u32 1326507024, %v669
    %v685 = vor.u32 %v683, %v684
    %vm686 = vcmp.lt.s32.totalorder %v667, 1
    %vm687 = vcmp.lt.s32.totalorder %v667, 2
    %vm688 = vcmp.lt.s32.totalorder %v667, 3
    %vm689 = vcmp.lt.s32.totalorder %v667, 4
    %v690 = vsel %vm686, %v670, %v673
    %v691 = vsel %vm689, %v679, 2102212464
    %v692 = vsel %vm688, %v676, %v691
    %v693 = vsel %vm687, %v690, %v692
    %v694 = vsel %vm686, %v673, %v676
    %v695 = vsel %vm689, %v682, 920167782
    %v696 = vsel %vm688, %v679, %v695
    %v697 = vsel %vm687, %v694, %v696
    %v698 = vsel %vm686, %v676, %v679
    %v699 = vsel %vm689, %v685, 1326507024
    %v700 = vsel %vm688, %v682, %v699
    %v701 = vsel %vm687, %v698, %v700
    %v702 = vshll.u32 %v662, 8
    %v703 = vand.u32 %v702, 65535
    %v704 = vshrl.u32 %v702, 16
    %v705 = vand.u32 %v701, 65535
    %v706 = vshrl.u32 %v701, 16
    %v707 = vmul.u32 %v703, %v705
    %v708 = vmul.u32 %v703, %v706
    %v709 = vmul.u32 %v704, %v705
    %v710 = vmul.u32 %v704, %v706
    %v711 = vshll.u32 %v708, 16
    %v712 = vshrl.u32 %v708, 16
    %v713 = vshll.u32 %v709, 16
    %v714 = vshrl.u32 %v709, 16
    %vm715 = vc.u32 %v707, %v711
    %v716 = vsel %vm715, 1, 0
    %v717 = vadd.s32 %v707, %v711
    %v718 = vadd.s32 %v710, %v716
    %vm719 = vc.u32 %v717, %v713
    %v720 = vsel %vm719, 1, 0
    %v721 = vadd.s32 %v717, %v713
    %v722 = vadd.s32 %v718, %v720
    %v723 = vadd.s32 %v722, %v712
    %v724 = vadd.s32 %v723, %v714
    %v725 = vand.u32 %v702, 65535
    %v726 = vshrl.u32 %v702, 16
    %v727 = vand.u32 %v697, 65535
    %v728 = vshrl.u32 %v697, 16
    %v729 = vmul.u32 %v725, %v727
    %v730 = vmul.u32 %v725, %v728
    %v731 = vmul.u32 %v726, %v727
    %v732 = vmul.u32 %v726, %v728
    %v733 = vshll.u32 %v730, 16
    %v734 = vshrl.u32 %v730, 16
    %v735 = vshll.u32 %v731, 16
    %v736 = vshrl.u32 %v731, 16
    %vm737 = vc.u32 %v729, %v733
    %v738 = vsel %vm737, 1, 0
    %v739 = vadd.s32 %v729, %v733
    %v740 = vadd.s32 %v732, %v738
    %vm741 = vc.u32 %v739, %v735
    %v742 = vsel %vm741, 1, 0
    %v743 = vadd.s32 %v739, %v735
    %v744 = vadd.s32 %v740, %v742
    %v745 = vadd.s32 %v744, %v734
    %v746 = vadd.s32 %v745, %v736
    %v747 = vmul.u32 %v702, %v693
    %v748 = vadd.s32 %v724, %v743
    %vm749 = vc.u32 %v724, %v743
    %v750 = vadd.s32 %v746, 1
    %v751 = vsel %vm749, %v750, %v746
    %v752 = vadd.s32 %v747, %v751
    %v753 = vadd.s32 %v752, 536870912
    %v754 = vshrl.u32 %v753, 30
    %v755 = vshll.u32 %v754, 30
    %v756 = vsub.s32 %v752, %v755
    %vm757 = vcmp.lt.s32.totalorder %v756, 0
    %v758 = vsub.s32 0, %v756
    %v759 = vsel %vm757, %v758, %v756
    %v760 = vclz %v759
    %v761 = vsub.s32 %v760, 2
    %vm762 = vcmp.gt.s32.totalorder 0, %v761
    %v763 = vsel %vm762, 0, %v761
    %v764 = vsub.s32 32, %v763
    %v765 = vshll.u32 %v756, %v763
    %v766 = vshrl.u32 %v748, %v764
    %v767 = vor.u32 %v765, %v766
    %v768 = vsub.s32 4294967266, %v763
    %v769 = vadd.s32 %v768, 127
    %v770 = vshll.u32 %v769, 23
    %v771 = vor.u32 4788187, %v770
    %v772 = vand.u32 2147483647, %v771
    %v774 = vcvt.s32.f32 %v767
    %v775 = vmul.f32 %v774, %v772
    %v776 = vxor.u32 %v775, 2147483648
    %v777 = vsel %vm656, %v776, %v775
    %v778 = vsub.s32 4, %v754
    %v779 = vsel %vm656, %v778, %v754
    %v780 = vsel %vm655, %v334, %v777
    %v781 = vsel %vm655, 0, %v779
    %v782 = vmul.f32 %v780, %v780
    %v783 = vmul.f32 %v782, -0.001358992
    %v784 = vadd.f32 %v783, 0.041655596
    %v785 = vmul.f32 %v782, %v784
    %v786 = vadd.f32 %v785, -0.4999988
    %v787 = vmul.f32 %v782, %v786
    %v788 = vadd.f32 1.0, %v787
    %v789 = vmul.f32 %v780, %v780
    %v790 = vmul.f32 %v789, -0.00019511016
    %v791 = vadd.f32 %v790, 0.008332121
    %v792 = vmul.f32 %v789, %v791
    %v793 = vadd.f32 %v792, -0.16666654
    %v794 = vmul.f32 %v789, %v793
    %v795 = vadd.f32 %v794, 1.0
    %v796 = vmul.f32 %v795, %v780
    %vm797 = vweird.f32 %v334
    %v798 = vadd.s32 %v781, 3
    %v799 = vand.u32 %v798, 3
    %vm800 = vcmp.lt.s32.totalorder %v799, 2
    %vm801 = vcmp.eq.s32.totalorder %v799, 0
    %v802 = vxor.u32 %v796, 2147483648
    %v803 = vsel %vm801, %v788, %v802
    %vm804 = vcmp.eq.s32.totalorder %v799, 2
    %v805 = vxor.u32 %v788, 2147483648
    %v806 = vsel %vm804, %v805, %v796
    %v807 = vsel %vm800, %v803, %v806
    %v808 = vsel %vm797, nan, %v807
    %v809 = vand.u32 2147483647, %v335
    %vm810 = vcmp.le.f32.partialorder %v809, 0.7853982
    %vm811 = vcmp.lt.s32.totalorder %v335, 0
    %v812 = vand.u32 %v335, 2139095040
    %v813 = vshrl.u32 %v812, 23
    %v814 = vsub.s32 %v813, 127
    %v815 = vand.u32 2147483647, %v335
    %v816 = vand.u32 %v815, 8388607
    %v817 = vor.u32 %v816, 8388608
    %v818 = vsub.s32 0, %v817
    %v819 = vadd.s32 %v814, 1
    %vm820 = vcmp.gt.s32.totalorder %v819, 0
    %v821 = vsel %vm820, %v819, 0
    %v822 = vshrl.u32 %v821, 5
    %v823 = vand.u32 %v821, 31
    %v824 = vsub.s32 32, %v823
    %v825 = vshrl.u32 683565275, %v824
    %v826 = vshll.u32 683565275, %v823
    %v827 = vshrl.u32 2475754826, %v824
    %v828 = vor.u32 %v826, %v827
    %v829 = vshll.u32 2475754826, %v823
    %v830 = vshrl.u32 2131351028, %v824
    %v831 = vor.u32 %v829, %v830
    %v832 = vshll.u32 2131351028, %v823
    %v833 = vshrl.u32 2102212464, %v824
    %v834 = vor.u32 %v832, %v833
    %v835 = vshll.u32 2102212464, %v823
    %v836 = vshrl.u32 920167782, %v824
    %v837 = vor.u32 %v835, %v836
    %v838 = vshll.u32 920167782, %v823
    %v839 = vshrl.u32 1326507024, %v824
    %v840 = vor.u32 %v838, %v839
    %vm841 = vcmp.lt.s32.totalorder %v822, 1
    %vm842 = vcmp.lt.s32.totalorder %v822, 2
    %vm843 = vcmp.lt.s32.totalorder %v822, 3
    %vm844 = vcmp.lt.s32.totalorder %v822, 4
    %v845 = vsel %vm841, %v825, %v828
    %v846 = vsel %vm844, %v834, 2102212464
    %v847 = vsel %vm843, %v831, %v846
    %v848 = vsel %vm842, %v845, %v847
    %v849 = vsel %vm841, %v828, %v831
    %v850 = vsel %vm844, %v837, 920167782
    %v851 = vsel %vm843, %v834, %v850
    %v852 = vsel %vm842, %v849, %v851
    %v853 = vsel %vm841, %v831, %v834
    %v854 = vsel %vm844, %v840, 1326507024
    %v855 = vsel %vm843, %v837, %v854
    %v856 = vsel %vm842, %v853, %v855
    %v857 = vshll.u32 %v817, 8
    %v858 = vand.u32 %v857, 65535
    %v859 = vshrl.u32 %v857, 16
    %v860 = vand.u32 %v856, 65535
    %v861 = vshrl.u32 %v856, 16
    %v862 = vmul.u32 %v858, %v860
    %v863 = vmul.u32 %v858, %v861
    %v864 = vmul.u32 %v859, %v860
    %v865 = vmul.u32 %v859, %v861
    %v866 = vshll.u32 %v863, 16
    %v867 = vshrl.u32 %v863, 16
    %v868 = vshll.u32 %v864, 16
    %v869 = vshrl.u32 %v864, 16
    %vm870 = vc.u32 %v862, %v866
    %v871 = vsel %vm870, 1, 0
    %v872 = vadd.s32 %v862, %v866
    %v873 = vadd.s32 %v865, %v871
    %vm874 = vc.u32 %v872, %v868
    %v875 = vsel %vm874, 1, 0
    %v876 = vadd.s32 %v872, %v868
    %v877 = vadd.s32 %v873, %v875
    %v878 = vadd.s32 %v877, %v867
    %v879 = vadd.s32 %v878, %v869
    %v880 = vand.u32 %v857, 65535
    %v881 = vshrl.u32 %v857, 16
    %v882 = vand.u32 %v852, 65535
    %v883 = vshrl.u32 %v852, 16
    %v884 = vmul.u32 %v880, %v882
    %v885 = vmul.u32 %v880, %v883
    %v886 = vmul.u32 %v881, %v882
    %v887 = vmul.u32 %v881, %v883
    %v888 = vshll.u32 %v885, 16
    %v889 = vshrl.u32 %v885, 16
    %v890 = vshll.u32 %v886, 16
    %v891 = vshrl.u32 %v886, 16
    %vm892 = vc.u32 %v884, %v888
    %v893 = vsel %vm892, 1, 0
    %v894 = vadd.s32 %v884, %v888
    %v895 = vadd.s32 %v887, %v893
    %vm896 = vc.u32 %v894, %v890
    %v897 = vsel %vm896, 1, 0
    %v898 = vadd.s32 %v894, %v890
    %v899 = vadd.s32 %v895, %v897
    %v900 = vadd.s32 %v899, %v889
    %v901 = vadd.s32 %v900, %v891
    %v902 = vmul.u32 %v857, %v848
    %v903 = vadd.s32 %v879, %v898
    %vm904 = vc.u32 %v879, %v898
    %v905 = vadd.s32 %v901, 1
    %v906 = vsel %vm904, %v905, %v901
    %v907 = vadd.s32 %v902, %v906
    %v908 = vadd.s32 %v907, 536870912
    %v909 = vshrl.u32 %v908, 30
    %v910 = vshll.u32 %v909, 30
    %v911 = vsub.s32 %v907, %v910
    %vm912 = vcmp.lt.s32.totalorder %v911, 0
    %v913 = vsub.s32 0, %v911
    %v914 = vsel %vm912, %v913, %v911
    %v915 = vclz %v914
    %v916 = vsub.s32 %v915, 2
    %vm917 = vcmp.gt.s32.totalorder 0, %v916
    %v918 = vsel %vm917, 0, %v916
    %v919 = vsub.s32 32, %v918
    %v920 = vshll.u32 %v911, %v918
    %v921 = vshrl.u32 %v903, %v919
    %v922 = vor.u32 %v920, %v921
    %v923 = vsub.s32 4294967266, %v918
    %v924 = vadd.s32 %v923, 127
    %v925 = vshll.u32 %v924, 23
    %v926 = vor.u32 4788187, %v925
    %v927 = vand.u32 2147483647, %v926
    %v929 = vcvt.s32.f32 %v922
    %v930 = vmul.f32 %v929, %v927
    %v931 = vxor.u32 %v930, 2147483648
    %v932 = vsel %vm811, %v931, %v930
    %v933 = vsub.s32 4, %v909
    %v934 = vsel %vm811, %v933, %v909
    %v935 = vsel %vm810, %v335, %v932
    %v936 = vsel %vm810, 0, %v934
    %v937 = vmul.f32 %v935, %v935
    %v938 = vmul.f32 %v937, -0.001358992
    %v939 = vadd.f32 %v938, 0.041655596
    %v940 = vmul.f32 %v937, %v939
    %v941 = vadd.f32 %v940, -0.4999988
    %v942 = vmul.f32 %v937, %v941
    %v943 = vadd.f32 1.0, %v942
    %v944 = vmul.f32 %v935, %v935
    %v945 = vmul.f32 %v944, -0.00019511016
    %v946 = vadd.f32 %v945, 0.008332121
    %v947 = vmul.f32 %v944, %v946
    %v948 = vadd.f32 %v947, -0.16666654
    %v949 = vmul.f32 %v944, %v948
    %v950 = vadd.f32 %v949, 1.0
    %v951 = vmul.f32 %v950, %v935
    %vm952 = vweird.f32 %v335
    %v953 = vadd.s32 %v936, 3
    %v954 = vand.u32 %v953, 3
    %vm955 = vcmp.lt.s32.totalorder %v954, 2
    %vm956 = vcmp.eq.s32.totalorder %v954, 0
    %v957 = vxor.u32 %v951, 2147483648
    %v958 = vsel %vm956, %v943, %v957
    %vm959 = vcmp.eq.s32.totalorder %v954, 2
    %v960 = vxor.u32 %v943, 2147483648
    %v961 = vsel %vm959, %v960, %v951
    %v962 = vsel %vm955, %v958, %v961
    %v963 = vsel %vm952, nan, %v962
    %v964 = vand.u32 2147483647, %v336
    %vm965 = vcmp.le.f32.partialorder %v964, 0.7853982
    %vm966 = vcmp.lt.s32.totalorder %v336, 0
    %v967 = vand.u32 %v336, 2139095040
    %v968 = vshrl.u32 %v967, 23
    %v969 = vsub.s32 %v968, 127
    %v970 = vand.u32 2147483647, %v336
    %v971 = vand.u32 %v970, 8388607
    %v972 = vor.u32 %v971, 8388608
    %v973 = vsub.s32 0, %v972
    %v974 = vadd.s32 %v969, 1
    %vm975 = vcmp.gt.s32.totalorder %v974, 0
    %v976 = vsel %vm975, %v974, 0
    %v977 = vshrl.u32 %v976, 5
    %v978 = vand.u32 %v976, 31
    %v979 = vsub.s32 32, %v978
    %v980 = vshrl.u32 683565275, %v979
    %v981 = vshll.u32 683565275, %v978
    %v982 = vshrl.u32 2475754826, %v979
    %v983 = vor.u32 %v981, %v982
    %v984 = vshll.u32 2475754826, %v978
    %v985 = vshrl.u32 2131351028, %v979
    %v986 = vor.u32 %v984, %v985
    %v987 = vshll.u32 2131351028, %v978
    %v988 = vshrl.u32 2102212464, %v979
    %v989 = vor.u32 %v987, %v988
    %v990 = vshll.u32 2102212464, %v978
    %v991 = vshrl.u32 920167782, %v979
    %v992 = vor.u32 %v990, %v991
    %v993 = vshll.u32 920167782, %v978
    %v994 = vshrl.u32 1326507024, %v979
    %v995 = vor.u32 %v993, %v994
    %vm996 = vcmp.lt.s32.totalorder %v977, 1
    %vm997 = vcmp.lt.s32.totalorder %v977, 2
    %vm998 = vcmp.lt.s32.totalorder %v977, 3
    %vm999 = vcmp.lt.s32.totalorder %v977, 4
    %v1000 = vsel %vm996, %v980, %v983
    %v1001 = vsel %vm999, %v989, 2102212464
    %v1002 = vsel %vm998, %v986, %v1001
    %v1003 = vsel %vm997, %v1000, %v1002
    %v1004 = vsel %vm996, %v983, %v986
    %v1005 = vsel %vm999, %v992, 920167782
    %v1006 = vsel %vm998, %v989, %v1005
    %v1007 = vsel %vm997, %v1004, %v1006
    %v1008 = vsel %vm996, %v986, %v989
    %v1009 = vsel %vm999, %v995, 1326507024
    %v1010 = vsel %vm998, %v992, %v1009
    %v1011 = vsel %vm997, %v1008, %v1010
    %v1012 = vshll.u32 %v972, 8
    %v1013 = vand.u32 %v1012, 65535
    %v1014 = vshrl.u32 %v1012, 16
    %v1015 = vand.u32 %v1011, 65535
    %v1016 = vshrl.u32 %v1011, 16
    %v1017 = vmul.u32 %v1013, %v1015
    %v1018 = vmul.u32 %v1013, %v1016
    %v1019 = vmul.u32 %v1014, %v1015
    %v1020 = vmul.u32 %v1014, %v1016
    %v1021 = vshll.u32 %v1018, 16
    %v1022 = vshrl.u32 %v1018, 16
    %v1023 = vshll.u32 %v1019, 16
    %v1024 = vshrl.u32 %v1019, 16
    %vm1025 = vc.u32 %v1017, %v1021
    %v1026 = vsel %vm1025, 1, 0
    %v1027 = vadd.s32 %v1017, %v1021
    %v1028 = vadd.s32 %v1020, %v1026
    %vm1029 = vc.u32 %v1027, %v1023
    %v1030 = vsel %vm1029, 1, 0
    %v1031 = vadd.s32 %v1027, %v1023
    %v1032 = vadd.s32 %v1028, %v1030
    %v1033 = vadd.s32 %v1032, %v1022
    %v1034 = vadd.s32 %v1033, %v1024
    %v1035 = vand.u32 %v1012, 65535
    %v1036 = vshrl.u32 %v1012, 16
    %v1037 = vand.u32 %v1007, 65535
    %v1038 = vshrl.u32 %v1007, 16
    %v1039 = vmul.u32 %v1035, %v1037
    %v1040 = vmul.u32 %v1035, %v1038
    %v1041 = vmul.u32 %v1036, %v1037
    %v1042 = vmul.u32 %v1036, %v1038
    %v1043 = vshll.u32 %v1040, 16
    %v1044 = vshrl.u32 %v1040, 16
    %v1045 = vshll.u32 %v1041, 16
    %v1046 = vshrl.u32 %v1041, 16
    %vm1047 = vc.u32 %v1039, %v1043
    %v1048 = vsel %vm1047, 1, 0
    %v1049 = vadd.s32 %v1039, %v1043
    %v1050 = vadd.s32 %v1042, %v1048
    %vm1051 = vc.u32 %v1049, %v1045
    %v1052 = vsel %vm1051, 1, 0
    %v1053 = vadd.s32 %v1049, %v1045
    %v1054 = vadd.s32 %v1050, %v1052
    %v1055 = vadd.s32 %v1054, %v1044
    %v1056 = vadd.s32 %v1055, %v1046
    %v1057 = vmul.u32 %v1012, %v1003
    %v1058 = vadd.s32 %v1034, %v1053
    %vm1059 = vc.u32 %v1034, %v1053
    %v1060 = vadd.s32 %v1056, 1
    %v1061 = vsel %vm1059, %v1060, %v1056
    %v1062 = vadd.s32 %v1057, %v1061
    %v1063 = vadd.s32 %v1062, 536870912
    %v1064 = vshrl.u32 %v1063, 30
    %v1065 = vshll.u32 %v1064, 30
    %v1066 = vsub.s32 %v1062, %v1065
    %vm1067 = vcmp.lt.s32.totalorder %v1066, 0
    %v1068 = vsub.s32 0, %v1066
    %v1069 = vsel %vm1067, %v1068, %v1066
    %v1070 = vclz %v1069
    %v1071 = vsub.s32 %v1070, 2
    %vm1072 = vcmp.gt.s32.totalorder 0, %v1071
    %v1073 = vsel %vm1072, 0, %v1071
    %v1074 = vsub.s32 32, %v1073
    %v1075 = vshll.u32 %v1066, %v1073
    %v1076 = vshrl.u32 %v1058, %v1074
    %v1077 = vor.u32 %v1075, %v1076
    %v1078 = vsub.s32 4294967266, %v1073
    %v1079 = vadd.s32 %v1078, 127
    %v1080 = vshll.u32 %v1079, 23
    %v1081 = vor.u32 4788187, %v1080
    %v1082 = vand.u32 2147483647, %v1081
    %v1084 = vcvt.s32.f32 %v1077
    %v1085 = vmul.f32 %v1084, %v1082
    %v1086 = vxor.u32 %v1085, 2147483648
    %v1087 = vsel %vm966, %v1086, %v1085
    %v1088 = vsub.s32 4, %v1064
    %v1089 = vsel %vm966, %v1088, %v1064
    %v1090 = vsel %vm965, %v336, %v1087
    %v1091 = vsel %vm965, 0, %v1089
    %v1092 = vmul.f32 %v1090, %v1090
    %v1093 = vmul.f32 %v1092, -0.001358992
    %v1094 = vadd.f32 %v1093, 0.041655596
    %v1095 = vmul.f32 %v1092, %v1094
    %v1096 = vadd.f32 %v1095, -0.4999988
    %v1097 = vmul.f32 %v1092, %v1096
    %v1098 = vadd.f32 1.0, %v1097
    %v1099 = vmul.f32 %v1090, %v1090
    %v1100 = vmul.f32 %v1099, -0.00019511016
    %v1101 = vadd.f32 %v1100, 0.008332121
    %v1102 = vmul.f32 %v1099, %v1101
    %v1103 = vadd.f32 %v1102, -0.16666654
    %v1104 = vmul.f32 %v1099, %v1103
    %v1105 = vadd.f32 %v1104, 1.0
    %v1106 = vmul.f32 %v1105, %v1090
    %vm1107 = vweird.f32 %v336
    %v1108 = vadd.s32 %v1091, 3
    %v1109 = vand.u32 %v1108, 3
    %vm1110 = vcmp.lt.s32.totalorder %v1109, 2
    %vm1111 = vcmp.eq.s32.totalorder %v1109, 0
    %v1112 = vxor.u32 %v1106, 2147483648
    %v1113 = vsel %vm1111, %v1098, %v1112
    %vm1114 = vcmp.eq.s32.totalorder %v1109, 2
    %v1115 = vxor.u32 %v1098, 2147483648
    %v1116 = vsel %vm1114, %v1115, %v1106
    %v1117 = vsel %vm1110, %v1113, %v1116
    %v1118 = vsel %vm1107, nan, %v1117
    %v1119 = vand.u32 2147483647, %v337
    %vm1120 = vcmp.le.f32.partialorder %v1119, 0.7853982
    %vm1121 = vcmp.lt.s32.totalorder %v337, 0
    %v1122 = vand.u32 %v337, 2139095040
    %v1123 = vshrl.u32 %v1122, 23
    %v1124 = vsub.s32 %v1123, 127
    %v1125 = vand.u32 2147483647, %v337
    %v1126 = vand.u32 %v1125, 8388607
    %v1127 = vor.u32 %v1126, 8388608
    %v1128 = vsub.s32 0, %v1127
    %v1129 = vadd.s32 %v1124, 1
    %vm1130 = vcmp.gt.s32.totalorder %v1129, 0
    %v1131 = vsel %vm1130, %v1129, 0
    %v1132 = vshrl.u32 %v1131, 5
    %v1133 = vand.u32 %v1131, 31
    %v1134 = vsub.s32 32, %v1133
    %v1135 = vshrl.u32 683565275, %v1134
    %v1136 = vshll.u32 683565275, %v1133
    %v1137 = vshrl.u32 2475754826, %v1134
    %v1138 = vor.u32 %v1136, %v1137
    %v1139 = vshll.u32 2475754826, %v1133
    %v1140 = vshrl.u32 2131351028, %v1134
    %v1141 = vor.u32 %v1139, %v1140
    %v1142 = vshll.u32 2131351028, %v1133
    %v1143 = vshrl.u32 2102212464, %v1134
    %v1144 = vor.u32 %v1142, %v1143
    %v1145 = vshll.u32 2102212464, %v1133
    %v1146 = vshrl.u32 920167782, %v1134
    %v1147 = vor.u32 %v1145, %v1146
    %v1148 = vshll.u32 920167782, %v1133
    %v1149 = vshrl.u32 1326507024, %v1134
    %v1150 = vor.u32 %v1148, %v1149
    %vm1151 = vcmp.lt.s32.totalorder %v1132, 1
    %vm1152 = vcmp.lt.s32.totalorder %v1132, 2
    %vm1153 = vcmp.lt.s32.totalorder %v1132, 3
    %vm1154 = vcmp.lt.s32.totalorder %v1132, 4
    %v1155 = vsel %vm1151, %v1135, %v1138
    %v1156 = vsel %vm1154, %v1144, 2102212464
    %v1157 = vsel %vm1153, %v1141, %v1156
    %v1158 = vsel %vm1152, %v1155, %v1157
    %v1159 = vsel %vm1151, %v1138, %v1141
    %v1160 = vsel %vm1154, %v1147, 920167782
    %v1161 = vsel %vm1153, %v1144, %v1160
    %v1162 = vsel %vm1152, %v1159, %v1161
    %v1163 = vsel %vm1151, %v1141, %v1144
    %v1164 = vsel %vm1154, %v1150, 1326507024
    %v1165 = vsel %vm1153, %v1147, %v1164
    %v1166 = vsel %vm1152, %v1163, %v1165
    %v1167 = vshll.u32 %v1127, 8
    %v1168 = vand.u32 %v1167, 65535
    %v1169 = vshrl.u32 %v1167, 16
    %v1170 = vand.u32 %v1166, 65535
    %v1171 = vshrl.u32 %v1166, 16
    %v1172 = vmul.u32 %v1168, %v1170
    %v1173 = vmul.u32 %v1168, %v1171
    %v1174 = vmul.u32 %v1169, %v1170
    %v1175 = vmul.u32 %v1169, %v1171
    %v1176 = vshll.u32 %v1173, 16
    %v1177 = vshrl.u32 %v1173, 16
    %v1178 = vshll.u32 %v1174, 16
    %v1179 = vshrl.u32 %v1174, 16
    %vm1180 = vc.u32 %v1172, %v1176
    %v1181 = vsel %vm1180, 1, 0
    %v1182 = vadd.s32 %v1172, %v1176
    %v1183 = vadd.s32 %v1175, %v1181
    %vm1184 = vc.u32 %v1182, %v1178
    %v1185 = vsel %vm1184, 1, 0
    %v1186 = vadd.s32 %v1182, %v1178
    %v1187 = vadd.s32 %v1183, %v1185
    %v1188 = vadd.s32 %v1187, %v1177
    %v1189 = vadd.s32 %v1188, %v1179
    %v1190 = vand.u32 %v1167, 65535
    %v1191 = vshrl.u32 %v1167, 16
    %v1192 = vand.u32 %v1162, 65535
    %v1193 = vshrl.u32 %v1162, 16
    %v1194 = vmul.u32 %v1190, %v1192
    %v1195 = vmul.u32 %v1190, %v1193
    %v1196 = vmul.u32 %v1191, %v1192
    %v1197 = vmul.u32 %v1191, %v1193
    %v1198 = vshll.u32 %v1195, 16
    %v1199 = vshrl.u32 %v1195, 16
    %v1200 = vshll.u32 %v1196, 16
    %v1201 = vshrl.u32 %v1196, 16
    %vm1202 = vc.u32 %v1194, %v1198
    %v1203 = vsel %vm1202, 1, 0
    %v1204 = vadd.s32 %v1194, %v1198
    %v1205 = vadd.s32 %v1197, %v1203
    %vm1206 = vc.u32 %v1204, %v1200
    %v1207 = vsel %vm1206, 1, 0
    %v1208 = vadd.s32 %v1204, %v1200
    %v1209 = vadd.s32 %v1205, %v1207
    %v1210 = vadd.s32 %v1209, %v1199
    %v1211 = vadd.s32 %v1210, %v1201
    %v1212 = vmul.u32 %v1167, %v1158
    %v1213 = vadd.s32 %v1189, %v1208
    %vm1214 = vc.u32 %v1189, %v1208
    %v1215 = vadd.s32 %v1211, 1
    %v1216 = vsel %vm1214, %v1215, %v1211
    %v1217 = vadd.s32 %v1212, %v1216
    %v1218 = vadd.s32 %v1217, 536870912
    %v1219 = vshrl.u32 %v1218, 30
    %v1220 = vshll.u32 %v1219, 30
    %v1221 = vsub.s32 %v1217, %v1220
    %vm1222 = vcmp.lt.s32.totalorder %v1221, 0
    %v1223 = vsub.s32 0, %v1221
    %v1224 = vsel %vm1222, %v1223, %v1221
    %v1225 = vclz %v1224
    %v1226 = vsub.s32 %v1225, 2
    %vm1227 = vcmp.gt.s32.totalorder 0, %v1226
    %v1228 = vsel %vm1227, 0, %v1226
    %v1229 = vsub.s32 32, %v1228
    %v1230 = vshll.u32 %v1221, %v1228
    %v1231 = vshrl.u32 %v1213, %v1229
    %v1232 = vor.u32 %v1230, %v1231
    %v1233 = vsub.s32 4294967266, %v1228
    %v1234 = vadd.s32 %v1233, 127
    %v1235 = vshll.u32 %v1234, 23
    %v1236 = vor.u32 4788187, %v1235
    %v1237 = vand.u32 2147483647, %v1236
    %v1239 = vcvt.s32.f32 %v1232
    %v1240 = vmul.f32 %v1239, %v1237
    %v1241 = vxor.u32 %v1240, 2147483648
    %v1242 = vsel %vm1121, %v1241, %v1240
    %v1243 = vsub.s32 4, %v1219
    %v1244 = vsel %vm1121, %v1243, %v1219
    %v1245 = vsel %vm1120, %v337, %v1242
    %v1246 = vsel %vm1120, 0, %v1244
    %v1247 = vmul.f32 %v1245, %v1245
    %v1248 = vmul.f32 %v1247, -0.001358992
    %v1249 = vadd.f32 %v1248, 0.041655596
    %v1250 = vmul.f32 %v1247, %v1249
    %v1251 = vadd.f32 %v1250, -0.4999988
    %v1252 = vmul.f32 %v1247, %v1251
    %v1253 = vadd.f32 1.0, %v1252
    %v1254 = vmul.f32 %v1245, %v1245
    %v1255 = vmul.f32 %v1254, -0.00019511016
    %v1256 = vadd.f32 %v1255, 0.008332121
    %v1257 = vmul.f32 %v1254, %v1256
    %v1258 = vadd.f32 %v1257, -0.16666654
    %v1259 = vmul.f32 %v1254, %v1258
    %v1260 = vadd.f32 %v1259, 1.0
    %v1261 = vmul.f32 %v1260, %v1245
    %vm1262 = vweird.f32 %v337
    %v1263 = vadd.s32 %v1246, 3
    %v1264 = vand.u32 %v1263, 3
    %vm1265 = vcmp.lt.s32.totalorder %v1264, 2
    %vm1266 = vcmp.eq.s32.totalorder %v1264, 0
    %v1267 = vxor.u32 %v1261, 2147483648
    %v1268 = vsel %vm1266, %v1253, %v1267
    %vm1269 = vcmp.eq.s32.totalorder %v1264, 2
    %v1270 = vxor.u32 %v1253, 2147483648
    %v1271 = vsel %vm1269, %v1270, %v1261
    %v1272 = vsel %vm1265, %v1268, %v1271
    %v1273 = vsel %vm1262, nan, %v1272
    %v1274 = vand.u32 2147483647, %v338
    %vm1275 = vcmp.le.f32.partialorder %v1274, 0.7853982
    %vm1276 = vcmp.lt.s32.totalorder %v338, 0
    %v1277 = vand.u32 %v338, 2139095040
    %v1278 = vshrl.u32 %v1277, 23
    %v1279 = vsub.s32 %v1278, 127
    %v1280 = vand.u32 2147483647, %v338
    %v1281 = vand.u32 %v1280, 8388607
    %v1282 = vor.u32 %v1281, 8388608
    %v1283 = vsub.s32 0, %v1282
    %v1284 = vadd.s32 %v1279, 1
    %vm1285 = vcmp.gt.s32.totalorder %v1284, 0
    %v1286 = vsel %vm1285, %v1284, 0
    %v1287 = vshrl.u32 %v1286, 5
    %v1288 = vand.u32 %v1286, 31
    %v1289 = vsub.s32 32, %v1288
    %v1290 = vshrl.u32 683565275, %v1289
    %v1291 = vshll.u32 683565275, %v1288
    %v1292 = vshrl.u32 2475754826, %v1289
    %v1293 = vor.u32 %v1291, %v1292
    %v1294 = vshll.u32 2475754826, %v1288
    %v1295 = vshrl.u32 2131351028, %v1289
    %v1296 = vor.u32 %v1294, %v1295
    %v1297 = vshll.u32 2131351028, %v1288
    %v1298 = vshrl.u32 2102212464, %v1289
    %v1299 = vor.u32 %v1297, %v1298
    %v1300 = vshll.u32 2102212464, %v1288
    %v1301 = vshrl.u32 920167782, %v1289
    %v1302 = vor.u32 %v1300, %v1301
    %v1303 = vshll.u32 920167782, %v1288
    %v1304 = vshrl.u32 1326507024, %v1289
    %v1305 = vor.u32 %v1303, %v1304
    %vm1306 = vcmp.lt.s32.totalorder %v1287, 1
    %vm1307 = vcmp.lt.s32.totalorder %v1287, 2
    %vm1308 = vcmp.lt.s32.totalorder %v1287, 3
    %vm1309 = vcmp.lt.s32.totalorder %v1287, 4
    %v1310 = vsel %vm1306, %v1290, %v1293
    %v1311 = vsel %vm1309, %v1299, 2102212464
    %v1312 = vsel %vm1308, %v1296, %v1311
    %v1313 = vsel %vm1307, %v1310, %v1312
    %v1314 = vsel %vm1306, %v1293, %v1296
    %v1315 = vsel %vm1309, %v1302, 920167782
    %v1316 = vsel %vm1308, %v1299, %v1315
    %v1317 = vsel %vm1307, %v1314, %v1316
    %v1318 = vsel %vm1306, %v1296, %v1299
    %v1319 = vsel %vm1309, %v1305, 1326507024
    %v1320 = vsel %vm1308, %v1302, %v1319
    %v1321 = vsel %vm1307, %v1318, %v1320
    %v1322 = vshll.u32 %v1282, 8
    %v1323 = vand.u32 %v1322, 65535
    %v1324 = vshrl.u32 %v1322, 16
    %v1325 = vand.u32 %v1321, 65535
    %v1326 = vshrl.u32 %v1321, 16
    %v1327 = vmul.u32 %v1323, %v1325
    %v1328 = vmul.u32 %v1323, %v1326
    %v1329 = vmul.u32 %v1324, %v1325
    %v1330 = vmul.u32 %v1324, %v1326
    %v1331 = vshll.u32 %v1328, 16
    %v1332 = vshrl.u32 %v1328, 16
    %v1333 = vshll.u32 %v1329, 16
    %v1334 = vshrl.u32 %v1329, 16
    %vm1335 = vc.u32 %v1327, %v1331
    %v1336 = vsel %vm1335, 1, 0
    %v1337 = vadd.s32 %v1327, %v1331
    %v1338 = vadd.s32 %v1330, %v1336
    %vm1339 = vc.u32 %v1337, %v1333
    %v1340 = vsel %vm1339, 1, 0
    %v1341 = vadd.s32 %v1337, %v1333
    %v1342 = vadd.s32 %v1338, %v1340
    %v1343 = vadd.s32 %v1342, %v1332
    %v1344 = vadd.s32 %v1343, %v1334
    %v1345 = vand.u32 %v1322, 65535
    %v1346 = vshrl.u32 %v1322, 16
    %v1347 = vand.u32 %v1317, 65535
    %v1348 = vshrl.u32 %v1317, 16
    %v1349 = vmul.u32 %v1345, %v1347
    %v1350 = vmul.u32 %v1345, %v1348
    %v1351 = vmul.u32 %v1346, %v1347
    %v1352 = vmul.u32 %v1346, %v1348
    %v1353 = vshll.u32 %v1350, 16
    %v1354 = vshrl.u32 %v1350, 16
    %v1355 = vshll.u32 %v1351, 16
    %v1356 = vshrl.u32 %v1351, 16
    %vm1357 = vc.u32 %v1349, %v1353
    %v1358 = vsel %vm1357, 1, 0
    %v1359 = vadd.s32 %v1349, %v1353
    %v1360 = vadd.s32 %v1352, %v1358
    %vm1361 = vc.u32 %v1359, %v1355
    %v1362 = vsel %vm1361, 1, 0
    %v1363 = vadd.s32 %v1359, %v1355
    %v1364 = vadd.s32 %v1360, %v1362
    %v1365 = vadd.s32 %v1364, %v1354
    %v1366 = vadd.s32 %v1365, %v1356
    %v1367 = vmul.u32 %v1322, %v1313
    %v1368 = vadd.s32 %v1344, %v1363
    %vm1369 = vc.u32 %v1344, %v1363
    %v1370 = vadd.s32 %v1366, 1
    %v1371 = vsel %vm1369, %v1370, %v1366
    %v1372 = vadd.s32 %v1367, %v1371
    %v1373 = vadd.s32 %v1372, 536870912
    %v1374 = vshrl.u32 %v1373, 30
    %v1375 = vshll.u32 %v1374, 30
    %v1376 = vsub.s32 %v1372, %v1375
    %vm1377 = vcmp.lt.s32.totalorder %v1376, 0
    %v1378 = vsub.s32 0, %v1376
    %v1379 = vsel %vm1377, %v1378, %v1376
    %v1380 = vclz %v1379
    %v1381 = vsub.s32 %v1380, 2
    %vm1382 = vcmp.gt.s32.totalorder 0, %v1381
    %v1383 = vsel %vm1382, 0, %v1381
    %v1384 = vsub.s32 32, %v1383
    %v1385 = vshll.u32 %v1376, %v1383
    %v1386 = vshrl.u32 %v1368, %v1384
    %v1387 = vor.u32 %v1385, %v1386
    %v1388 = vsub.s32 4294967266, %v1383
    %v1389 = vadd.s32 %v1388, 127
    %v1390 = vshll.u32 %v1389, 23
    %v1391 = vor.u32 4788187, %v1390
    %v1392 = vand.u32 2147483647, %v1391
    %v1394 = vcvt.s32.f32 %v1387
    %v1395 = vmul.f32 %v1394, %v1392
    %v1396 = vxor.u32 %v1395, 2147483648
    %v1397 = vsel %vm1276, %v1396, %v1395
    %v1398 = vsub.s32 4, %v1374
    %v1399 = vsel %vm1276, %v1398, %v1374
    %v1400 = vsel %vm1275, %v338, %v1397
    %v1401 = vsel %vm1275, 0, %v1399
    %v1402 = vmul.f32 %v1400, %v1400
    %v1403 = vmul.f32 %v1402, -0.001358992
    %v1404 = vadd.f32 %v1403, 0.041655596
    %v1405 = vmul.f32 %v1402, %v1404
    %v1406 = vadd.f32 %v1405, -0.4999988
    %v1407 = vmul.f32 %v1402, %v1406
    %v1408 = vadd.f32 1.0, %v1407
    %v1409 = vmul.f32 %v1400, %v1400
    %v1410 = vmul.f32 %v1409, -0.00019511016
    %v1411 = vadd.f32 %v1410, 0.008332121
    %v1412 = vmul.f32 %v1409, %v1411
    %v1413 = vadd.f32 %v1412, -0.16666654
    %v1414 = vmul.f32 %v1409, %v1413
    %v1415 = vadd.f32 %v1414, 1.0
    %v1416 = vmul.f32 %v1415, %v1400
    %vm1417 = vweird.f32 %v338
    %v1418 = vadd.s32 %v1401, 3
    %v1419 = vand.u32 %v1418, 3
    %vm1420 = vcmp.lt.s32.totalorder %v1419, 2
    %vm1421 = vcmp.eq.s32.totalorder %v1419, 0
    %v1422 = vxor.u32 %v1416, 2147483648
    %v1423 = vsel %vm1421, %v1408, %v1422
    %vm1424 = vcmp.eq.s32.totalorder %v1419, 2
    %v1425 = vxor.u32 %v1408, 2147483648
    %v1426 = vsel %vm1424, %v1425, %v1416
    %v1427 = vsel %vm1420, %v1423, %v1426
    %v1428 = vsel %vm1417, nan, %v1427
    %v1429 = vand.u32 2147483647, %v339
    %vm1430 = vcmp.le.f32.partialorder %v1429, 0.7853982
    %vm1431 = vcmp.lt.s32.totalorder %v339, 0
    %v1432 = vand.u32 %v339, 2139095040
    %v1433 = vshrl.u32 %v1432, 23
    %v1434 = vsub.s32 %v1433, 127
    %v1435 = vand.u32 2147483647, %v339
    %v1436 = vand.u32 %v1435, 8388607
    %v1437 = vor.u32 %v1436, 8388608
    %v1438 = vsub.s32 0, %v1437
    %v1439 = vadd.s32 %v1434, 1
    %vm1440 = vcmp.gt.s32.totalorder %v1439, 0
    %v1441 = vsel %vm1440, %v1439, 0
    %v1442 = vshrl.u32 %v1441, 5
    %v1443 = vand.u32 %v1441, 31
    %v1444 = vsub.s32 32, %v1443
    %v1445 = vshrl.u32 683565275, %v1444
    %v1446 = vshll.u32 683565275, %v1443
    %v1447 = vshrl.u32 2475754826, %v1444
    %v1448 = vor.u32 %v1446, %v1447
    %v1449 = vshll.u32 2475754826, %v1443
    %v1450 = vshrl.u32 2131351028, %v1444
    %v1451 = vor.u32 %v1449, %v1450
    %v1452 = vshll.u32 2131351028, %v1443
    %v1453 = vshrl.u32 2102212464, %v1444
    %v1454 = vor.u32 %v1452, %v1453
    %v1455 = vshll.u32 2102212464, %v1443
    %v1456 = vshrl.u32 920167782, %v1444
    %v1457 = vor.u32 %v1455, %v1456
    %v1458 = vshll.u32 920167782, %v1443
    %v1459 = vshrl.u32 1326507024, %v1444
    %v1460 = vor.u32 %v1458, %v1459
    %vm1461 = vcmp.lt.s32.totalorder %v1442, 1
    %vm1462 = vcmp.lt.s32.totalorder %v1442, 2
    %vm1463 = vcmp.lt.s32.totalorder %v1442, 3
    %vm1464 = vcmp.lt.s32.totalorder %v1442, 4
    %v1465 = vsel %vm1461, %v1445, %v1448
    %v1466 = vsel %vm1464, %v1454, 2102212464
    %v1467 = vsel %vm1463, %v1451, %v1466
    %v1468 = vsel %vm1462, %v1465, %v1467
    %v1469 = vsel %vm1461, %v1448, %v1451
    %v1470 = vsel %vm1464, %v1457, 920167782
    %v1471 = vsel %vm1463, %v1454, %v1470
    %v1472 = vsel %vm1462, %v1469, %v1471
    %v1473 = vsel %vm1461, %v1451, %v1454
    %v1474 = vsel %vm1464, %v1460, 1326507024
    %v1475 = vsel %vm1463, %v1457, %v1474
    %v1476 = vsel %vm1462, %v1473, %v1475
    %v1477 = vshll.u32 %v1437, 8
    %v1478 = vand.u32 %v1477, 65535
    %v1479 = vshrl.u32 %v1477, 16
    %v1480 = vand.u32 %v1476, 65535
    %v1481 = vshrl.u32 %v1476, 16
    %v1482 = vmul.u32 %v1478, %v1480
    %v1483 = vmul.u32 %v1478, %v1481
    %v1484 = vmul.u32 %v1479, %v1480
    %v1485 = vmul.u32 %v1479, %v1481
    %v1486 = vshll.u32 %v1483, 16
    %v1487 = vshrl.u32 %v1483, 16
    %v1488 = vshll.u32 %v1484, 16
    %v1489 = vshrl.u32 %v1484, 16
    %vm1490 = vc.u32 %v1482, %v1486
    %v1491 = vsel %vm1490, 1, 0
    %v1492 = vadd.s32 %v1482, %v1486
    %v1493 = vadd.s32 %v1485, %v1491
    %vm1494 = vc.u32 %v1492, %v1488
    %v1495 = vsel %vm1494, 1, 0
    %v1496 = vadd.s32 %v1492, %v1488
    %v1497 = vadd.s32 %v1493, %v1495
    %v1498 = vadd.s32 %v1497, %v1487
    %v1499 = vadd.s32 %v1498, %v1489
    %v1500 = vand.u32 %v1477, 65535
    %v1501 = vshrl.u32 %v1477, 16
    %v1502 = vand.u32 %v1472, 65535
    %v1503 = vshrl.u32 %v1472, 16
    %v1504 = vmul.u32 %v1500, %v1502
    %v1505 = vmul.u32 %v1500, %v1503
    %v1506 = vmul.u32 %v1501, %v1502
    %v1507 = vmul.u32 %v1501, %v1503
    %v1508 = vshll.u32 %v1505, 16
    %v1509 = vshrl.u32 %v1505, 16
    %v1510 = vshll.u32 %v1506, 16
    %v1511 = vshrl.u32 %v1506, 16
    %vm1512 = vc.u32 %v1504, %v1508
    %v1513 = vsel %vm1512, 1, 0
    %v1514 = vadd.s32 %v1504, %v1508
    %v1515 = vadd.s32 %v1507, %v1513
    %vm1516 = vc.u32 %v1514, %v1510
    %v1517 = vsel %vm1516, 1, 0
    %v1518 = vadd.s32 %v1514, %v1510
    %v1519 = vadd.s32 %v1515, %v1517
    %v1520 = vadd.s32 %v1519, %v1509
    %v1521 = vadd.s32 %v1520, %v1511
    %v1522 = vmul.u32 %v1477, %v1468
    %v1523 = vadd.s32 %v1499, %v1518
    %vm1524 = vc.u32 %v1499, %v1518
    %v1525 = vadd.s32 %v1521, 1
    %v1526 = vsel %vm1524, %v1525, %v1521
    %v1527 = vadd.s32 %v1522, %v1526
    %v1528 = vadd.s32 %v1527, 536870912
    %v1529 = vshrl.u32 %v1528, 30
    %v1530 = vshll.u32 %v1529, 30
    %v1531 = vsub.s32 %v1527, %v1530
    %vm1532 = vcmp.lt.s32.totalorder %v1531, 0
    %v1533 = vsub.s32 0, %v1531
    %v1534 = vsel %vm1532, %v1533, %v1531
    %v1535 = vclz %v1534
    %v1536 = vsub.s32 %v1535, 2
    %vm1537 = vcmp.gt.s32.totalorder 0, %v1536
    %v1538 = vsel %vm1537, 0, %v1536
    %v1539 = vsub.s32 32, %v1538
    %v1540 = vshll.u32 %v1531, %v1538
    %v1541 = vshrl.u32 %v1523, %v1539
    %v1542 = vor.u32 %v1540, %v1541
    %v1543 = vsub.s32 4294967266, %v1538
    %v1544 = vadd.s32 %v1543, 127
    %v1545 = vshll.u32 %v1544, 23
    %v1546 = vor.u32 4788187, %v1545
    %v1547 = vand.u32 2147483647, %v1546
    %v1549 = vcvt.s32.f32 %v1542
    %v1550 = vmul.f32 %v1549, %v1547
    %v1551 = vxor.u32 %v1550, 2147483648
    %v1552 = vsel %vm1431, %v1551, %v1550
    %v1553 = vsub.s32 4, %v1529
    %v1554 = vsel %vm1431, %v1553, %v1529
    %v1555 = vsel %vm1430, %v339, %v1552
    %v1556 = vsel %vm1430, 0, %v1554
    %v1557 = vmul.f32 %v1555, %v1555
    %v1558 = vmul.f32 %v1557, -0.001358992
    %v1559 = vadd.f32 %v1558, 0.041655596
    %v1560 = vmul.f32 %v1557, %v1559
    %v1561 = vadd.f32 %v1560, -0.4999988
    %v1562 = vmul.f32 %v1557, %v1561
    %v1563 = vadd.f32 1.0, %v1562
    %v1564 = vmul.f32 %v1555, %v1555
    %v1565 = vmul.f32 %v1564, -0.00019511016
    %v1566 = vadd.f32 %v1565, 0.008332121
    %v1567 = vmul.f32 %v1564, %v1566
    %v1568 = vadd.f32 %v1567, -0.16666654
    %v1569 = vmul.f32 %v1564, %v1568
    %v1570 = vadd.f32 %v1569, 1.0
    %v1571 = vmul.f32 %v1570, %v1555
    %vm1572 = vweird.f32 %v339
    %v1573 = vadd.s32 %v1556, 3
    %v1574 = vand.u32 %v1573, 3
    %vm1575 = vcmp.lt.s32.totalorder %v1574, 2
    %vm1576 = vcmp.eq.s32.totalorder %v1574, 0
    %v1577 = vxor.u32 %v1571, 2147483648
    %v1578 = vsel %vm1576, %v1563, %v1577
    %vm1579 = vcmp.eq.s32.totalorder %v1574, 2
    %v1580 = vxor.u32 %v1563, 2147483648
    %v1581 = vsel %vm1579, %v1580, %v1571
    %v1582 = vsel %vm1575, %v1578, %v1581
    %v1583 = vsel %vm1572, nan, %v1582
    %v1584 = vand.u32 2147483647, %v340
    %vm1585 = vcmp.le.f32.partialorder %v1584, 0.7853982
    %vm1586 = vcmp.lt.s32.totalorder %v340, 0
    %v1587 = vand.u32 %v340, 2139095040
    %v1588 = vshrl.u32 %v1587, 23
    %v1589 = vsub.s32 %v1588, 127
    %v1590 = vand.u32 2147483647, %v340
    %v1591 = vand.u32 %v1590, 8388607
    %v1592 = vor.u32 %v1591, 8388608
    %v1593 = vsub.s32 0, %v1592
    %v1594 = vadd.s32 %v1589, 1
    %vm1595 = vcmp.gt.s32.totalorder %v1594, 0
    %v1596 = vsel %vm1595, %v1594, 0
    %v1597 = vshrl.u32 %v1596, 5
    %v1598 = vand.u32 %v1596, 31
    %v1599 = vsub.s32 32, %v1598
    %v1600 = vshrl.u32 683565275, %v1599
    %v1601 = vshll.u32 683565275, %v1598
    %v1602 = vshrl.u32 2475754826, %v1599
    %v1603 = vor.u32 %v1601, %v1602
    %v1604 = vshll.u32 2475754826, %v1598
    %v1605 = vshrl.u32 2131351028, %v1599
    %v1606 = vor.u32 %v1604, %v1605
    %v1607 = vshll.u32 2131351028, %v1598
    %v1608 = vshrl.u32 2102212464, %v1599
    %v1609 = vor.u32 %v1607, %v1608
    %v1610 = vshll.u32 2102212464, %v1598
    %v1611 = vshrl.u32 920167782, %v1599
    %v1612 = vor.u32 %v1610, %v1611
    %v1613 = vshll.u32 920167782, %v1598
    %v1614 = vshrl.u32 1326507024, %v1599
    %v1615 = vor.u32 %v1613, %v1614
    %vm1616 = vcmp.lt.s32.totalorder %v1597, 1
    %vm1617 = vcmp.lt.s32.totalorder %v1597, 2
    %vm1618 = vcmp.lt.s32.totalorder %v1597, 3
    %vm1619 = vcmp.lt.s32.totalorder %v1597, 4
    %v1620 = vsel %vm1616, %v1600, %v1603
    %v1621 = vsel %vm1619, %v1609, 2102212464
    %v1622 = vsel %vm1618, %v1606, %v1621
    %v1623 = vsel %vm1617, %v1620, %v1622
    %v1624 = vsel %vm1616, %v1603, %v1606
    %v1625 = vsel %vm1619, %v1612, 920167782
    %v1626 = vsel %vm1618, %v1609, %v1625
    %v1627 = vsel %vm1617, %v1624, %v1626
    %v1628 = vsel %vm1616, %v1606, %v1609
    %v1629 = vsel %vm1619, %v1615, 1326507024
    %v1630 = vsel %vm1618, %v1612, %v1629
    %v1631 = vsel %vm1617, %v1628, %v1630
    %v1632 = vshll.u32 %v1592, 8
    %v1633 = vand.u32 %v1632, 65535
    %v1634 = vshrl.u32 %v1632, 16
    %v1635 = vand.u32 %v1631, 65535
    %v1636 = vshrl.u32 %v1631, 16
    %v1637 = vmul.u32 %v1633, %v1635
    %v1638 = vmul.u32 %v1633, %v1636
    %v1639 = vmul.u32 %v1634, %v1635
    %v1640 = vmul.u32 %v1634, %v1636
    %v1641 = vshll.u32 %v1638, 16
    %v1642 = vshrl.u32 %v1638, 16
    %v1643 = vshll.u32 %v1639, 16
    %v1644 = vshrl.u32 %v1639, 16
    %vm1645 = vc.u32 %v1637, %v1641
    %v1646 = vsel %vm1645, 1, 0
    %v1647 = vadd.s32 %v1637, %v1641
    %v1648 = vadd.s32 %v1640, %v1646
    %vm1649 = vc.u32 %v1647, %v1643
    %v1650 = vsel %vm1649, 1, 0
    %v1651 = vadd.s32 %v1647, %v1643
    %v1652 = vadd.s32 %v1648, %v1650
    %v1653 = vadd.s32 %v1652, %v1642
    %v1654 = vadd.s32 %v1653, %v1644
    %v1655 = vand.u32 %v1632, 65535
    %v1656 = vshrl.u32 %v1632, 16
    %v1657 = vand.u32 %v1627, 65535
    %v1658 = vshrl.u32 %v1627, 16
    %v1659 = vmul.u32 %v1655, %v1657
    %v1660 = vmul.u32 %v1655, %v1658
    %v1661 = vmul.u32 %v1656, %v1657
    %v1662 = vmul.u32 %v1656, %v1658
    %v1663 = vshll.u32 %v1660, 16
    %v1664 = vshrl.u32 %v1660, 16
    %v1665 = vshll.u32 %v1661, 16
    %v1666 = vshrl.u32 %v1661, 16
    %vm1667 = vc.u32 %v1659, %v1663
    %v1668 = vsel %vm1667, 1, 0
    %v1669 = vadd.s32 %v1659, %v1663
    %v1670 = vadd.s32 %v1662, %v1668
    %vm1671 = vc.u32 %v1669, %v1665
    %v1672 = vsel %vm1671, 1, 0
    %v1673 = vadd.s32 %v1669, %v1665
    %v1674 = vadd.s32 %v1670, %v1672
    %v1675 = vadd.s32 %v1674, %v1664
    %v1676 = vadd.s32 %v1675, %v1666
    %v1677 = vmul.u32 %v1632, %v1623
    %v1678 = vadd.s32 %v1654, %v1673
    %vm1679 = vc.u32 %v1654, %v1673
    %v1680 = vadd.s32 %v1676, 1
    %v1681 = vsel %vm1679, %v1680, %v1676
    %v1682 = vadd.s32 %v1677, %v1681
    %v1683 = vadd.s32 %v1682, 536870912
    %v1684 = vshrl.u32 %v1683, 30
    %v1685 = vshll.u32 %v1684, 30
    %v1686 = vsub.s32 %v1682, %v1685
    %vm1687 = vcmp.lt.s32.totalorder %v1686, 0
    %v1688 = vsub.s32 0, %v1686
    %v1689 = vsel %vm1687, %v1688, %v1686
    %v1690 = vclz %v1689
    %v1691 = vsub.s32 %v1690, 2
    %vm1692 = vcmp.gt.s32.totalorder 0, %v1691
    %v1693 = vsel %vm1692, 0, %v1691
    %v1694 = vsub.s32 32, %v1693
    %v1695 = vshll.u32 %v1686, %v1693
    %v1696 = vshrl.u32 %v1678, %v1694
    %v1697 = vor.u32 %v1695, %v1696
    %v1698 = vsub.s32 4294967266, %v1693
    %v1699 = vadd.s32 %v1698, 127
    %v1700 = vshll.u32 %v1699, 23
    %v1701 = vor.u32 4788187, %v1700
    %v1702 = vand.u32 2147483647, %v1701
    %v1704 = vcvt.s32.f32 %v1697
    %v1705 = vmul.f32 %v1704, %v1702
    %v1706 = vxor.u32 %v1705, 2147483648
    %v1707 = vsel %vm1586, %v1706, %v1705
    %v1708 = vsub.s32 4, %v1684
    %v1709 = vsel %vm1586, %v1708, %v1684
    %v1710 = vsel %vm1585, %v340, %v1707
    %v1711 = vsel %vm1585, 0, %v1709
    %v1712 = vmul.f32 %v1710, %v1710
    %v1713 = vmul.f32 %v1712, -0.001358992
    %v1714 = vadd.f32 %v1713, 0.041655596
    %v1715 = vmul.f32 %v1712, %v1714
    %v1716 = vadd.f32 %v1715, -0.4999988
    %v1717 = vmul.f32 %v1712, %v1716
    %v1718 = vadd.f32 1.0, %v1717
    %v1719 = vmul.f32 %v1710, %v1710
    %v1720 = vmul.f32 %v1719, -0.00019511016
    %v1721 = vadd.f32 %v1720, 0.008332121
    %v1722 = vmul.f32 %v1719, %v1721
    %v1723 = vadd.f32 %v1722, -0.16666654
    %v1724 = vmul.f32 %v1719, %v1723
    %v1725 = vadd.f32 %v1724, 1.0
    %v1726 = vmul.f32 %v1725, %v1710
    %vm1727 = vweird.f32 %v340
    %v1728 = vadd.s32 %v1711, 3
    %v1729 = vand.u32 %v1728, 3
    %vm1730 = vcmp.lt.s32.totalorder %v1729, 2
    %vm1731 = vcmp.eq.s32.totalorder %v1729, 0
    %v1732 = vxor.u32 %v1726, 2147483648
    %v1733 = vsel %vm1731, %v1718, %v1732
    %vm1734 = vcmp.eq.s32.totalorder %v1729, 2
    %v1735 = vxor.u32 %v1718, 2147483648
    %v1736 = vsel %vm1734, %v1735, %v1726
    %v1737 = vsel %vm1730, %v1733, %v1736
    %v1738 = vsel %vm1727, nan, %v1737
    %v1739 = vand.u32 2147483647, %v341
    %vm1740 = vcmp.le.f32.partialorder %v1739, 0.7853982
    %vm1741 = vcmp.lt.s32.totalorder %v341, 0
    %v1742 = vand.u32 %v341, 2139095040
    %v1743 = vshrl.u32 %v1742, 23
    %v1744 = vsub.s32 %v1743, 127
    %v1745 = vand.u32 2147483647, %v341
    %v1746 = vand.u32 %v1745, 8388607
    %v1747 = vor.u32 %v1746, 8388608
    %v1748 = vsub.s32 0, %v1747
    %v1749 = vadd.s32 %v1744, 1
    %vm1750 = vcmp.gt.s32.totalorder %v1749, 0
    %v1751 = vsel %vm1750, %v1749, 0
    %v1752 = vshrl.u32 %v1751, 5
    %v1753 = vand.u32 %v1751, 31
    %v1754 = vsub.s32 32, %v1753
    %v1755 = vshrl.u32 683565275, %v1754
    %v1756 = vshll.u32 683565275, %v1753
    %v1757 = vshrl.u32 2475754826, %v1754
    %v1758 = vor.u32 %v1756, %v1757
    %v1759 = vshll.u32 2475754826, %v1753
    %v1760 = vshrl.u32 2131351028, %v1754
    %v1761 = vor.u32 %v1759, %v1760
    %v1762 = vshll.u32 2131351028, %v1753
    %v1763 = vshrl.u32 2102212464, %v1754
    %v1764 = vor.u32 %v1762, %v1763
    %v1765 = vshll.u32 2102212464, %v1753
    %v1766 = vshrl.u32 920167782, %v1754
    %v1767 = vor.u32 %v1765, %v1766
    %v1768 = vshll.u32 920167782, %v1753
    %v1769 = vshrl.u32 1326507024, %v1754
    %v1770 = vor.u32 %v1768, %v1769
    %vm1771 = vcmp.lt.s32.totalorder %v1752, 1
    %vm1772 = vcmp.lt.s32.totalorder %v1752, 2
    %vm1773 = vcmp.lt.s32.totalorder %v1752, 3
    %vm1774 = vcmp.lt.s32.totalorder %v1752, 4
    %v1775 = vsel %vm1771, %v1755, %v1758
    %v1776 = vsel %vm1774, %v1764, 2102212464
    %v1777 = vsel %vm1773, %v1761, %v1776
    %v1778 = vsel %vm1772, %v1775, %v1777
    %v1779 = vsel %vm1771, %v1758, %v1761
    %v1780 = vsel %vm1774, %v1767, 920167782
    %v1781 = vsel %vm1773, %v1764, %v1780
    %v1782 = vsel %vm1772, %v1779, %v1781
    %v1783 = vsel %vm1771, %v1761, %v1764
    %v1784 = vsel %vm1774, %v1770, 1326507024
    %v1785 = vsel %vm1773, %v1767, %v1784
    %v1786 = vsel %vm1772, %v1783, %v1785
    %v1787 = vshll.u32 %v1747, 8
    %v1788 = vand.u32 %v1787, 65535
    %v1789 = vshrl.u32 %v1787, 16
    %v1790 = vand.u32 %v1786, 65535
    %v1791 = vshrl.u32 %v1786, 16
    %v1792 = vmul.u32 %v1788, %v1790
    %v1793 = vmul.u32 %v1788, %v1791
    %v1794 = vmul.u32 %v1789, %v1790
    %v1795 = vmul.u32 %v1789, %v1791
    %v1796 = vshll.u32 %v1793, 16
    %v1797 = vshrl.u32 %v1793, 16
    %v1798 = vshll.u32 %v1794, 16
    %v1799 = vshrl.u32 %v1794, 16
    %vm1800 = vc.u32 %v1792, %v1796
    %v1801 = vsel %vm1800, 1, 0
    %v1802 = vadd.s32 %v1792, %v1796
    %v1803 = vadd.s32 %v1795, %v1801
    %vm1804 = vc.u32 %v1802, %v1798
    %v1805 = vsel %vm1804, 1, 0
    %v1806 = vadd.s32 %v1802, %v1798
    %v1807 = vadd.s32 %v1803, %v1805
    %v1808 = vadd.s32 %v1807, %v1797
    %v1809 = vadd.s32 %v1808, %v1799
    %v1810 = vand.u32 %v1787, 65535
    %v1811 = vshrl.u32 %v1787, 16
    %v1812 = vand.u32 %v1782, 65535
    %v1813 = vshrl.u32 %v1782, 16
    %v1814 = vmul.u32 %v1810, %v1812
    %v1815 = vmul.u32 %v1810, %v1813
    %v1816 = vmul.u32 %v1811, %v1812
    %v1817 = vmul.u32 %v1811, %v1813
    %v1818 = vshll.u32 %v1815, 16
    %v1819 = vshrl.u32 %v1815, 16
    %v1820 = vshll.u32 %v1816, 16
    %v1821 = vshrl.u32 %v1816, 16
    %vm1822 = vc.u32 %v1814, %v1818
    %v1823 = vsel %vm1822, 1, 0
    %v1824 = vadd.s32 %v1814, %v1818
    %v1825 = vadd.s32 %v1817, %v1823
    %vm1826 = vc.u32 %v1824, %v1820
    %v1827 = vsel %vm1826, 1, 0
    %v1828 = vadd.s32 %v1824, %v1820
    %v1829 = vadd.s32 %v1825, %v1827
    %v1830 = vadd.s32 %v1829, %v1819
    %v1831 = vadd.s32 %v1830, %v1821
    %v1832 = vmul.u32 %v1787, %v1778
    %v1833 = vadd.s32 %v1809, %v1828
    %vm1834 = vc.u32 %v1809, %v1828
    %v1835 = vadd.s32 %v1831, 1
    %v1836 = vsel %vm1834, %v1835, %v1831
    %v1837 = vadd.s32 %v1832, %v1836
    %v1838 = vadd.s32 %v1837, 536870912
    %v1839 = vshrl.u32 %v1838, 30
    %v1840 = vshll.u32 %v1839, 30
    %v1841 = vsub.s32 %v1837, %v1840
    %vm1842 = vcmp.lt.s32.totalorder %v1841, 0
    %v1843 = vsub.s32 0, %v1841
    %v1844 = vsel %vm1842, %v1843, %v1841
    %v1845 = vclz %v1844
    %v1846 = vsub.s32 %v1845, 2
    %vm1847 = vcmp.gt.s32.totalorder 0, %v1846
    %v1848 = vsel %vm1847, 0, %v1846
    %v1849 = vsub.s32 32, %v1848
    %v1850 = vshll.u32 %v1841, %v1848
    %v1851 = vshrl.u32 %v1833, %v1849
    %v1852 = vor.u32 %v1850, %v1851
    %v1853 = vsub.s32 4294967266, %v1848
    %v1854 = vadd.s32 %v1853, 127
    %v1855 = vshll.u32 %v1854, 23
    %v1856 = vor.u32 4788187, %v1855
    %v1857 = vand.u32 2147483647, %v1856
    %v1859 = vcvt.s32.f32 %v1852
    %v1860 = vmul.f32 %v1859, %v1857
    %v1861 = vxor.u32 %v1860, 2147483648
    %v1862 = vsel %vm1741, %v1861, %v1860
    %v1863 = vsub.s32 4, %v1839
    %v1864 = vsel %vm1741, %v1863, %v1839
    %v1865 = vsel %vm1740, %v341, %v1862
    %v1866 = vsel %vm1740, 0, %v1864
    %v1867 = vmul.f32 %v1865, %v1865
    %v1868 = vmul.f32 %v1867, -0.001358992
    %v1869 = vadd.f32 %v1868, 0.041655596
    %v1870 = vmul.f32 %v1867, %v1869
    %v1871 = vadd.f32 %v1870, -0.4999988
    %v1872 = vmul.f32 %v1867, %v1871
    %v1873 = vadd.f32 1.0, %v1872
    %v1874 = vmul.f32 %v1865, %v1865
    %v1875 = vmul.f32 %v1874, -0.00019511016
    %v1876 = vadd.f32 %v1875, 0.008332121
    %v1877 = vmul.f32 %v1874, %v1876
    %v1878 = vadd.f32 %v1877, -0.16666654
    %v1879 = vmul.f32 %v1874, %v1878
    %v1880 = vadd.f32 %v1879, 1.0
    %v1881 = vmul.f32 %v1880, %v1865
    %vm1882 = vweird.f32 %v341
    %v1883 = vadd.s32 %v1866, 3
    %v1884 = vand.u32 %v1883, 3
    %vm1885 = vcmp.lt.s32.totalorder %v1884, 2
    %vm1886 = vcmp.eq.s32.totalorder %v1884, 0
    %v1887 = vxor.u32 %v1881, 2147483648
    %v1888 = vsel %vm1886, %v1873, %v1887
    %vm1889 = vcmp.eq.s32.totalorder %v1884, 2
    %v1890 = vxor.u32 %v1873, 2147483648
    %v1891 = vsel %vm1889, %v1890, %v1881
    %v1892 = vsel %vm1885, %v1888, %v1891
    %v1893 = vsel %vm1882, nan, %v1892
    %v1894 = vand.u32 2147483647, %v342
    %vm1895 = vcmp.le.f32.partialorder %v1894, 0.7853982
    %vm1896 = vcmp.lt.s32.totalorder %v342, 0
    %v1897 = vand.u32 %v342, 2139095040
    %v1898 = vshrl.u32 %v1897, 23
    %v1899 = vsub.s32 %v1898, 127
    %v1900 = vand.u32 2147483647, %v342
    %v1901 = vand.u32 %v1900, 8388607
    %v1902 = vor.u32 %v1901, 8388608
    %v1903 = vsub.s32 0, %v1902
    %v1904 = vadd.s32 %v1899, 1
    %vm1905 = vcmp.gt.s32.totalorder %v1904, 0
    %v1906 = vsel %vm1905, %v1904, 0
    %v1907 = vshrl.u32 %v1906, 5
    %v1908 = vand.u32 %v1906, 31
    %v1909 = vsub.s32 32, %v1908
    %v1910 = vshrl.u32 683565275, %v1909
    %v1911 = vshll.u32 683565275, %v1908
    %v1912 = vshrl.u32 2475754826, %v1909
    %v1913 = vor.u32 %v1911, %v1912
    %v1914 = vshll.u32 2475754826, %v1908
    %v1915 = vshrl.u32 2131351028, %v1909
    %v1916 = vor.u32 %v1914, %v1915
    %v1917 = vshll.u32 2131351028, %v1908
    %v1918 = vshrl.u32 2102212464, %v1909
    %v1919 = vor.u32 %v1917, %v1918
    %v1920 = vshll.u32 2102212464, %v1908
    %v1921 = vshrl.u32 920167782, %v1909
    %v1922 = vor.u32 %v1920, %v1921
    %v1923 = vshll.u32 920167782, %v1908
    %v1924 = vshrl.u32 1326507024, %v1909
    %v1925 = vor.u32 %v1923, %v1924
    %vm1926 = vcmp.lt.s32.totalorder %v1907, 1
    %vm1927 = vcmp.lt.s32.totalorder %v1907, 2
    %vm1928 = vcmp.lt.s32.totalorder %v1907, 3
    %vm1929 = vcmp.lt.s32.totalorder %v1907, 4
    %v1930 = vsel %vm1926, %v1910, %v1913
    %v1931 = vsel %vm1929, %v1919, 2102212464
    %v1932 = vsel %vm1928, %v1916, %v1931
    %v1933 = vsel %vm1927, %v1930, %v1932
    %v1934 = vsel %vm1926, %v1913, %v1916
    %v1935 = vsel %vm1929, %v1922, 920167782
    %v1936 = vsel %vm1928, %v1919, %v1935
    %v1937 = vsel %vm1927, %v1934, %v1936
    %v1938 = vsel %vm1926, %v1916, %v1919
    %v1939 = vsel %vm1929, %v1925, 1326507024
    %v1940 = vsel %vm1928, %v1922, %v1939
    %v1941 = vsel %vm1927, %v1938, %v1940
    %v1942 = vshll.u32 %v1902, 8
    %v1943 = vand.u32 %v1942, 65535
    %v1944 = vshrl.u32 %v1942, 16
    %v1945 = vand.u32 %v1941, 65535
    %v1946 = vshrl.u32 %v1941, 16
    %v1947 = vmul.u32 %v1943, %v1945
    %v1948 = vmul.u32 %v1943, %v1946
    %v1949 = vmul.u32 %v1944, %v1945
    %v1950 = vmul.u32 %v1944, %v1946
    %v1951 = vshll.u32 %v1948, 16
    %v1952 = vshrl.u32 %v1948, 16
    %v1953 = vshll.u32 %v1949, 16
    %v1954 = vshrl.u32 %v1949, 16
    %vm1955 = vc.u32 %v1947, %v1951
    %v1956 = vsel %vm1955, 1, 0
    %v1957 = vadd.s32 %v1947, %v1951
    %v1958 = vadd.s32 %v1950, %v1956
    %vm1959 = vc.u32 %v1957, %v1953
    %v1960 = vsel %vm1959, 1, 0
    %v1961 = vadd.s32 %v1957, %v1953
    %v1962 = vadd.s32 %v1958, %v1960
    %v1963 = vadd.s32 %v1962, %v1952
    %v1964 = vadd.s32 %v1963, %v1954
    %v1965 = vand.u32 %v1942, 65535
    %v1966 = vshrl.u32 %v1942, 16
    %v1967 = vand.u32 %v1937, 65535
    %v1968 = vshrl.u32 %v1937, 16
    %v1969 = vmul.u32 %v1965, %v1967
    %v1970 = vmul.u32 %v1965, %v1968
    %v1971 = vmul.u32 %v1966, %v1967
    %v1972 = vmul.u32 %v1966, %v1968
    %v1973 = vshll.u32 %v1970, 16
    %v1974 = vshrl.u32 %v1970, 16
    %v1975 = vshll.u32 %v1971, 16
    %v1976 = vshrl.u32 %v1971, 16
    %vm1977 = vc.u32 %v1969, %v1973
    %v1978 = vsel %vm1977, 1, 0
    %v1979 = vadd.s32 %v1969, %v1973
    %v1980 = vadd.s32 %v1972, %v1978
    %vm1981 = vc.u32 %v1979, %v1975
    %v1982 = vsel %vm1981, 1, 0
    %v1983 = vadd.s32 %v1979, %v1975
    %v1984 = vadd.s32 %v1980, %v1982
    %v1985 = vadd.s32 %v1984, %v1974
    %v1986 = vadd.s32 %v1985, %v1976
    %v1987 = vmul.u32 %v1942, %v1933
    %v1988 = vadd.s32 %v1964, %v1983
    %vm1989 = vc.u32 %v1964, %v1983
    %v1990 = vadd.s32 %v1986, 1
    %v1991 = vsel %vm1989, %v1990, %v1986
    %v1992 = vadd.s32 %v1987, %v1991
    %v1993 = vadd.s32 %v1992, 536870912
    %v1994 = vshrl.u32 %v1993, 30
    %v1995 = vshll.u32 %v1994, 30
    %v1996 = vsub.s32 %v1992, %v1995
    %vm1997 = vcmp.lt.s32.totalorder %v1996, 0
    %v1998 = vsub.s32 0, %v1996
    %v1999 = vsel %vm1997, %v1998, %v1996
    %v2000 = vclz %v1999
    %v2001 = vsub.s32 %v2000, 2
    %vm2002 = vcmp.gt.s32.totalorder 0, %v2001
    %v2003 = vsel %vm2002, 0, %v2001
    %v2004 = vsub.s32 32, %v2003
    %v2005 = vshll.u32 %v1996, %v2003
    %v2006 = vshrl.u32 %v1988, %v2004
    %v2007 = vor.u32 %v2005, %v2006
    %v2008 = vsub.s32 4294967266, %v2003
    %v2009 = vadd.s32 %v2008, 127
    %v2010 = vshll.u32 %v2009, 23
    %v2011 = vor.u32 4788187, %v2010
    %v2012 = vand.u32 2147483647, %v2011
    %v2014 = vcvt.s32.f32 %v2007
    %v2015 = vmul.f32 %v2014, %v2012
    %v2016 = vxor.u32 %v2015, 2147483648
    %v2017 = vsel %vm1896, %v2016, %v2015
    %v2018 = vsub.s32 4, %v1994
    %v2019 = vsel %vm1896, %v2018, %v1994
    %v2020 = vsel %vm1895, %v342, %v2017
    %v2021 = vsel %vm1895, 0, %v2019
    %v2022 = vmul.f32 %v2020, %v2020
    %v2023 = vmul.f32 %v2022, -0.001358992
    %v2024 = vadd.f32 %v2023, 0.041655596
    %v2025 = vmul.f32 %v2022, %v2024
    %v2026 = vadd.f32 %v2025, -0.4999988
    %v2027 = vmul.f32 %v2022, %v2026
    %v2028 = vadd.f32 1.0, %v2027
    %v2029 = vmul.f32 %v2020, %v2020
    %v2030 = vmul.f32 %v2029, -0.00019511016
    %v2031 = vadd.f32 %v2030, 0.008332121
    %v2032 = vmul.f32 %v2029, %v2031
    %v2033 = vadd.f32 %v2032, -0.16666654
    %v2034 = vmul.f32 %v2029, %v2033
    %v2035 = vadd.f32 %v2034, 1.0
    %v2036 = vmul.f32 %v2035, %v2020
    %vm2037 = vweird.f32 %v342
    %v2038 = vadd.s32 %v2021, 3
    %v2039 = vand.u32 %v2038, 3
    %vm2040 = vcmp.lt.s32.totalorder %v2039, 2
    %vm2041 = vcmp.eq.s32.totalorder %v2039, 0
    %v2042 = vxor.u32 %v2036, 2147483648
    %v2043 = vsel %vm2041, %v2028, %v2042
    %vm2044 = vcmp.eq.s32.totalorder %v2039, 2
    %v2045 = vxor.u32 %v2028, 2147483648
    %v2046 = vsel %vm2044, %v2045, %v2036
    %v2047 = vsel %vm2040, %v2043, %v2046
    %v2048 = vsel %vm2037, nan, %v2047
    %v2049 = vand.u32 2147483647, %v343
    %vm2050 = vcmp.le.f32.partialorder %v2049, 0.7853982
    %vm2051 = vcmp.lt.s32.totalorder %v343, 0
    %v2052 = vand.u32 %v343, 2139095040
    %v2053 = vshrl.u32 %v2052, 23
    %v2054 = vsub.s32 %v2053, 127
    %v2055 = vand.u32 2147483647, %v343
    %v2056 = vand.u32 %v2055, 8388607
    %v2057 = vor.u32 %v2056, 8388608
    %v2058 = vsub.s32 0, %v2057
    %v2059 = vadd.s32 %v2054, 1
    %vm2060 = vcmp.gt.s32.totalorder %v2059, 0
    %v2061 = vsel %vm2060, %v2059, 0
    %v2062 = vshrl.u32 %v2061, 5
    %v2063 = vand.u32 %v2061, 31
    %v2064 = vsub.s32 32, %v2063
    %v2065 = vshrl.u32 683565275, %v2064
    %v2066 = vshll.u32 683565275, %v2063
    %v2067 = vshrl.u32 2475754826, %v2064
    %v2068 = vor.u32 %v2066, %v2067
    %v2069 = vshll.u32 2475754826, %v2063
    %v2070 = vshrl.u32 2131351028, %v2064
    %v2071 = vor.u32 %v2069, %v2070
    %v2072 = vshll.u32 2131351028, %v2063
    %v2073 = vshrl.u32 2102212464, %v2064
    %v2074 = vor.u32 %v2072, %v2073
    %v2075 = vshll.u32 2102212464, %v2063
    %v2076 = vshrl.u32 920167782, %v2064
    %v2077 = vor.u32 %v2075, %v2076
    %v2078 = vshll.u32 920167782, %v2063
    %v2079 = vshrl.u32 1326507024, %v2064
    %v2080 = vor.u32 %v2078, %v2079
    %vm2081 = vcmp.lt.s32.totalorder %v2062, 1
    %vm2082 = vcmp.lt.s32.totalorder %v2062, 2
    %vm2083 = vcmp.lt.s32.totalorder %v2062, 3
    %vm2084 = vcmp.lt.s32.totalorder %v2062, 4
    %v2085 = vsel %vm2081, %v2065, %v2068
    %v2086 = vsel %vm2084, %v2074, 2102212464
    %v2087 = vsel %vm2083, %v2071, %v2086
    %v2088 = vsel %vm2082, %v2085, %v2087
    %v2089 = vsel %vm2081, %v2068, %v2071
    %v2090 = vsel %vm2084, %v2077, 920167782
    %v2091 = vsel %vm2083, %v2074, %v2090
    %v2092 = vsel %vm2082, %v2089, %v2091
    %v2093 = vsel %vm2081, %v2071, %v2074
    %v2094 = vsel %vm2084, %v2080, 1326507024
    %v2095 = vsel %vm2083, %v2077, %v2094
    %v2096 = vsel %vm2082, %v2093, %v2095
    %v2097 = vshll.u32 %v2057, 8
    %v2098 = vand.u32 %v2097, 65535
    %v2099 = vshrl.u32 %v2097, 16
    %v2100 = vand.u32 %v2096, 65535
    %v2101 = vshrl.u32 %v2096, 16
    %v2102 = vmul.u32 %v2098, %v2100
    %v2103 = vmul.u32 %v2098, %v2101
    %v2104 = vmul.u32 %v2099, %v2100
    %v2105 = vmul.u32 %v2099, %v2101
    %v2106 = vshll.u32 %v2103, 16
    %v2107 = vshrl.u32 %v2103, 16
    %v2108 = vshll.u32 %v2104, 16
    %v2109 = vshrl.u32 %v2104, 16
    %vm2110 = vc.u32 %v2102, %v2106
    %v2111 = vsel %vm2110, 1, 0
    %v2112 = vadd.s32 %v2102, %v2106
    %v2113 = vadd.s32 %v2105, %v2111
    %vm2114 = vc.u32 %v2112, %v2108
    %v2115 = vsel %vm2114, 1, 0
    %v2116 = vadd.s32 %v2112, %v2108
    %v2117 = vadd.s32 %v2113, %v2115
    %v2118 = vadd.s32 %v2117, %v2107
    %v2119 = vadd.s32 %v2118, %v2109
    %v2120 = vand.u32 %v2097, 65535
    %v2121 = vshrl.u32 %v2097, 16
    %v2122 = vand.u32 %v2092, 65535
    %v2123 = vshrl.u32 %v2092, 16
    %v2124 = vmul.u32 %v2120, %v2122
    %v2125 = vmul.u32 %v2120, %v2123
    %v2126 = vmul.u32 %v2121, %v2122
    %v2127 = vmul.u32 %v2121, %v2123
    %v2128 = vshll.u32 %v2125, 16
    %v2129 = vshrl.u32 %v2125, 16
    %v2130 = vshll.u32 %v2126, 16
    %v2131 = vshrl.u32 %v2126, 16
    %vm2132 = vc.u32 %v2124, %v2128
    %v2133 = vsel %vm2132, 1, 0
    %v2134 = vadd.s32 %v2124, %v2128
    %v2135 = vadd.s32 %v2127, %v2133
    %vm2136 = vc.u32 %v2134, %v2130
    %v2137 = vsel %vm2136, 1, 0
    %v2138 = vadd.s32 %v2134, %v2130
    %v2139 = vadd.s32 %v2135, %v2137
    %v2140 = vadd.s32 %v2139, %v2129
    %v2141 = vadd.s32 %v2140, %v2131
    %v2142 = vmul.u32 %v2097, %v2088
    %v2143 = vadd.s32 %v2119, %v2138
    %vm2144 = vc.u32 %v2119, %v2138
    %v2145 = vadd.s32 %v2141, 1
    %v2146 = vsel %vm2144, %v2145, %v2141
    %v2147 = vadd.s32 %v2142, %v2146
    %v2148 = vadd.s32 %v2147, 536870912
    %v2149 = vshrl.u32 %v2148, 30
    %v2150 = vshll.u32 %v2149, 30
    %v2151 = vsub.s32 %v2147, %v2150
    %vm2152 = vcmp.lt.s32.totalorder %v2151, 0
    %v2153 = vsub.s32 0, %v2151
    %v2154 = vsel %vm2152, %v2153, %v2151
    %v2155 = vclz %v2154
    %v2156 = vsub.s32 %v2155, 2
    %vm2157 = vcmp.gt.s32.totalorder 0, %v2156
    %v2158 = vsel %vm2157, 0, %v2156
    %v2159 = vsub.s32 32, %v2158
    %v2160 = vshll.u32 %v2151, %v2158
    %v2161 = vshrl.u32 %v2143, %v2159
    %v2162 = vor.u32 %v2160, %v2161
    %v2163 = vsub.s32 4294967266, %v2158
    %v2164 = vadd.s32 %v2163, 127
    %v2165 = vshll.u32 %v2164, 23
    %v2166 = vor.u32 4788187, %v2165
    %v2167 = vand.u32 2147483647, %v2166
    %v2169 = vcvt.s32.f32 %v2162
    %v2170 = vmul.f32 %v2169, %v2167
    %v2171 = vxor.u32 %v2170, 2147483648
    %v2172 = vsel %vm2051, %v2171, %v2170
    %v2173 = vsub.s32 4, %v2149
    %v2174 = vsel %vm2051, %v2173, %v2149
    %v2175 = vsel %vm2050, %v343, %v2172
    %v2176 = vsel %vm2050, 0, %v2174
    %v2177 = vmul.f32 %v2175, %v2175
    %v2178 = vmul.f32 %v2177, -0.001358992
    %v2179 = vadd.f32 %v2178, 0.041655596
    %v2180 = vmul.f32 %v2177, %v2179
    %v2181 = vadd.f32 %v2180, -0.4999988
    %v2182 = vmul.f32 %v2177, %v2181
    %v2183 = vadd.f32 1.0, %v2182
    %v2184 = vmul.f32 %v2175, %v2175
    %v2185 = vmul.f32 %v2184, -0.00019511016
    %v2186 = vadd.f32 %v2185, 0.008332121
    %v2187 = vmul.f32 %v2184, %v2186
    %v2188 = vadd.f32 %v2187, -0.16666654
    %v2189 = vmul.f32 %v2184, %v2188
    %v2190 = vadd.f32 %v2189, 1.0
    %v2191 = vmul.f32 %v2190, %v2175
    %vm2192 = vweird.f32 %v343
    %v2193 = vadd.s32 %v2176, 3
    %v2194 = vand.u32 %v2193, 3
    %vm2195 = vcmp.lt.s32.totalorder %v2194, 2
    %vm2196 = vcmp.eq.s32.totalorder %v2194, 0
    %v2197 = vxor.u32 %v2191, 2147483648
    %v2198 = vsel %vm2196, %v2183, %v2197
    %vm2199 = vcmp.eq.s32.totalorder %v2194, 2
    %v2200 = vxor.u32 %v2183, 2147483648
    %v2201 = vsel %vm2199, %v2200, %v2191
    %v2202 = vsel %vm2195, %v2198, %v2201
    %v2203 = vsel %vm2192, nan, %v2202
    %v2204 = vld [vmem:[%s7] sm:$0xff]
    %v2205 = vld [vmem:[%s7 + $0x8] sm:$0xff]
    %v2206 = vld [vmem:[%s7 + $0x10] sm:$0xff]
    %v2207 = vld [vmem:[%s7 + $0x18] sm:$0xff]
    %v2208 = vld [vmem:[%s8] sm:$0xff]
    %v2209 = vld [vmem:[%s8 + $0x8] sm:$0xff]
    %v2210 = vld [vmem:[%s8 + $0x10] sm:$0xff]
    %v2211 = vld [vmem:[%s8 + $0x18] sm:$0xff]
    %2213 = vset.pattern.permute.xlu0 0
    %2214 = vperm.xlu0 %2213, %v2208
    %v2215 = vpop.permute.xlu0 %2214
    %2218 = vset.pattern.permute.xlu0 0
    %2219 = vperm.xlu0 %2218, %v2209
    %v2220 = vpop.permute.xlu0 %2219
    %2223 = vset.pattern.permute.xlu0 0
    %2224 = vperm.xlu0 %2223, %v2210
    %v2225 = vpop.permute.xlu0 %2224
    %2228 = vset.pattern.permute.xlu0 0
    %2229 = vperm.xlu0 %2228, %v2211
    %v2230 = vpop.permute.xlu0 %2229
    %vm2232 = vcmask 261120
    %v2234 = vsel %vm2232, %v2204, 0
    %v2237 = vsel %vm2232, %v2205, 0
    %v2240 = vsel %vm2232, %v2206, 0
    %v2243 = vsel %vm2232, %v2207, 0
    %2245 = vmatpush.msra.mxu0 0.0
    %2246 = vmatpush.msra.mxu0 0.0
    %2247 = vmatpush.msra.mxu0 0.0
    %2248 = vmatpush.msra.mxu0 0.0
    %2249 = vmatpush.msra.mxu0 0.0
    %2250 = vmatpush.msra.mxu0 0.0
    %2251 = vmatpush.msra.mxu0 0.0
    %2252 = vmatpush.msra.mxu0 0.0
    %2253 = vmatpush.msra.mxu0 0.0
    %2254 = vmatpush.msra.mxu0 0.0
    %2255 = vmatpush.msra.mxu0 0.0
    %2256 = vmatpush.msra.mxu0 0.0
    %2257 = vmatpush.msra.mxu0 %v1893
    %2258 = vmatpush.msra.mxu0 %v1428
    %2259 = vmatpush.msra.mxu0 %v963
    %2260 = vmatpush.msra.mxu0 %v498
    %2261 = vmatmul.f32.gmra.mxu0 %v2234
    %v2262 = vpop.f32.mrf.mxu0
    %v2263 = vadd.f32 %v2215, %v2262
    %2264 = vmatmul.f32.gmra.mxu0 %v2237
    %v2265 = vpop.f32.mrf.mxu0
    %v2266 = vadd.f32 %v2220, %v2265
    %2267 = vmatmul.f32.gmra.mxu0 %v2240
    %v2268 = vpop.f32.mrf.mxu0
    %v2269 = vadd.f32 %v2225, %v2268
    %2270 = vmatmul.f32.gmra.mxu0 %v2243
    %v2271 = vpop.f32.mrf.mxu0
    %v2272 = vadd.f32 %v2230, %v2271
    %2273 = vdwg.mxu0
    %2274 = vmatpush.msra.mxu0 0.0
    %2275 = vmatpush.msra.mxu0 0.0
    %2276 = vmatpush.msra.mxu0 0.0
    %2277 = vmatpush.msra.mxu0 0.0
    %2278 = vmatpush.msra.mxu0 0.0
    %2279 = vmatpush.msra.mxu0 0.0
    %2280 = vmatpush.msra.mxu0 0.0
    %2281 = vmatpush.msra.mxu0 0.0
    %2282 = vmatpush.msra.mxu0 0.0
    %2283 = vmatpush.msra.mxu0 0.0
    %2284 = vmatpush.msra.mxu0 0.0
    %2285 = vmatpush.msra.mxu0 0.0
    %2286 = vmatpush.msra.mxu0 %v2048
    %2287 = vmatpush.msra.mxu0 %v1583
    %2288 = vmatpush.msra.mxu0 %v1118
    %2289 = vmatpush.msra.mxu0 %v653
    %2290 = vmatmul.f32.gmra.mxu0 %v2234
    %v2291 = vpop.f32.mrf.mxu0
    %v2292 = vadd.f32 %v2215, %v2291
    %2293 = vmatmul.f32.gmra.mxu0 %v2237
    %v2294 = vpop.f32.mrf.mxu0
    %v2295 = vadd.f32 %v2220, %v2294
    %2296 = vmatmul.f32.gmra.mxu0 %v2240
    %v2297 = vpop.f32.mrf.mxu0
    %v2298 = vadd.f32 %v2225, %v2297
    %2299 = vmatmul.f32.gmra.mxu0 %v2243
    %v2300 = vpop.f32.mrf.mxu0
    %v2301 = vadd.f32 %v2230, %v2300
    %2302 = vdwg.mxu0
    %2303 = vmatpush.msra.mxu0 0.0
    %2304 = vmatpush.msra.mxu0 0.0
    %2305 = vmatpush.msra.mxu0 0.0
    %2306 = vmatpush.msra.mxu0 0.0
    %2307 = vmatpush.msra.mxu0 0.0
    %2308 = vmatpush.msra.mxu0 0.0
    %2309 = vmatpush.msra.mxu0 0.0
    %2310 = vmatpush.msra.mxu0 0.0
    %2311 = vmatpush.msra.mxu0 0.0
    %2312 = vmatpush.msra.mxu0 0.0
    %2313 = vmatpush.msra.mxu0 0.0
    %2314 = vmatpush.msra.mxu0 0.0
    %2315 = vmatpush.msra.mxu0 %v2203
    %2316 = vmatpush.msra.mxu0 %v1738
    %2317 = vmatpush.msra.mxu0 %v1273
    %2318 = vmatpush.msra.mxu0 %v808
    %2319 = vmatmul.f32.gmra.mxu0 %v2234
    %v2320 = vpop.f32.mrf.mxu0
    %v2321 = vadd.f32 %v2215, %v2320
    %2322 = vmatmul.f32.gmra.mxu0 %v2237
    %v2323 = vpop.f32.mrf.mxu0
    %v2324 = vadd.f32 %v2220, %v2323
    %2325 = vmatmul.f32.gmra.mxu0 %v2240
    %v2326 = vpop.f32.mrf.mxu0
    %v2327 = vadd.f32 %v2225, %v2326
    %2328 = vmatmul.f32.gmra.mxu0 %v2243
    %v2329 = vpop.f32.mrf.mxu0
    %v2330 = vadd.f32 %v2230, %v2329
    %2331 = vdwg.mxu0
    %v2332 = vand.u32 2147483647, %v2263
    %vm2333 = vcmp.le.f32.partialorder %v2332, 0.7853982
    %vm2334 = vcmp.lt.s32.totalorder %v2263, 0
    %v2335 = vand.u32 %v2263, 2139095040
    %v2336 = vshrl.u32 %v2335, 23
    %v2337 = vsub.s32 %v2336, 127
    %v2338 = vand.u32 2147483647, %v2263
    %v2339 = vand.u32 %v2338, 8388607
    %v2340 = vor.u32 %v2339, 8388608
    %v2341 = vsub.s32 0, %v2340
    %v2342 = vadd.s32 %v2337, 1
    %vm2343 = vcmp.gt.s32.totalorder %v2342, 0
    %v2344 = vsel %vm2343, %v2342, 0
    %v2345 = vshrl.u32 %v2344, 5
    %v2346 = vand.u32 %v2344, 31
    %v2347 = vsub.s32 32, %v2346
    %v2348 = vshrl.u32 683565275, %v2347
    %v2349 = vshll.u32 683565275, %v2346
    %v2350 = vshrl.u32 2475754826, %v2347
    %v2351 = vor.u32 %v2349, %v2350
    %v2352 = vshll.u32 2475754826, %v2346
    %v2353 = vshrl.u32 2131351028, %v2347
    %v2354 = vor.u32 %v2352, %v2353
    %v2355 = vshll.u32 2131351028, %v2346
    %v2356 = vshrl.u32 2102212464, %v2347
    %v2357 = vor.u32 %v2355, %v2356
    %v2358 = vshll.u32 2102212464, %v2346
    %v2359 = vshrl.u32 920167782, %v2347
    %v2360 = vor.u32 %v2358, %v2359
    %v2361 = vshll.u32 920167782, %v2346
    %v2362 = vshrl.u32 1326507024, %v2347
    %v2363 = vor.u32 %v2361, %v2362
    %vm2364 = vcmp.lt.s32.totalorder %v2345, 1
    %vm2365 = vcmp.lt.s32.totalorder %v2345, 2
    %vm2366 = vcmp.lt.s32.totalorder %v2345, 3
    %vm2367 = vcmp.lt.s32.totalorder %v2345, 4
    %v2368 = vsel %vm2364, %v2348, %v2351
    %v2369 = vsel %vm2367, %v2357, 2102212464
    %v2370 = vsel %vm2366, %v2354, %v2369
    %v2371 = vsel %vm2365, %v2368, %v2370
    %v2372 = vsel %vm2364, %v2351, %v2354
    %v2373 = vsel %vm2367, %v2360, 920167782
    %v2374 = vsel %vm2366, %v2357, %v2373
    %v2375 = vsel %vm2365, %v2372, %v2374
    %v2376 = vsel %vm2364, %v2354, %v2357
    %v2377 = vsel %vm2367, %v2363, 1326507024
    %v2378 = vsel %vm2366, %v2360, %v2377
    %v2379 = vsel %vm2365, %v2376, %v2378
    %v2380 = vshll.u32 %v2340, 8
    %v2381 = vand.u32 %v2380, 65535
    %v2382 = vshrl.u32 %v2380, 16
    %v2383 = vand.u32 %v2379, 65535
    %v2384 = vshrl.u32 %v2379, 16
    %v2385 = vmul.u32 %v2381, %v2383
    %v2386 = vmul.u32 %v2381, %v2384
    %v2387 = vmul.u32 %v2382, %v2383
    %v2388 = vmul.u32 %v2382, %v2384
    %v2389 = vshll.u32 %v2386, 16
    %v2390 = vshrl.u32 %v2386, 16
    %v2391 = vshll.u32 %v2387, 16
    %v2392 = vshrl.u32 %v2387, 16
    %vm2393 = vc.u32 %v2385, %v2389
    %v2394 = vsel %vm2393, 1, 0
    %v2395 = vadd.s32 %v2385, %v2389
    %v2396 = vadd.s32 %v2388, %v2394
    %vm2397 = vc.u32 %v2395, %v2391
    %v2398 = vsel %vm2397, 1, 0
    %v2399 = vadd.s32 %v2395, %v2391
    %v2400 = vadd.s32 %v2396, %v2398
    %v2401 = vadd.s32 %v2400, %v2390
    %v2402 = vadd.s32 %v2401, %v2392
    %v2403 = vand.u32 %v2380, 65535
    %v2404 = vshrl.u32 %v2380, 16
    %v2405 = vand.u32 %v2375, 65535
    %v2406 = vshrl.u32 %v2375, 16
    %v2407 = vmul.u32 %v2403, %v2405
    %v2408 = vmul.u32 %v2403, %v2406
    %v2409 = vmul.u32 %v2404, %v2405
    %v2410 = vmul.u32 %v2404, %v2406
    %v2411 = vshll.u32 %v2408, 16
    %v2412 = vshrl.u32 %v2408, 16
    %v2413 = vshll.u32 %v2409, 16
    %v2414 = vshrl.u32 %v2409, 16
    %vm2415 = vc.u32 %v2407, %v2411
    %v2416 = vsel %vm2415, 1, 0
    %v2417 = vadd.s32 %v2407, %v2411
    %v2418 = vadd.s32 %v2410, %v2416
    %vm2419 = vc.u32 %v2417, %v2413
    %v2420 = vsel %vm2419, 1, 0
    %v2421 = vadd.s32 %v2417, %v2413
    %v2422 = vadd.s32 %v2418, %v2420
    %v2423 = vadd.s32 %v2422, %v2412
    %v2424 = vadd.s32 %v2423, %v2414
    %v2425 = vmul.u32 %v2380, %v2371
    %v2426 = vadd.s32 %v2402, %v2421
    %vm2427 = vc.u32 %v2402, %v2421
    %v2428 = vadd.s32 %v2424, 1
    %v2429 = vsel %vm2427, %v2428, %v2424
    %v2430 = vadd.s32 %v2425, %v2429
    %v2431 = vadd.s32 %v2430, 536870912
    %v2432 = vshrl.u32 %v2431, 30
    %v2433 = vshll.u32 %v2432, 30
    %v2434 = vsub.s32 %v2430, %v2433
    %vm2435 = vcmp.lt.s32.totalorder %v2434, 0
    %v2436 = vsub.s32 0, %v2434
    %v2437 = vsel %vm2435, %v2436, %v2434
    %v2438 = vclz %v2437
    %v2439 = vsub.s32 %v2438, 2
    %vm2440 = vcmp.gt.s32.totalorder 0, %v2439
    %v2441 = vsel %vm2440, 0, %v2439
    %v2442 = vsub.s32 32, %v2441
    %v2443 = vshll.u32 %v2434, %v2441
    %v2444 = vshrl.u32 %v2426, %v2442
    %v2445 = vor.u32 %v2443, %v2444
    %v2446 = vsub.s32 4294967266, %v2441
    %v2447 = vadd.s32 %v2446, 127
    %v2448 = vshll.u32 %v2447, 23
    %v2449 = vor.u32 4788187, %v2448
    %v2450 = vand.u32 2147483647, %v2449
    %v2452 = vcvt.s32.f32 %v2445
    %v2453 = vmul.f32 %v2452, %v2450
    %v2454 = vxor.u32 %v2453, 2147483648
    %v2455 = vsel %vm2334, %v2454, %v2453
    %v2456 = vsub.s32 4, %v2432
    %v2457 = vsel %vm2334, %v2456, %v2432
    %v2458 = vsel %vm2333, %v2263, %v2455
    %v2459 = vsel %vm2333, 0, %v2457
    %v2460 = vmul.f32 %v2458, %v2458
    %v2461 = vmul.f32 %v2460, -0.001358992
    %v2462 = vadd.f32 %v2461, 0.041655596
    %v2463 = vmul.f32 %v2460, %v2462
    %v2464 = vadd.f32 %v2463, -0.4999988
    %v2465 = vmul.f32 %v2460, %v2464
    %v2466 = vadd.f32 1.0, %v2465
    %v2467 = vmul.f32 %v2458, %v2458
    %v2468 = vmul.f32 %v2467, -0.00019511016
    %v2469 = vadd.f32 %v2468, 0.008332121
    %v2470 = vmul.f32 %v2467, %v2469
    %v2471 = vadd.f32 %v2470, -0.16666654
    %v2472 = vmul.f32 %v2467, %v2471
    %v2473 = vadd.f32 %v2472, 1.0
    %v2474 = vmul.f32 %v2473, %v2458
    %vm2475 = vweird.f32 %v2263
    %v2476 = vadd.s32 %v2459, 3
    %v2477 = vand.u32 %v2476, 3
    %vm2478 = vcmp.lt.s32.totalorder %v2477, 2
    %vm2479 = vcmp.eq.s32.totalorder %v2477, 0
    %v2480 = vxor.u32 %v2474, 2147483648
    %v2481 = vsel %vm2479, %v2466, %v2480
    %vm2482 = vcmp.eq.s32.totalorder %v2477, 2
    %v2483 = vxor.u32 %v2466, 2147483648
    %v2484 = vsel %vm2482, %v2483, %v2474
    %v2485 = vsel %vm2478, %v2481, %v2484
    %v2486 = vsel %vm2475, nan, %v2485
    %v2487 = vand.u32 2147483647, %v2292
    %vm2488 = vcmp.le.f32.partialorder %v2487, 0.7853982
    %vm2489 = vcmp.lt.s32.totalorder %v2292, 0
    %v2490 = vand.u32 %v2292, 2139095040
    %v2491 = vshrl.u32 %v2490, 23
    %v2492 = vsub.s32 %v2491, 127
    %v2493 = vand.u32 2147483647, %v2292
    %v2494 = vand.u32 %v2493, 8388607
    %v2495 = vor.u32 %v2494, 8388608
    %v2496 = vsub.s32 0, %v2495
    %v2497 = vadd.s32 %v2492, 1
    %vm2498 = vcmp.gt.s32.totalorder %v2497, 0
    %v2499 = vsel %vm2498, %v2497, 0
    %v2500 = vshrl.u32 %v2499, 5
    %v2501 = vand.u32 %v2499, 31
    %v2502 = vsub.s32 32, %v2501
    %v2503 = vshrl.u32 683565275, %v2502
    %v2504 = vshll.u32 683565275, %v2501
    %v2505 = vshrl.u32 2475754826, %v2502
    %v2506 = vor.u32 %v2504, %v2505
    %v2507 = vshll.u32 2475754826, %v2501
    %v2508 = vshrl.u32 2131351028, %v2502
    %v2509 = vor.u32 %v2507, %v2508
    %v2510 = vshll.u32 2131351028, %v2501
    %v2511 = vshrl.u32 2102212464, %v2502
    %v2512 = vor.u32 %v2510, %v2511
    %v2513 = vshll.u32 2102212464, %v2501
    %v2514 = vshrl.u32 920167782, %v2502
    %v2515 = vor.u32 %v2513, %v2514
    %v2516 = vshll.u32 920167782, %v2501
    %v2517 = vshrl.u32 1326507024, %v2502
    %v2518 = vor.u32 %v2516, %v2517
    %vm2519 = vcmp.lt.s32.totalorder %v2500, 1
    %vm2520 = vcmp.lt.s32.totalorder %v2500, 2
    %vm2521 = vcmp.lt.s32.totalorder %v2500, 3
    %vm2522 = vcmp.lt.s32.totalorder %v2500, 4
    %v2523 = vsel %vm2519, %v2503, %v2506
    %v2524 = vsel %vm2522, %v2512, 2102212464
    %v2525 = vsel %vm2521, %v2509, %v2524
    %v2526 = vsel %vm2520, %v2523, %v2525
    %v2527 = vsel %vm2519, %v2506, %v2509
    %v2528 = vsel %vm2522, %v2515, 920167782
    %v2529 = vsel %vm2521, %v2512, %v2528
    %v2530 = vsel %vm2520, %v2527, %v2529
    %v2531 = vsel %vm2519, %v2509, %v2512
    %v2532 = vsel %vm2522, %v2518, 1326507024
    %v2533 = vsel %vm2521, %v2515, %v2532
    %v2534 = vsel %vm2520, %v2531, %v2533
    %v2535 = vshll.u32 %v2495, 8
    %v2536 = vand.u32 %v2535, 65535
    %v2537 = vshrl.u32 %v2535, 16
    %v2538 = vand.u32 %v2534, 65535
    %v2539 = vshrl.u32 %v2534, 16
    %v2540 = vmul.u32 %v2536, %v2538
    %v2541 = vmul.u32 %v2536, %v2539
    %v2542 = vmul.u32 %v2537, %v2538
    %v2543 = vmul.u32 %v2537, %v2539
    %v2544 = vshll.u32 %v2541, 16
    %v2545 = vshrl.u32 %v2541, 16
    %v2546 = vshll.u32 %v2542, 16
    %v2547 = vshrl.u32 %v2542, 16
    %vm2548 = vc.u32 %v2540, %v2544
    %v2549 = vsel %vm2548, 1, 0
    %v2550 = vadd.s32 %v2540, %v2544
    %v2551 = vadd.s32 %v2543, %v2549
    %vm2552 = vc.u32 %v2550, %v2546
    %v2553 = vsel %vm2552, 1, 0
    %v2554 = vadd.s32 %v2550, %v2546
    %v2555 = vadd.s32 %v2551, %v2553
    %v2556 = vadd.s32 %v2555, %v2545
    %v2557 = vadd.s32 %v2556, %v2547
    %v2558 = vand.u32 %v2535, 65535
    %v2559 = vshrl.u32 %v2535, 16
    %v2560 = vand.u32 %v2530, 65535
    %v2561 = vshrl.u32 %v2530, 16
    %v2562 = vmul.u32 %v2558, %v2560
    %v2563 = vmul.u32 %v2558, %v2561
    %v2564 = vmul.u32 %v2559, %v2560
    %v2565 = vmul.u32 %v2559, %v2561
    %v2566 = vshll.u32 %v2563, 16
    %v2567 = vshrl.u32 %v2563, 16
    %v2568 = vshll.u32 %v2564, 16
    %v2569 = vshrl.u32 %v2564, 16
    %vm2570 = vc.u32 %v2562, %v2566
    %v2571 = vsel %vm2570, 1, 0
    %v2572 = vadd.s32 %v2562, %v2566
    %v2573 = vadd.s32 %v2565, %v2571
    %vm2574 = vc.u32 %v2572, %v2568
    %v2575 = vsel %vm2574, 1, 0
    %v2576 = vadd.s32 %v2572, %v2568
    %v2577 = vadd.s32 %v2573, %v2575
    %v2578 = vadd.s32 %v2577, %v2567
    %v2579 = vadd.s32 %v2578, %v2569
    %v2580 = vmul.u32 %v2535, %v2526
    %v2581 = vadd.s32 %v2557, %v2576
    %vm2582 = vc.u32 %v2557, %v2576
    %v2583 = vadd.s32 %v2579, 1
    %v2584 = vsel %vm2582, %v2583, %v2579
    %v2585 = vadd.s32 %v2580, %v2584
    %v2586 = vadd.s32 %v2585, 536870912
    %v2587 = vshrl.u32 %v2586, 30
    %v2588 = vshll.u32 %v2587, 30
    %v2589 = vsub.s32 %v2585, %v2588
    %vm2590 = vcmp.lt.s32.totalorder %v2589, 0
    %v2591 = vsub.s32 0, %v2589
    %v2592 = vsel %vm2590, %v2591, %v2589
    %v2593 = vclz %v2592
    %v2594 = vsub.s32 %v2593, 2
    %vm2595 = vcmp.gt.s32.totalorder 0, %v2594
    %v2596 = vsel %vm2595, 0, %v2594
    %v2597 = vsub.s32 32, %v2596
    %v2598 = vshll.u32 %v2589, %v2596
    %v2599 = vshrl.u32 %v2581, %v2597
    %v2600 = vor.u32 %v2598, %v2599
    %v2601 = vsub.s32 4294967266, %v2596
    %v2602 = vadd.s32 %v2601, 127
    %v2603 = vshll.u32 %v2602, 23
    %v2604 = vor.u32 4788187, %v2603
    %v2605 = vand.u32 2147483647, %v2604
    %v2607 = vcvt.s32.f32 %v2600
    %v2608 = vmul.f32 %v2607, %v2605
    %v2609 = vxor.u32 %v2608, 2147483648
    %v2610 = vsel %vm2489, %v2609, %v2608
    %v2611 = vsub.s32 4, %v2587
    %v2612 = vsel %vm2489, %v2611, %v2587
    %v2613 = vsel %vm2488, %v2292, %v2610
    %v2614 = vsel %vm2488, 0, %v2612
    %v2615 = vmul.f32 %v2613, %v2613
    %v2616 = vmul.f32 %v2615, -0.001358992
    %v2617 = vadd.f32 %v2616, 0.041655596
    %v2618 = vmul.f32 %v2615, %v2617
    %v2619 = vadd.f32 %v2618, -0.4999988
    %v2620 = vmul.f32 %v2615, %v2619
    %v2621 = vadd.f32 1.0, %v2620
    %v2622 = vmul.f32 %v2613, %v2613
    %v2623 = vmul.f32 %v2622, -0.00019511016
    %v2624 = vadd.f32 %v2623, 0.008332121
    %v2625 = vmul.f32 %v2622, %v2624
    %v2626 = vadd.f32 %v2625, -0.16666654
    %v2627 = vmul.f32 %v2622, %v2626
    %v2628 = vadd.f32 %v2627, 1.0
    %v2629 = vmul.f32 %v2628, %v2613
    %vm2630 = vweird.f32 %v2292
    %v2631 = vadd.s32 %v2614, 3
    %v2632 = vand.u32 %v2631, 3
    %vm2633 = vcmp.lt.s32.totalorder %v2632, 2
    %vm2634 = vcmp.eq.s32.totalorder %v2632, 0
    %v2635 = vxor.u32 %v2629, 2147483648
    %v2636 = vsel %vm2634, %v2621, %v2635
    %vm2637 = vcmp.eq.s32.totalorder %v2632, 2
    %v2638 = vxor.u32 %v2621, 2147483648
    %v2639 = vsel %vm2637, %v2638, %v2629
    %v2640 = vsel %vm2633, %v2636, %v2639
    %v2641 = vsel %vm2630, nan, %v2640
    %v2642 = vand.u32 2147483647, %v2321
    %vm2643 = vcmp.le.f32.partialorder %v2642, 0.7853982
    %vm2644 = vcmp.lt.s32.totalorder %v2321, 0
    %v2645 = vand.u32 %v2321, 2139095040
    %v2646 = vshrl.u32 %v2645, 23
    %v2647 = vsub.s32 %v2646, 127
    %v2648 = vand.u32 2147483647, %v2321
    %v2649 = vand.u32 %v2648, 8388607
    %v2650 = vor.u32 %v2649, 8388608
    %v2651 = vsub.s32 0, %v2650
    %v2652 = vadd.s32 %v2647, 1
    %vm2653 = vcmp.gt.s32.totalorder %v2652, 0
    %v2654 = vsel %vm2653, %v2652, 0
    %v2655 = vshrl.u32 %v2654, 5
    %v2656 = vand.u32 %v2654, 31
    %v2657 = vsub.s32 32, %v2656
    %v2658 = vshrl.u32 683565275, %v2657
    %v2659 = vshll.u32 683565275, %v2656
    %v2660 = vshrl.u32 2475754826, %v2657
    %v2661 = vor.u32 %v2659, %v2660
    %v2662 = vshll.u32 2475754826, %v2656
    %v2663 = vshrl.u32 2131351028, %v2657
    %v2664 = vor.u32 %v2662, %v2663
    %v2665 = vshll.u32 2131351028, %v2656
    %v2666 = vshrl.u32 2102212464, %v2657
    %v2667 = vor.u32 %v2665, %v2666
    %v2668 = vshll.u32 2102212464, %v2656
    %v2669 = vshrl.u32 920167782, %v2657
    %v2670 = vor.u32 %v2668, %v2669
    %v2671 = vshll.u32 920167782, %v2656
    %v2672 = vshrl.u32 1326507024, %v2657
    %v2673 = vor.u32 %v2671, %v2672
    %vm2674 = vcmp.lt.s32.totalorder %v2655, 1
    %vm2675 = vcmp.lt.s32.totalorder %v2655, 2
    %vm2676 = vcmp.lt.s32.totalorder %v2655, 3
    %vm2677 = vcmp.lt.s32.totalorder %v2655, 4
    %v2678 = vsel %vm2674, %v2658, %v2661
    %v2679 = vsel %vm2677, %v2667, 2102212464
    %v2680 = vsel %vm2676, %v2664, %v2679
    %v2681 = vsel %vm2675, %v2678, %v2680
    %v2682 = vsel %vm2674, %v2661, %v2664
    %v2683 = vsel %vm2677, %v2670, 920167782
    %v2684 = vsel %vm2676, %v2667, %v2683
    %v2685 = vsel %vm2675, %v2682, %v2684
    %v2686 = vsel %vm2674, %v2664, %v2667
    %v2687 = vsel %vm2677, %v2673, 1326507024
    %v2688 = vsel %vm2676, %v2670, %v2687
    %v2689 = vsel %vm2675, %v2686, %v2688
    %v2690 = vshll.u32 %v2650, 8
    %v2691 = vand.u32 %v2690, 65535
    %v2692 = vshrl.u32 %v2690, 16
    %v2693 = vand.u32 %v2689, 65535
    %v2694 = vshrl.u32 %v2689, 16
    %v2695 = vmul.u32 %v2691, %v2693
    %v2696 = vmul.u32 %v2691, %v2694
    %v2697 = vmul.u32 %v2692, %v2693
    %v2698 = vmul.u32 %v2692, %v2694
    %v2699 = vshll.u32 %v2696, 16
    %v2700 = vshrl.u32 %v2696, 16
    %v2701 = vshll.u32 %v2697, 16
    %v2702 = vshrl.u32 %v2697, 16
    %vm2703 = vc.u32 %v2695, %v2699
    %v2704 = vsel %vm2703, 1, 0
    %v2705 = vadd.s32 %v2695, %v2699
    %v2706 = vadd.s32 %v2698, %v2704
    %vm2707 = vc.u32 %v2705, %v2701
    %v2708 = vsel %vm2707, 1, 0
    %v2709 = vadd.s32 %v2705, %v2701
    %v2710 = vadd.s32 %v2706, %v2708
    %v2711 = vadd.s32 %v2710, %v2700
    %v2712 = vadd.s32 %v2711, %v2702
    %v2713 = vand.u32 %v2690, 65535
    %v2714 = vshrl.u32 %v2690, 16
    %v2715 = vand.u32 %v2685, 65535
    %v2716 = vshrl.u32 %v2685, 16
    %v2717 = vmul.u32 %v2713, %v2715
    %v2718 = vmul.u32 %v2713, %v2716
    %v2719 = vmul.u32 %v2714, %v2715
    %v2720 = vmul.u32 %v2714, %v2716
    %v2721 = vshll.u32 %v2718, 16
    %v2722 = vshrl.u32 %v2718, 16
    %v2723 = vshll.u32 %v2719, 16
    %v2724 = vshrl.u32 %v2719, 16
    %vm2725 = vc.u32 %v2717, %v2721
    %v2726 = vsel %vm2725, 1, 0
    %v2727 = vadd.s32 %v2717, %v2721
    %v2728 = vadd.s32 %v2720, %v2726
    %vm2729 = vc.u32 %v2727, %v2723
    %v2730 = vsel %vm2729, 1, 0
    %v2731 = vadd.s32 %v2727, %v2723
    %v2732 = vadd.s32 %v2728, %v2730
    %v2733 = vadd.s32 %v2732, %v2722
    %v2734 = vadd.s32 %v2733, %v2724
    %v2735 = vmul.u32 %v2690, %v2681
    %v2736 = vadd.s32 %v2712, %v2731
    %vm2737 = vc.u32 %v2712, %v2731
    %v2738 = vadd.s32 %v2734, 1
    %v2739 = vsel %vm2737, %v2738, %v2734
    %v2740 = vadd.s32 %v2735, %v2739
    %v2741 = vadd.s32 %v2740, 536870912
    %v2742 = vshrl.u32 %v2741, 30
    %v2743 = vshll.u32 %v2742, 30
    %v2744 = vsub.s32 %v2740, %v2743
    %vm2745 = vcmp.lt.s32.totalorder %v2744, 0
    %v2746 = vsub.s32 0, %v2744
    %v2747 = vsel %vm2745, %v2746, %v2744
    %v2748 = vclz %v2747
    %v2749 = vsub.s32 %v2748, 2
    %vm2750 = vcmp.gt.s32.totalorder 0, %v2749
    %v2751 = vsel %vm2750, 0, %v2749
    %v2752 = vsub.s32 32, %v2751
    %v2753 = vshll.u32 %v2744, %v2751
    %v2754 = vshrl.u32 %v2736, %v2752
    %v2755 = vor.u32 %v2753, %v2754
    %v2756 = vsub.s32 4294967266, %v2751
    %v2757 = vadd.s32 %v2756, 127
    %v2758 = vshll.u32 %v2757, 23
    %v2759 = vor.u32 4788187, %v2758
    %v2760 = vand.u32 2147483647, %v2759
    %v2762 = vcvt.s32.f32 %v2755
    %v2763 = vmul.f32 %v2762, %v2760
    %v2764 = vxor.u32 %v2763, 2147483648
    %v2765 = vsel %vm2644, %v2764, %v2763
    %v2766 = vsub.s32 4, %v2742
    %v2767 = vsel %vm2644, %v2766, %v2742
    %v2768 = vsel %vm2643, %v2321, %v2765
    %v2769 = vsel %vm2643, 0, %v2767
    %v2770 = vmul.f32 %v2768, %v2768
    %v2771 = vmul.f32 %v2770, -0.001358992
    %v2772 = vadd.f32 %v2771, 0.041655596
    %v2773 = vmul.f32 %v2770, %v2772
    %v2774 = vadd.f32 %v2773, -0.4999988
    %v2775 = vmul.f32 %v2770, %v2774
    %v2776 = vadd.f32 1.0, %v2775
    %v2777 = vmul.f32 %v2768, %v2768
    %v2778 = vmul.f32 %v2777, -0.00019511016
    %v2779 = vadd.f32 %v2778, 0.008332121
    %v2780 = vmul.f32 %v2777, %v2779
    %v2781 = vadd.f32 %v2780, -0.16666654
    %v2782 = vmul.f32 %v2777, %v2781
    %v2783 = vadd.f32 %v2782, 1.0
    %v2784 = vmul.f32 %v2783, %v2768
    %vm2785 = vweird.f32 %v2321
    %v2786 = vadd.s32 %v2769, 3
    %v2787 = vand.u32 %v2786, 3
    %vm2788 = vcmp.lt.s32.totalorder %v2787, 2
    %vm2789 = vcmp.eq.s32.totalorder %v2787, 0
    %v2790 = vxor.u32 %v2784, 2147483648
    %v2791 = vsel %vm2789, %v2776, %v2790
    %vm2792 = vcmp.eq.s32.totalorder %v2787, 2
    %v2793 = vxor.u32 %v2776, 2147483648
    %v2794 = vsel %vm2792, %v2793, %v2784
    %v2795 = vsel %vm2788, %v2791, %v2794
    %v2796 = vsel %vm2785, nan, %v2795
    %v2797 = vand.u32 2147483647, %v2266
    %vm2798 = vcmp.le.f32.partialorder %v2797, 0.7853982
    %vm2799 = vcmp.lt.s32.totalorder %v2266, 0
    %v2800 = vand.u32 %v2266, 2139095040
    %v2801 = vshrl.u32 %v2800, 23
    %v2802 = vsub.s32 %v2801, 127
    %v2803 = vand.u32 2147483647, %v2266
    %v2804 = vand.u32 %v2803, 8388607
    %v2805 = vor.u32 %v2804, 8388608
    %v2806 = vsub.s32 0, %v2805
    %v2807 = vadd.s32 %v2802, 1
    %vm2808 = vcmp.gt.s32.totalorder %v2807, 0
    %v2809 = vsel %vm2808, %v2807, 0
    %v2810 = vshrl.u32 %v2809, 5
    %v2811 = vand.u32 %v2809, 31
    %v2812 = vsub.s32 32, %v2811
    %v2813 = vshrl.u32 683565275, %v2812
    %v2814 = vshll.u32 683565275, %v2811
    %v2815 = vshrl.u32 2475754826, %v2812
    %v2816 = vor.u32 %v2814, %v2815
    %v2817 = vshll.u32 2475754826, %v2811
    %v2818 = vshrl.u32 2131351028, %v2812
    %v2819 = vor.u32 %v2817, %v2818
    %v2820 = vshll.u32 2131351028, %v2811
    %v2821 = vshrl.u32 2102212464, %v2812
    %v2822 = vor.u32 %v2820, %v2821
    %v2823 = vshll.u32 2102212464, %v2811
    %v2824 = vshrl.u32 920167782, %v2812
    %v2825 = vor.u32 %v2823, %v2824
    %v2826 = vshll.u32 920167782, %v2811
    %v2827 = vshrl.u32 1326507024, %v2812
    %v2828 = vor.u32 %v2826, %v2827
    %vm2829 = vcmp.lt.s32.totalorder %v2810, 1
    %vm2830 = vcmp.lt.s32.totalorder %v2810, 2
    %vm2831 = vcmp.lt.s32.totalorder %v2810, 3
    %vm2832 = vcmp.lt.s32.totalorder %v2810, 4
    %v2833 = vsel %vm2829, %v2813, %v2816
    %v2834 = vsel %vm2832, %v2822, 2102212464
    %v2835 = vsel %vm2831, %v2819, %v2834
    %v2836 = vsel %vm2830, %v2833, %v2835
    %v2837 = vsel %vm2829, %v2816, %v2819
    %v2838 = vsel %vm2832, %v2825, 920167782
    %v2839 = vsel %vm2831, %v2822, %v2838
    %v2840 = vsel %vm2830, %v2837, %v2839
    %v2841 = vsel %vm2829, %v2819, %v2822
    %v2842 = vsel %vm2832, %v2828, 1326507024
    %v2843 = vsel %vm2831, %v2825, %v2842
    %v2844 = vsel %vm2830, %v2841, %v2843
    %v2845 = vshll.u32 %v2805, 8
    %v2846 = vand.u32 %v2845, 65535
    %v2847 = vshrl.u32 %v2845, 16
    %v2848 = vand.u32 %v2844, 65535
    %v2849 = vshrl.u32 %v2844, 16
    %v2850 = vmul.u32 %v2846, %v2848
    %v2851 = vmul.u32 %v2846, %v2849
    %v2852 = vmul.u32 %v2847, %v2848
    %v2853 = vmul.u32 %v2847, %v2849
    %v2854 = vshll.u32 %v2851, 16
    %v2855 = vshrl.u32 %v2851, 16
    %v2856 = vshll.u32 %v2852, 16
    %v2857 = vshrl.u32 %v2852, 16
    %vm2858 = vc.u32 %v2850, %v2854
    %v2859 = vsel %vm2858, 1, 0
    %v2860 = vadd.s32 %v2850, %v2854
    %v2861 = vadd.s32 %v2853, %v2859
    %vm2862 = vc.u32 %v2860, %v2856
    %v2863 = vsel %vm2862, 1, 0
    %v2864 = vadd.s32 %v2860, %v2856
    %v2865 = vadd.s32 %v2861, %v2863
    %v2866 = vadd.s32 %v2865, %v2855
    %v2867 = vadd.s32 %v2866, %v2857
    %v2868 = vand.u32 %v2845, 65535
    %v2869 = vshrl.u32 %v2845, 16
    %v2870 = vand.u32 %v2840, 65535
    %v2871 = vshrl.u32 %v2840, 16
    %v2872 = vmul.u32 %v2868, %v2870
    %v2873 = vmul.u32 %v2868, %v2871
    %v2874 = vmul.u32 %v2869, %v2870
    %v2875 = vmul.u32 %v2869, %v2871
    %v2876 = vshll.u32 %v2873, 16
    %v2877 = vshrl.u32 %v2873, 16
    %v2878 = vshll.u32 %v2874, 16
    %v2879 = vshrl.u32 %v2874, 16
    %vm2880 = vc.u32 %v2872, %v2876
    %v2881 = vsel %vm2880, 1, 0
    %v2882 = vadd.s32 %v2872, %v2876
    %v2883 = vadd.s32 %v2875, %v2881
    %vm2884 = vc.u32 %v2882, %v2878
    %v2885 = vsel %vm2884, 1, 0
    %v2886 = vadd.s32 %v2882, %v2878
    %v2887 = vadd.s32 %v2883, %v2885
    %v2888 = vadd.s32 %v2887, %v2877
    %v2889 = vadd.s32 %v2888, %v2879
    %v2890 = vmul.u32 %v2845, %v2836
    %v2891 = vadd.s32 %v2867, %v2886
    %vm2892 = vc.u32 %v2867, %v2886
    %v2893 = vadd.s32 %v2889, 1
    %v2894 = vsel %vm2892, %v2893, %v2889
    %v2895 = vadd.s32 %v2890, %v2894
    %v2896 = vadd.s32 %v2895, 536870912
    %v2897 = vshrl.u32 %v2896, 30
    %v2898 = vshll.u32 %v2897, 30
    %v2899 = vsub.s32 %v2895, %v2898
    %vm2900 = vcmp.lt.s32.totalorder %v2899, 0
    %v2901 = vsub.s32 0, %v2899
    %v2902 = vsel %vm2900, %v2901, %v2899
    %v2903 = vclz %v2902
    %v2904 = vsub.s32 %v2903, 2
    %vm2905 = vcmp.gt.s32.totalorder 0, %v2904
    %v2906 = vsel %vm2905, 0, %v2904
    %v2907 = vsub.s32 32, %v2906
    %v2908 = vshll.u32 %v2899, %v2906
    %v2909 = vshrl.u32 %v2891, %v2907
    %v2910 = vor.u32 %v2908, %v2909
    %v2911 = vsub.s32 4294967266, %v2906
    %v2912 = vadd.s32 %v2911, 127
    %v2913 = vshll.u32 %v2912, 23
    %v2914 = vor.u32 4788187, %v2913
    %v2915 = vand.u32 2147483647, %v2914
    %v2917 = vcvt.s32.f32 %v2910
    %v2918 = vmul.f32 %v2917, %v2915
    %v2919 = vxor.u32 %v2918, 2147483648
    %v2920 = vsel %vm2799, %v2919, %v2918
    %v2921 = vsub.s32 4, %v2897
    %v2922 = vsel %vm2799, %v2921, %v2897
    %v2923 = vsel %vm2798, %v2266, %v2920
    %v2924 = vsel %vm2798, 0, %v2922
    %v2925 = vmul.f32 %v2923, %v2923
    %v2926 = vmul.f32 %v2925, -0.001358992
    %v2927 = vadd.f32 %v2926, 0.041655596
    %v2928 = vmul.f32 %v2925, %v2927
    %v2929 = vadd.f32 %v2928, -0.4999988
    %v2930 = vmul.f32 %v2925, %v2929
    %v2931 = vadd.f32 1.0, %v2930
    %v2932 = vmul.f32 %v2923, %v2923
    %v2933 = vmul.f32 %v2932, -0.00019511016
    %v2934 = vadd.f32 %v2933, 0.008332121
    %v2935 = vmul.f32 %v2932, %v2934
    %v2936 = vadd.f32 %v2935, -0.16666654
    %v2937 = vmul.f32 %v2932, %v2936
    %v2938 = vadd.f32 %v2937, 1.0
    %v2939 = vmul.f32 %v2938, %v2923
    %vm2940 = vweird.f32 %v2266
    %v2941 = vadd.s32 %v2924, 3
    %v2942 = vand.u32 %v2941, 3
    %vm2943 = vcmp.lt.s32.totalorder %v2942, 2
    %vm2944 = vcmp.eq.s32.totalorder %v2942, 0
    %v2945 = vxor.u32 %v2939, 2147483648
    %v2946 = vsel %vm2944, %v2931, %v2945
    %vm2947 = vcmp.eq.s32.totalorder %v2942, 2
    %v2948 = vxor.u32 %v2931, 2147483648
    %v2949 = vsel %vm2947, %v2948, %v2939
    %v2950 = vsel %vm2943, %v2946, %v2949
    %v2951 = vsel %vm2940, nan, %v2950
    %v2952 = vand.u32 2147483647, %v2295
    %vm2953 = vcmp.le.f32.partialorder %v2952, 0.7853982
    %vm2954 = vcmp.lt.s32.totalorder %v2295, 0
    %v2955 = vand.u32 %v2295, 2139095040
    %v2956 = vshrl.u32 %v2955, 23
    %v2957 = vsub.s32 %v2956, 127
    %v2958 = vand.u32 2147483647, %v2295
    %v2959 = vand.u32 %v2958, 8388607
    %v2960 = vor.u32 %v2959, 8388608
    %v2961 = vsub.s32 0, %v2960
    %v2962 = vadd.s32 %v2957, 1
    %vm2963 = vcmp.gt.s32.totalorder %v2962, 0
    %v2964 = vsel %vm2963, %v2962, 0
    %v2965 = vshrl.u32 %v2964, 5
    %v2966 = vand.u32 %v2964, 31
    %v2967 = vsub.s32 32, %v2966
    %v2968 = vshrl.u32 683565275, %v2967
    %v2969 = vshll.u32 683565275, %v2966
    %v2970 = vshrl.u32 2475754826, %v2967
    %v2971 = vor.u32 %v2969, %v2970
    %v2972 = vshll.u32 2475754826, %v2966
    %v2973 = vshrl.u32 2131351028, %v2967
    %v2974 = vor.u32 %v2972, %v2973
    %v2975 = vshll.u32 2131351028, %v2966
    %v2976 = vshrl.u32 2102212464, %v2967
    %v2977 = vor.u32 %v2975, %v2976
    %v2978 = vshll.u32 2102212464, %v2966
    %v2979 = vshrl.u32 920167782, %v2967
    %v2980 = vor.u32 %v2978, %v2979
    %v2981 = vshll.u32 920167782, %v2966
    %v2982 = vshrl.u32 1326507024, %v2967
    %v2983 = vor.u32 %v2981, %v2982
    %vm2984 = vcmp.lt.s32.totalorder %v2965, 1
    %vm2985 = vcmp.lt.s32.totalorder %v2965, 2
    %vm2986 = vcmp.lt.s32.totalorder %v2965, 3
    %vm2987 = vcmp.lt.s32.totalorder %v2965, 4
    %v2988 = vsel %vm2984, %v2968, %v2971
    %v2989 = vsel %vm2987, %v2977, 2102212464
    %v2990 = vsel %vm2986, %v2974, %v2989
    %v2991 = vsel %vm2985, %v2988, %v2990
    %v2992 = vsel %vm2984, %v2971, %v2974
    %v2993 = vsel %vm2987, %v2980, 920167782
    %v2994 = vsel %vm2986, %v2977, %v2993
    %v2995 = vsel %vm2985, %v2992, %v2994
    %v2996 = vsel %vm2984, %v2974, %v2977
    %v2997 = vsel %vm2987, %v2983, 1326507024
    %v2998 = vsel %vm2986, %v2980, %v2997
    %v2999 = vsel %vm2985, %v2996, %v2998
    %v3000 = vshll.u32 %v2960, 8
    %v3001 = vand.u32 %v3000, 65535
    %v3002 = vshrl.u32 %v3000, 16
    %v3003 = vand.u32 %v2999, 65535
    %v3004 = vshrl.u32 %v2999, 16
    %v3005 = vmul.u32 %v3001, %v3003
    %v3006 = vmul.u32 %v3001, %v3004
    %v3007 = vmul.u32 %v3002, %v3003
    %v3008 = vmul.u32 %v3002, %v3004
    %v3009 = vshll.u32 %v3006, 16
    %v3010 = vshrl.u32 %v3006, 16
    %v3011 = vshll.u32 %v3007, 16
    %v3012 = vshrl.u32 %v3007, 16
    %vm3013 = vc.u32 %v3005, %v3009
    %v3014 = vsel %vm3013, 1, 0
    %v3015 = vadd.s32 %v3005, %v3009
    %v3016 = vadd.s32 %v3008, %v3014
    %vm3017 = vc.u32 %v3015, %v3011
    %v3018 = vsel %vm3017, 1, 0
    %v3019 = vadd.s32 %v3015, %v3011
    %v3020 = vadd.s32 %v3016, %v3018
    %v3021 = vadd.s32 %v3020, %v3010
    %v3022 = vadd.s32 %v3021, %v3012
    %v3023 = vand.u32 %v3000, 65535
    %v3024 = vshrl.u32 %v3000, 16
    %v3025 = vand.u32 %v2995, 65535
    %v3026 = vshrl.u32 %v2995, 16
    %v3027 = vmul.u32 %v3023, %v3025
    %v3028 = vmul.u32 %v3023, %v3026
    %v3029 = vmul.u32 %v3024, %v3025
    %v3030 = vmul.u32 %v3024, %v3026
    %v3031 = vshll.u32 %v3028, 16
    %v3032 = vshrl.u32 %v3028, 16
    %v3033 = vshll.u32 %v3029, 16
    %v3034 = vshrl.u32 %v3029, 16
    %vm3035 = vc.u32 %v3027, %v3031
    %v3036 = vsel %vm3035, 1, 0
    %v3037 = vadd.s32 %v3027, %v3031
    %v3038 = vadd.s32 %v3030, %v3036
    %vm3039 = vc.u32 %v3037, %v3033
    %v3040 = vsel %vm3039, 1, 0
    %v3041 = vadd.s32 %v3037, %v3033
    %v3042 = vadd.s32 %v3038, %v3040
    %v3043 = vadd.s32 %v3042, %v3032
    %v3044 = vadd.s32 %v3043, %v3034
    %v3045 = vmul.u32 %v3000, %v2991
    %v3046 = vadd.s32 %v3022, %v3041
    %vm3047 = vc.u32 %v3022, %v3041
    %v3048 = vadd.s32 %v3044, 1
    %v3049 = vsel %vm3047, %v3048, %v3044
    %v3050 = vadd.s32 %v3045, %v3049
    %v3051 = vadd.s32 %v3050, 536870912
    %v3052 = vshrl.u32 %v3051, 30
    %v3053 = vshll.u32 %v3052, 30
    %v3054 = vsub.s32 %v3050, %v3053
    %vm3055 = vcmp.lt.s32.totalorder %v3054, 0
    %v3056 = vsub.s32 0, %v3054
    %v3057 = vsel %vm3055, %v3056, %v3054
    %v3058 = vclz %v3057
    %v3059 = vsub.s32 %v3058, 2
    %vm3060 = vcmp.gt.s32.totalorder 0, %v3059
    %v3061 = vsel %vm3060, 0, %v3059
    %v3062 = vsub.s32 32, %v3061
    %v3063 = vshll.u32 %v3054, %v3061
    %v3064 = vshrl.u32 %v3046, %v3062
    %v3065 = vor.u32 %v3063, %v3064
    %v3066 = vsub.s32 4294967266, %v3061
    %v3067 = vadd.s32 %v3066, 127
    %v3068 = vshll.u32 %v3067, 23
    %v3069 = vor.u32 4788187, %v3068
    %v3070 = vand.u32 2147483647, %v3069
    %v3072 = vcvt.s32.f32 %v3065
    %v3073 = vmul.f32 %v3072, %v3070
    %v3074 = vxor.u32 %v3073, 2147483648
    %v3075 = vsel %vm2954, %v3074, %v3073
    %v3076 = vsub.s32 4, %v3052
    %v3077 = vsel %vm2954, %v3076, %v3052
    %v3078 = vsel %vm2953, %v2295, %v3075
    %v3079 = vsel %vm2953, 0, %v3077
    %v3080 = vmul.f32 %v3078, %v3078
    %v3081 = vmul.f32 %v3080, -0.001358992
    %v3082 = vadd.f32 %v3081, 0.041655596
    %v3083 = vmul.f32 %v3080, %v3082
    %v3084 = vadd.f32 %v3083, -0.4999988
    %v3085 = vmul.f32 %v3080, %v3084
    %v3086 = vadd.f32 1.0, %v3085
    %v3087 = vmul.f32 %v3078, %v3078
    %v3088 = vmul.f32 %v3087, -0.00019511016
    %v3089 = vadd.f32 %v3088, 0.008332121
    %v3090 = vmul.f32 %v3087, %v3089
    %v3091 = vadd.f32 %v3090, -0.16666654
    %v3092 = vmul.f32 %v3087, %v3091
    %v3093 = vadd.f32 %v3092, 1.0
    %v3094 = vmul.f32 %v3093, %v3078
    %vm3095 = vweird.f32 %v2295
    %v3096 = vadd.s32 %v3079, 3
    %v3097 = vand.u32 %v3096, 3
    %vm3098 = vcmp.lt.s32.totalorder %v3097, 2
    %vm3099 = vcmp.eq.s32.totalorder %v3097, 0
    %v3100 = vxor.u32 %v3094, 2147483648
    %v3101 = vsel %vm3099, %v3086, %v3100
    %vm3102 = vcmp.eq.s32.totalorder %v3097, 2
    %v3103 = vxor.u32 %v3086, 2147483648
    %v3104 = vsel %vm3102, %v3103, %v3094
    %v3105 = vsel %vm3098, %v3101, %v3104
    %v3106 = vsel %vm3095, nan, %v3105
    %v3107 = vand.u32 2147483647, %v2324
    %vm3108 = vcmp.le.f32.partialorder %v3107, 0.7853982
    %vm3109 = vcmp.lt.s32.totalorder %v2324, 0
    %v3110 = vand.u32 %v2324, 2139095040
    %v3111 = vshrl.u32 %v3110, 23
    %v3112 = vsub.s32 %v3111, 127
    %v3113 = vand.u32 2147483647, %v2324
    %v3114 = vand.u32 %v3113, 8388607
    %v3115 = vor.u32 %v3114, 8388608
    %v3116 = vsub.s32 0, %v3115
    %v3117 = vadd.s32 %v3112, 1
    %vm3118 = vcmp.gt.s32.totalorder %v3117, 0
    %v3119 = vsel %vm3118, %v3117, 0
    %v3120 = vshrl.u32 %v3119, 5
    %v3121 = vand.u32 %v3119, 31
    %v3122 = vsub.s32 32, %v3121
    %v3123 = vshrl.u32 683565275, %v3122
    %v3124 = vshll.u32 683565275, %v3121
    %v3125 = vshrl.u32 2475754826, %v3122
    %v3126 = vor.u32 %v3124, %v3125
    %v3127 = vshll.u32 2475754826, %v3121
    %v3128 = vshrl.u32 2131351028, %v3122
    %v3129 = vor.u32 %v3127, %v3128
    %v3130 = vshll.u32 2131351028, %v3121
    %v3131 = vshrl.u32 2102212464, %v3122
    %v3132 = vor.u32 %v3130, %v3131
    %v3133 = vshll.u32 2102212464, %v3121
    %v3134 = vshrl.u32 920167782, %v3122
    %v3135 = vor.u32 %v3133, %v3134
    %v3136 = vshll.u32 920167782, %v3121
    %v3137 = vshrl.u32 1326507024, %v3122
    %v3138 = vor.u32 %v3136, %v3137
    %vm3139 = vcmp.lt.s32.totalorder %v3120, 1
    %vm3140 = vcmp.lt.s32.totalorder %v3120, 2
    %vm3141 = vcmp.lt.s32.totalorder %v3120, 3
    %vm3142 = vcmp.lt.s32.totalorder %v3120, 4
    %v3143 = vsel %vm3139, %v3123, %v3126
    %v3144 = vsel %vm3142, %v3132, 2102212464
    %v3145 = vsel %vm3141, %v3129, %v3144
    %v3146 = vsel %vm3140, %v3143, %v3145
    %v3147 = vsel %vm3139, %v3126, %v3129
    %v3148 = vsel %vm3142, %v3135, 920167782
    %v3149 = vsel %vm3141, %v3132, %v3148
    %v3150 = vsel %vm3140, %v3147, %v3149
    %v3151 = vsel %vm3139, %v3129, %v3132
    %v3152 = vsel %vm3142, %v3138, 1326507024
    %v3153 = vsel %vm3141, %v3135, %v3152
    %v3154 = vsel %vm3140, %v3151, %v3153
    %v3155 = vshll.u32 %v3115, 8
    %v3156 = vand.u32 %v3155, 65535
    %v3157 = vshrl.u32 %v3155, 16
    %v3158 = vand.u32 %v3154, 65535
    %v3159 = vshrl.u32 %v3154, 16
    %v3160 = vmul.u32 %v3156, %v3158
    %v3161 = vmul.u32 %v3156, %v3159
    %v3162 = vmul.u32 %v3157, %v3158
    %v3163 = vmul.u32 %v3157, %v3159
    %v3164 = vshll.u32 %v3161, 16
    %v3165 = vshrl.u32 %v3161, 16
    %v3166 = vshll.u32 %v3162, 16
    %v3167 = vshrl.u32 %v3162, 16
    %vm3168 = vc.u32 %v3160, %v3164
    %v3169 = vsel %vm3168, 1, 0
    %v3170 = vadd.s32 %v3160, %v3164
    %v3171 = vadd.s32 %v3163, %v3169
    %vm3172 = vc.u32 %v3170, %v3166
    %v3173 = vsel %vm3172, 1, 0
    %v3174 = vadd.s32 %v3170, %v3166
    %v3175 = vadd.s32 %v3171, %v3173
    %v3176 = vadd.s32 %v3175, %v3165
    %v3177 = vadd.s32 %v3176, %v3167
    %v3178 = vand.u32 %v3155, 65535
    %v3179 = vshrl.u32 %v3155, 16
    %v3180 = vand.u32 %v3150, 65535
    %v3181 = vshrl.u32 %v3150, 16
    %v3182 = vmul.u32 %v3178, %v3180
    %v3183 = vmul.u32 %v3178, %v3181
    %v3184 = vmul.u32 %v3179, %v3180
    %v3185 = vmul.u32 %v3179, %v3181
    %v3186 = vshll.u32 %v3183, 16
    %v3187 = vshrl.u32 %v3183, 16
    %v3188 = vshll.u32 %v3184, 16
    %v3189 = vshrl.u32 %v3184, 16
    %vm3190 = vc.u32 %v3182, %v3186
    %v3191 = vsel %vm3190, 1, 0
    %v3192 = vadd.s32 %v3182, %v3186
    %v3193 = vadd.s32 %v3185, %v3191
    %vm3194 = vc.u32 %v3192, %v3188
    %v3195 = vsel %vm3194, 1, 0
    %v3196 = vadd.s32 %v3192, %v3188
    %v3197 = vadd.s32 %v3193, %v3195
    %v3198 = vadd.s32 %v3197, %v3187
    %v3199 = vadd.s32 %v3198, %v3189
    %v3200 = vmul.u32 %v3155, %v3146
    %v3201 = vadd.s32 %v3177, %v3196
    %vm3202 = vc.u32 %v3177, %v3196
    %v3203 = vadd.s32 %v3199, 1
    %v3204 = vsel %vm3202, %v3203, %v3199
    %v3205 = vadd.s32 %v3200, %v3204
    %v3206 = vadd.s32 %v3205, 536870912
    %v3207 = vshrl.u32 %v3206, 30
    %v3208 = vshll.u32 %v3207, 30
    %v3209 = vsub.s32 %v3205, %v3208
    %vm3210 = vcmp.lt.s32.totalorder %v3209, 0
    %v3211 = vsub.s32 0, %v3209
    %v3212 = vsel %vm3210, %v3211, %v3209
    %v3213 = vclz %v3212
    %v3214 = vsub.s32 %v3213, 2
    %vm3215 = vcmp.gt.s32.totalorder 0, %v3214
    %v3216 = vsel %vm3215, 0, %v3214
    %v3217 = vsub.s32 32, %v3216
    %v3218 = vshll.u32 %v3209, %v3216
    %v3219 = vshrl.u32 %v3201, %v3217
    %v3220 = vor.u32 %v3218, %v3219
    %v3221 = vsub.s32 4294967266, %v3216
    %v3222 = vadd.s32 %v3221, 127
    %v3223 = vshll.u32 %v3222, 23
    %v3224 = vor.u32 4788187, %v3223
    %v3225 = vand.u32 2147483647, %v3224
    %v3227 = vcvt.s32.f32 %v3220
    %v3228 = vmul.f32 %v3227, %v3225
    %v3229 = vxor.u32 %v3228, 2147483648
    %v3230 = vsel %vm3109, %v3229, %v3228
    %v3231 = vsub.s32 4, %v3207
    %v3232 = vsel %vm3109, %v3231, %v3207
    %v3233 = vsel %vm3108, %v2324, %v3230
    %v3234 = vsel %vm3108, 0, %v3232
    %v3235 = vmul.f32 %v3233, %v3233
    %v3236 = vmul.f32 %v3235, -0.001358992
    %v3237 = vadd.f32 %v3236, 0.041655596
    %v3238 = vmul.f32 %v3235, %v3237
    %v3239 = vadd.f32 %v3238, -0.4999988
    %v3240 = vmul.f32 %v3235, %v3239
    %v3241 = vadd.f32 1.0, %v3240
    %v3242 = vmul.f32 %v3233, %v3233
    %v3243 = vmul.f32 %v3242, -0.00019511016
    %v3244 = vadd.f32 %v3243, 0.008332121
    %v3245 = vmul.f32 %v3242, %v3244
    %v3246 = vadd.f32 %v3245, -0.16666654
    %v3247 = vmul.f32 %v3242, %v3246
    %v3248 = vadd.f32 %v3247, 1.0
    %v3249 = vmul.f32 %v3248, %v3233
    %vm3250 = vweird.f32 %v2324
    %v3251 = vadd.s32 %v3234, 3
    %v3252 = vand.u32 %v3251, 3
    %vm3253 = vcmp.lt.s32.totalorder %v3252, 2
    %vm3254 = vcmp.eq.s32.totalorder %v3252, 0
    %v3255 = vxor.u32 %v3249, 2147483648
    %v3256 = vsel %vm3254, %v3241, %v3255
    %vm3257 = vcmp.eq.s32.totalorder %v3252, 2
    %v3258 = vxor.u32 %v3241, 2147483648
    %v3259 = vsel %vm3257, %v3258, %v3249
    %v3260 = vsel %vm3253, %v3256, %v3259
    %v3261 = vsel %vm3250, nan, %v3260
    %v3262 = vand.u32 2147483647, %v2269
    %vm3263 = vcmp.le.f32.partialorder %v3262, 0.7853982
    %vm3264 = vcmp.lt.s32.totalorder %v2269, 0
    %v3265 = vand.u32 %v2269, 2139095040
    %v3266 = vshrl.u32 %v3265, 23
    %v3267 = vsub.s32 %v3266, 127
    %v3268 = vand.u32 2147483647, %v2269
    %v3269 = vand.u32 %v3268, 8388607
    %v3270 = vor.u32 %v3269, 8388608
    %v3271 = vsub.s32 0, %v3270
    %v3272 = vadd.s32 %v3267, 1
    %vm3273 = vcmp.gt.s32.totalorder %v3272, 0
    %v3274 = vsel %vm3273, %v3272, 0
    %v3275 = vshrl.u32 %v3274, 5
    %v3276 = vand.u32 %v3274, 31
    %v3277 = vsub.s32 32, %v3276
    %v3278 = vshrl.u32 683565275, %v3277
    %v3279 = vshll.u32 683565275, %v3276
    %v3280 = vshrl.u32 2475754826, %v3277
    %v3281 = vor.u32 %v3279, %v3280
    %v3282 = vshll.u32 2475754826, %v3276
    %v3283 = vshrl.u32 2131351028, %v3277
    %v3284 = vor.u32 %v3282, %v3283
    %v3285 = vshll.u32 2131351028, %v3276
    %v3286 = vshrl.u32 2102212464, %v3277
    %v3287 = vor.u32 %v3285, %v3286
    %v3288 = vshll.u32 2102212464, %v3276
    %v3289 = vshrl.u32 920167782, %v3277
    %v3290 = vor.u32 %v3288, %v3289
    %v3291 = vshll.u32 920167782, %v3276
    %v3292 = vshrl.u32 1326507024, %v3277
    %v3293 = vor.u32 %v3291, %v3292
    %vm3294 = vcmp.lt.s32.totalorder %v3275, 1
    %vm3295 = vcmp.lt.s32.totalorder %v3275, 2
    %vm3296 = vcmp.lt.s32.totalorder %v3275, 3
    %vm3297 = vcmp.lt.s32.totalorder %v3275, 4
    %v3298 = vsel %vm3294, %v3278, %v3281
    %v3299 = vsel %vm3297, %v3287, 2102212464
    %v3300 = vsel %vm3296, %v3284, %v3299
    %v3301 = vsel %vm3295, %v3298, %v3300
    %v3302 = vsel %vm3294, %v3281, %v3284
    %v3303 = vsel %vm3297, %v3290, 920167782
    %v3304 = vsel %vm3296, %v3287, %v3303
    %v3305 = vsel %vm3295, %v3302, %v3304
    %v3306 = vsel %vm3294, %v3284, %v3287
    %v3307 = vsel %vm3297, %v3293, 1326507024
    %v3308 = vsel %vm3296, %v3290, %v3307
    %v3309 = vsel %vm3295, %v3306, %v3308
    %v3310 = vshll.u32 %v3270, 8
    %v3311 = vand.u32 %v3310, 65535
    %v3312 = vshrl.u32 %v3310, 16
    %v3313 = vand.u32 %v3309, 65535
    %v3314 = vshrl.u32 %v3309, 16
    %v3315 = vmul.u32 %v3311, %v3313
    %v3316 = vmul.u32 %v3311, %v3314
    %v3317 = vmul.u32 %v3312, %v3313
    %v3318 = vmul.u32 %v3312, %v3314
    %v3319 = vshll.u32 %v3316, 16
    %v3320 = vshrl.u32 %v3316, 16
    %v3321 = vshll.u32 %v3317, 16
    %v3322 = vshrl.u32 %v3317, 16
    %vm3323 = vc.u32 %v3315, %v3319
    %v3324 = vsel %vm3323, 1, 0
    %v3325 = vadd.s32 %v3315, %v3319
    %v3326 = vadd.s32 %v3318, %v3324
    %vm3327 = vc.u32 %v3325, %v3321
    %v3328 = vsel %vm3327, 1, 0
    %v3329 = vadd.s32 %v3325, %v3321
    %v3330 = vadd.s32 %v3326, %v3328
    %v3331 = vadd.s32 %v3330, %v3320
    %v3332 = vadd.s32 %v3331, %v3322
    %v3333 = vand.u32 %v3310, 65535
    %v3334 = vshrl.u32 %v3310, 16
    %v3335 = vand.u32 %v3305, 65535
    %v3336 = vshrl.u32 %v3305, 16
    %v3337 = vmul.u32 %v3333, %v3335
    %v3338 = vmul.u32 %v3333, %v3336
    %v3339 = vmul.u32 %v3334, %v3335
    %v3340 = vmul.u32 %v3334, %v3336
    %v3341 = vshll.u32 %v3338, 16
    %v3342 = vshrl.u32 %v3338, 16
    %v3343 = vshll.u32 %v3339, 16
    %v3344 = vshrl.u32 %v3339, 16
    %vm3345 = vc.u32 %v3337, %v3341
    %v3346 = vsel %vm3345, 1, 0
    %v3347 = vadd.s32 %v3337, %v3341
    %v3348 = vadd.s32 %v3340, %v3346
    %vm3349 = vc.u32 %v3347, %v3343
    %v3350 = vsel %vm3349, 1, 0
    %v3351 = vadd.s32 %v3347, %v3343
    %v3352 = vadd.s32 %v3348, %v3350
    %v3353 = vadd.s32 %v3352, %v3342
    %v3354 = vadd.s32 %v3353, %v3344
    %v3355 = vmul.u32 %v3310, %v3301
    %v3356 = vadd.s32 %v3332, %v3351
    %vm3357 = vc.u32 %v3332, %v3351
    %v3358 = vadd.s32 %v3354, 1
    %v3359 = vsel %vm3357, %v3358, %v3354
    %v3360 = vadd.s32 %v3355, %v3359
    %v3361 = vadd.s32 %v3360, 536870912
    %v3362 = vshrl.u32 %v3361, 30
    %v3363 = vshll.u32 %v3362, 30
    %v3364 = vsub.s32 %v3360, %v3363
    %vm3365 = vcmp.lt.s32.totalorder %v3364, 0
    %v3366 = vsub.s32 0, %v3364
    %v3367 = vsel %vm3365, %v3366, %v3364
    %v3368 = vclz %v3367
    %v3369 = vsub.s32 %v3368, 2
    %vm3370 = vcmp.gt.s32.totalorder 0, %v3369
    %v3371 = vsel %vm3370, 0, %v3369
    %v3372 = vsub.s32 32, %v3371
    %v3373 = vshll.u32 %v3364, %v3371
    %v3374 = vshrl.u32 %v3356, %v3372
    %v3375 = vor.u32 %v3373, %v3374
    %v3376 = vsub.s32 4294967266, %v3371
    %v3377 = vadd.s32 %v3376, 127
    %v3378 = vshll.u32 %v3377, 23
    %v3379 = vor.u32 4788187, %v3378
    %v3380 = vand.u32 2147483647, %v3379
    %v3382 = vcvt.s32.f32 %v3375
    %v3383 = vmul.f32 %v3382, %v3380
    %v3384 = vxor.u32 %v3383, 2147483648
    %v3385 = vsel %vm3264, %v3384, %v3383
    %v3386 = vsub.s32 4, %v3362
    %v3387 = vsel %vm3264, %v3386, %v3362
    %v3388 = vsel %vm3263, %v2269, %v3385
    %v3389 = vsel %vm3263, 0, %v3387
    %v3390 = vmul.f32 %v3388, %v3388
    %v3391 = vmul.f32 %v3390, -0.001358992
    %v3392 = vadd.f32 %v3391, 0.041655596
    %v3393 = vmul.f32 %v3390, %v3392
    %v3394 = vadd.f32 %v3393, -0.4999988
    %v3395 = vmul.f32 %v3390, %v3394
    %v3396 = vadd.f32 1.0, %v3395
    %v3397 = vmul.f32 %v3388, %v3388
    %v3398 = vmul.f32 %v3397, -0.00019511016
    %v3399 = vadd.f32 %v3398, 0.008332121
    %v3400 = vmul.f32 %v3397, %v3399
    %v3401 = vadd.f32 %v3400, -0.16666654
    %v3402 = vmul.f32 %v3397, %v3401
    %v3403 = vadd.f32 %v3402, 1.0
    %v3404 = vmul.f32 %v3403, %v3388
    %vm3405 = vweird.f32 %v2269
    %v3406 = vadd.s32 %v3389, 3
    %v3407 = vand.u32 %v3406, 3
    %vm3408 = vcmp.lt.s32.totalorder %v3407, 2
    %vm3409 = vcmp.eq.s32.totalorder %v3407, 0
    %v3410 = vxor.u32 %v3404, 2147483648
    %v3411 = vsel %vm3409, %v3396, %v3410
    %vm3412 = vcmp.eq.s32.totalorder %v3407, 2
    %v3413 = vxor.u32 %v3396, 2147483648
    %v3414 = vsel %vm3412, %v3413, %v3404
    %v3415 = vsel %vm3408, %v3411, %v3414
    %v3416 = vsel %vm3405, nan, %v3415
    %v3417 = vand.u32 2147483647, %v2298
    %vm3418 = vcmp.le.f32.partialorder %v3417, 0.7853982
    %vm3419 = vcmp.lt.s32.totalorder %v2298, 0
    %v3420 = vand.u32 %v2298, 2139095040
    %v3421 = vshrl.u32 %v3420, 23
    %v3422 = vsub.s32 %v3421, 127
    %v3423 = vand.u32 2147483647, %v2298
    %v3424 = vand.u32 %v3423, 8388607
    %v3425 = vor.u32 %v3424, 8388608
    %v3426 = vsub.s32 0, %v3425
    %v3427 = vadd.s32 %v3422, 1
    %vm3428 = vcmp.gt.s32.totalorder %v3427, 0
    %v3429 = vsel %vm3428, %v3427, 0
    %v3430 = vshrl.u32 %v3429, 5
    %v3431 = vand.u32 %v3429, 31
    %v3432 = vsub.s32 32, %v3431
    %v3433 = vshrl.u32 683565275, %v3432
    %v3434 = vshll.u32 683565275, %v3431
    %v3435 = vshrl.u32 2475754826, %v3432
    %v3436 = vor.u32 %v3434, %v3435
    %v3437 = vshll.u32 2475754826, %v3431
    %v3438 = vshrl.u32 2131351028, %v3432
    %v3439 = vor.u32 %v3437, %v3438
    %v3440 = vshll.u32 2131351028, %v3431
    %v3441 = vshrl.u32 2102212464, %v3432
    %v3442 = vor.u32 %v3440, %v3441
    %v3443 = vshll.u32 2102212464, %v3431
    %v3444 = vshrl.u32 920167782, %v3432
    %v3445 = vor.u32 %v3443, %v3444
    %v3446 = vshll.u32 920167782, %v3431
    %v3447 = vshrl.u32 1326507024, %v3432
    %v3448 = vor.u32 %v3446, %v3447
    %vm3449 = vcmp.lt.s32.totalorder %v3430, 1
    %vm3450 = vcmp.lt.s32.totalorder %v3430, 2
    %vm3451 = vcmp.lt.s32.totalorder %v3430, 3
    %vm3452 = vcmp.lt.s32.totalorder %v3430, 4
    %v3453 = vsel %vm3449, %v3433, %v3436
    %v3454 = vsel %vm3452, %v3442, 2102212464
    %v3455 = vsel %vm3451, %v3439, %v3454
    %v3456 = vsel %vm3450, %v3453, %v3455
    %v3457 = vsel %vm3449, %v3436, %v3439
    %v3458 = vsel %vm3452, %v3445, 920167782
    %v3459 = vsel %vm3451, %v3442, %v3458
    %v3460 = vsel %vm3450, %v3457, %v3459
    %v3461 = vsel %vm3449, %v3439, %v3442
    %v3462 = vsel %vm3452, %v3448, 1326507024
    %v3463 = vsel %vm3451, %v3445, %v3462
    %v3464 = vsel %vm3450, %v3461, %v3463
    %v3465 = vshll.u32 %v3425, 8
    %v3466 = vand.u32 %v3465, 65535
    %v3467 = vshrl.u32 %v3465, 16
    %v3468 = vand.u32 %v3464, 65535
    %v3469 = vshrl.u32 %v3464, 16
    %v3470 = vmul.u32 %v3466, %v3468
    %v3471 = vmul.u32 %v3466, %v3469
    %v3472 = vmul.u32 %v3467, %v3468
    %v3473 = vmul.u32 %v3467, %v3469
    %v3474 = vshll.u32 %v3471, 16
    %v3475 = vshrl.u32 %v3471, 16
    %v3476 = vshll.u32 %v3472, 16
    %v3477 = vshrl.u32 %v3472, 16
    %vm3478 = vc.u32 %v3470, %v3474
    %v3479 = vsel %vm3478, 1, 0
    %v3480 = vadd.s32 %v3470, %v3474
    %v3481 = vadd.s32 %v3473, %v3479
    %vm3482 = vc.u32 %v3480, %v3476
    %v3483 = vsel %vm3482, 1, 0
    %v3484 = vadd.s32 %v3480, %v3476
    %v3485 = vadd.s32 %v3481, %v3483
    %v3486 = vadd.s32 %v3485, %v3475
    %v3487 = vadd.s32 %v3486, %v3477
    %v3488 = vand.u32 %v3465, 65535
    %v3489 = vshrl.u32 %v3465, 16
    %v3490 = vand.u32 %v3460, 65535
    %v3491 = vshrl.u32 %v3460, 16
    %v3492 = vmul.u32 %v3488, %v3490
    %v3493 = vmul.u32 %v3488, %v3491
    %v3494 = vmul.u32 %v3489, %v3490
    %v3495 = vmul.u32 %v3489, %v3491
    %v3496 = vshll.u32 %v3493, 16
    %v3497 = vshrl.u32 %v3493, 16
    %v3498 = vshll.u32 %v3494, 16
    %v3499 = vshrl.u32 %v3494, 16
    %vm3500 = vc.u32 %v3492, %v3496
    %v3501 = vsel %vm3500, 1, 0
    %v3502 = vadd.s32 %v3492, %v3496
    %v3503 = vadd.s32 %v3495, %v3501
    %vm3504 = vc.u32 %v3502, %v3498
    %v3505 = vsel %vm3504, 1, 0
    %v3506 = vadd.s32 %v3502, %v3498
    %v3507 = vadd.s32 %v3503, %v3505
    %v3508 = vadd.s32 %v3507, %v3497
    %v3509 = vadd.s32 %v3508, %v3499
    %v3510 = vmul.u32 %v3465, %v3456
    %v3511 = vadd.s32 %v3487, %v3506
    %vm3512 = vc.u32 %v3487, %v3506
    %v3513 = vadd.s32 %v3509, 1
    %v3514 = vsel %vm3512, %v3513, %v3509
    %v3515 = vadd.s32 %v3510, %v3514
    %v3516 = vadd.s32 %v3515, 536870912
    %v3517 = vshrl.u32 %v3516, 30
    %v3518 = vshll.u32 %v3517, 30
    %v3519 = vsub.s32 %v3515, %v3518
    %vm3520 = vcmp.lt.s32.totalorder %v3519, 0
    %v3521 = vsub.s32 0, %v3519
    %v3522 = vsel %vm3520, %v3521, %v3519
    %v3523 = vclz %v3522
    %v3524 = vsub.s32 %v3523, 2
    %vm3525 = vcmp.gt.s32.totalorder 0, %v3524
    %v3526 = vsel %vm3525, 0, %v3524
    %v3527 = vsub.s32 32, %v3526
    %v3528 = vshll.u32 %v3519, %v3526
    %v3529 = vshrl.u32 %v3511, %v3527
    %v3530 = vor.u32 %v3528, %v3529
    %v3531 = vsub.s32 4294967266, %v3526
    %v3532 = vadd.s32 %v3531, 127
    %v3533 = vshll.u32 %v3532, 23
    %v3534 = vor.u32 4788187, %v3533
    %v3535 = vand.u32 2147483647, %v3534
    %v3537 = vcvt.s32.f32 %v3530
    %v3538 = vmul.f32 %v3537, %v3535
    %v3539 = vxor.u32 %v3538, 2147483648
    %v3540 = vsel %vm3419, %v3539, %v3538
    %v3541 = vsub.s32 4, %v3517
    %v3542 = vsel %vm3419, %v3541, %v3517
    %v3543 = vsel %vm3418, %v2298, %v3540
    %v3544 = vsel %vm3418, 0, %v3542
    %v3545 = vmul.f32 %v3543, %v3543
    %v3546 = vmul.f32 %v3545, -0.001358992
    %v3547 = vadd.f32 %v3546, 0.041655596
    %v3548 = vmul.f32 %v3545, %v3547
    %v3549 = vadd.f32 %v3548, -0.4999988
    %v3550 = vmul.f32 %v3545, %v3549
    %v3551 = vadd.f32 1.0, %v3550
    %v3552 = vmul.f32 %v3543, %v3543
    %v3553 = vmul.f32 %v3552, -0.00019511016
    %v3554 = vadd.f32 %v3553, 0.008332121
    %v3555 = vmul.f32 %v3552, %v3554
    %v3556 = vadd.f32 %v3555, -0.16666654
    %v3557 = vmul.f32 %v3552, %v3556
    %v3558 = vadd.f32 %v3557, 1.0
    %v3559 = vmul.f32 %v3558, %v3543
    %vm3560 = vweird.f32 %v2298
    %v3561 = vadd.s32 %v3544, 3
    %v3562 = vand.u32 %v3561, 3
    %vm3563 = vcmp.lt.s32.totalorder %v3562, 2
    %vm3564 = vcmp.eq.s32.totalorder %v3562, 0
    %v3565 = vxor.u32 %v3559, 2147483648
    %v3566 = vsel %vm3564, %v3551, %v3565
    %vm3567 = vcmp.eq.s32.totalorder %v3562, 2
    %v3568 = vxor.u32 %v3551, 2147483648
    %v3569 = vsel %vm3567, %v3568, %v3559
    %v3570 = vsel %vm3563, %v3566, %v3569
    %v3571 = vsel %vm3560, nan, %v3570
    %v3572 = vand.u32 2147483647, %v2327
    %vm3573 = vcmp.le.f32.partialorder %v3572, 0.7853982
    %vm3574 = vcmp.lt.s32.totalorder %v2327, 0
    %v3575 = vand.u32 %v2327, 2139095040
    %v3576 = vshrl.u32 %v3575, 23
    %v3577 = vsub.s32 %v3576, 127
    %v3578 = vand.u32 2147483647, %v2327
    %v3579 = vand.u32 %v3578, 8388607
    %v3580 = vor.u32 %v3579, 8388608
    %v3581 = vsub.s32 0, %v3580
    %v3582 = vadd.s32 %v3577, 1
    %vm3583 = vcmp.gt.s32.totalorder %v3582, 0
    %v3584 = vsel %vm3583, %v3582, 0
    %v3585 = vshrl.u32 %v3584, 5
    %v3586 = vand.u32 %v3584, 31
    %v3587 = vsub.s32 32, %v3586
    %v3588 = vshrl.u32 683565275, %v3587
    %v3589 = vshll.u32 683565275, %v3586
    %v3590 = vshrl.u32 2475754826, %v3587
    %v3591 = vor.u32 %v3589, %v3590
    %v3592 = vshll.u32 2475754826, %v3586
    %v3593 = vshrl.u32 2131351028, %v3587
    %v3594 = vor.u32 %v3592, %v3593
    %v3595 = vshll.u32 2131351028, %v3586
    %v3596 = vshrl.u32 2102212464, %v3587
    %v3597 = vor.u32 %v3595, %v3596
    %v3598 = vshll.u32 2102212464, %v3586
    %v3599 = vshrl.u32 920167782, %v3587
    %v3600 = vor.u32 %v3598, %v3599
    %v3601 = vshll.u32 920167782, %v3586
    %v3602 = vshrl.u32 1326507024, %v3587
    %v3603 = vor.u32 %v3601, %v3602
    %vm3604 = vcmp.lt.s32.totalorder %v3585, 1
    %vm3605 = vcmp.lt.s32.totalorder %v3585, 2
    %vm3606 = vcmp.lt.s32.totalorder %v3585, 3
    %vm3607 = vcmp.lt.s32.totalorder %v3585, 4
    %v3608 = vsel %vm3604, %v3588, %v3591
    %v3609 = vsel %vm3607, %v3597, 2102212464
    %v3610 = vsel %vm3606, %v3594, %v3609
    %v3611 = vsel %vm3605, %v3608, %v3610
    %v3612 = vsel %vm3604, %v3591, %v3594
    %v3613 = vsel %vm3607, %v3600, 920167782
    %v3614 = vsel %vm3606, %v3597, %v3613
    %v3615 = vsel %vm3605, %v3612, %v3614
    %v3616 = vsel %vm3604, %v3594, %v3597
    %v3617 = vsel %vm3607, %v3603, 1326507024
    %v3618 = vsel %vm3606, %v3600, %v3617
    %v3619 = vsel %vm3605, %v3616, %v3618
    %v3620 = vshll.u32 %v3580, 8
    %v3621 = vand.u32 %v3620, 65535
    %v3622 = vshrl.u32 %v3620, 16
    %v3623 = vand.u32 %v3619, 65535
    %v3624 = vshrl.u32 %v3619, 16
    %v3625 = vmul.u32 %v3621, %v3623
    %v3626 = vmul.u32 %v3621, %v3624
    %v3627 = vmul.u32 %v3622, %v3623
    %v3628 = vmul.u32 %v3622, %v3624
    %v3629 = vshll.u32 %v3626, 16
    %v3630 = vshrl.u32 %v3626, 16
    %v3631 = vshll.u32 %v3627, 16
    %v3632 = vshrl.u32 %v3627, 16
    %vm3633 = vc.u32 %v3625, %v3629
    %v3634 = vsel %vm3633, 1, 0
    %v3635 = vadd.s32 %v3625, %v3629
    %v3636 = vadd.s32 %v3628, %v3634
    %vm3637 = vc.u32 %v3635, %v3631
    %v3638 = vsel %vm3637, 1, 0
    %v3639 = vadd.s32 %v3635, %v3631
    %v3640 = vadd.s32 %v3636, %v3638
    %v3641 = vadd.s32 %v3640, %v3630
    %v3642 = vadd.s32 %v3641, %v3632
    %v3643 = vand.u32 %v3620, 65535
    %v3644 = vshrl.u32 %v3620, 16
    %v3645 = vand.u32 %v3615, 65535
    %v3646 = vshrl.u32 %v3615, 16
    %v3647 = vmul.u32 %v3643, %v3645
    %v3648 = vmul.u32 %v3643, %v3646
    %v3649 = vmul.u32 %v3644, %v3645
    %v3650 = vmul.u32 %v3644, %v3646
    %v3651 = vshll.u32 %v3648, 16
    %v3652 = vshrl.u32 %v3648, 16
    %v3653 = vshll.u32 %v3649, 16
    %v3654 = vshrl.u32 %v3649, 16
    %vm3655 = vc.u32 %v3647, %v3651
    %v3656 = vsel %vm3655, 1, 0
    %v3657 = vadd.s32 %v3647, %v3651
    %v3658 = vadd.s32 %v3650, %v3656
    %vm3659 = vc.u32 %v3657, %v3653
    %v3660 = vsel %vm3659, 1, 0
    %v3661 = vadd.s32 %v3657, %v3653
    %v3662 = vadd.s32 %v3658, %v3660
    %v3663 = vadd.s32 %v3662, %v3652
    %v3664 = vadd.s32 %v3663, %v3654
    %v3665 = vmul.u32 %v3620, %v3611
    %v3666 = vadd.s32 %v3642, %v3661
    %vm3667 = vc.u32 %v3642, %v3661
    %v3668 = vadd.s32 %v3664, 1
    %v3669 = vsel %vm3667, %v3668, %v3664
    %v3670 = vadd.s32 %v3665, %v3669
    %v3671 = vadd.s32 %v3670, 536870912
    %v3672 = vshrl.u32 %v3671, 30
    %v3673 = vshll.u32 %v3672, 30
    %v3674 = vsub.s32 %v3670, %v3673
    %vm3675 = vcmp.lt.s32.totalorder %v3674, 0
    %v3676 = vsub.s32 0, %v3674
    %v3677 = vsel %vm3675, %v3676, %v3674
    %v3678 = vclz %v3677
    %v3679 = vsub.s32 %v3678, 2
    %vm3680 = vcmp.gt.s32.totalorder 0, %v3679
    %v3681 = vsel %vm3680, 0, %v3679
    %v3682 = vsub.s32 32, %v3681
    %v3683 = vshll.u32 %v3674, %v3681
    %v3684 = vshrl.u32 %v3666, %v3682
    %v3685 = vor.u32 %v3683, %v3684
    %v3686 = vsub.s32 4294967266, %v3681
    %v3687 = vadd.s32 %v3686, 127
    %v3688 = vshll.u32 %v3687, 23
    %v3689 = vor.u32 4788187, %v3688
    %v3690 = vand.u32 2147483647, %v3689
    %v3692 = vcvt.s32.f32 %v3685
    %v3693 = vmul.f32 %v3692, %v3690
    %v3694 = vxor.u32 %v3693, 2147483648
    %v3695 = vsel %vm3574, %v3694, %v3693
    %v3696 = vsub.s32 4, %v3672
    %v3697 = vsel %vm3574, %v3696, %v3672
    %v3698 = vsel %vm3573, %v2327, %v3695
    %v3699 = vsel %vm3573, 0, %v3697
    %v3700 = vmul.f32 %v3698, %v3698
    %v3701 = vmul.f32 %v3700, -0.001358992
    %v3702 = vadd.f32 %v3701, 0.041655596
    %v3703 = vmul.f32 %v3700, %v3702
    %v3704 = vadd.f32 %v3703, -0.4999988
    %v3705 = vmul.f32 %v3700, %v3704
    %v3706 = vadd.f32 1.0, %v3705
    %v3707 = vmul.f32 %v3698, %v3698
    %v3708 = vmul.f32 %v3707, -0.00019511016
    %v3709 = vadd.f32 %v3708, 0.008332121
    %v3710 = vmul.f32 %v3707, %v3709
    %v3711 = vadd.f32 %v3710, -0.16666654
    %v3712 = vmul.f32 %v3707, %v3711
    %v3713 = vadd.f32 %v3712, 1.0
    %v3714 = vmul.f32 %v3713, %v3698
    %vm3715 = vweird.f32 %v2327
    %v3716 = vadd.s32 %v3699, 3
    %v3717 = vand.u32 %v3716, 3
    %vm3718 = vcmp.lt.s32.totalorder %v3717, 2
    %vm3719 = vcmp.eq.s32.totalorder %v3717, 0
    %v3720 = vxor.u32 %v3714, 2147483648
    %v3721 = vsel %vm3719, %v3706, %v3720
    %vm3722 = vcmp.eq.s32.totalorder %v3717, 2
    %v3723 = vxor.u32 %v3706, 2147483648
    %v3724 = vsel %vm3722, %v3723, %v3714
    %v3725 = vsel %vm3718, %v3721, %v3724
    %v3726 = vsel %vm3715, nan, %v3725
    %v3727 = vand.u32 2147483647, %v2272
    %vm3728 = vcmp.le.f32.partialorder %v3727, 0.7853982
    %vm3729 = vcmp.lt.s32.totalorder %v2272, 0
    %v3730 = vand.u32 %v2272, 2139095040
    %v3731 = vshrl.u32 %v3730, 23
    %v3732 = vsub.s32 %v3731, 127
    %v3733 = vand.u32 2147483647, %v2272
    %v3734 = vand.u32 %v3733, 8388607
    %v3735 = vor.u32 %v3734, 8388608
    %v3736 = vsub.s32 0, %v3735
    %v3737 = vadd.s32 %v3732, 1
    %vm3738 = vcmp.gt.s32.totalorder %v3737, 0
    %v3739 = vsel %vm3738, %v3737, 0
    %v3740 = vshrl.u32 %v3739, 5
    %v3741 = vand.u32 %v3739, 31
    %v3742 = vsub.s32 32, %v3741
    %v3743 = vshrl.u32 683565275, %v3742
    %v3744 = vshll.u32 683565275, %v3741
    %v3745 = vshrl.u32 2475754826, %v3742
    %v3746 = vor.u32 %v3744, %v3745
    %v3747 = vshll.u32 2475754826, %v3741
    %v3748 = vshrl.u32 2131351028, %v3742
    %v3749 = vor.u32 %v3747, %v3748
    %v3750 = vshll.u32 2131351028, %v3741
    %v3751 = vshrl.u32 2102212464, %v3742
    %v3752 = vor.u32 %v3750, %v3751
    %v3753 = vshll.u32 2102212464, %v3741
    %v3754 = vshrl.u32 920167782, %v3742
    %v3755 = vor.u32 %v3753, %v3754
    %v3756 = vshll.u32 920167782, %v3741
    %v3757 = vshrl.u32 1326507024, %v3742
    %v3758 = vor.u32 %v3756, %v3757
    %vm3759 = vcmp.lt.s32.totalorder %v3740, 1
    %vm3760 = vcmp.lt.s32.totalorder %v3740, 2
    %vm3761 = vcmp.lt.s32.totalorder %v3740, 3
    %vm3762 = vcmp.lt.s32.totalorder %v3740, 4
    %v3763 = vsel %vm3759, %v3743, %v3746
    %v3764 = vsel %vm3762, %v3752, 2102212464
    %v3765 = vsel %vm3761, %v3749, %v3764
    %v3766 = vsel %vm3760, %v3763, %v3765
    %v3767 = vsel %vm3759, %v3746, %v3749
    %v3768 = vsel %vm3762, %v3755, 920167782
    %v3769 = vsel %vm3761, %v3752, %v3768
    %v3770 = vsel %vm3760, %v3767, %v3769
    %v3771 = vsel %vm3759, %v3749, %v3752
    %v3772 = vsel %vm3762, %v3758, 1326507024
    %v3773 = vsel %vm3761, %v3755, %v3772
    %v3774 = vsel %vm3760, %v3771, %v3773
    %v3775 = vshll.u32 %v3735, 8
    %v3776 = vand.u32 %v3775, 65535
    %v3777 = vshrl.u32 %v3775, 16
    %v3778 = vand.u32 %v3774, 65535
    %v3779 = vshrl.u32 %v3774, 16
    %v3780 = vmul.u32 %v3776, %v3778
    %v3781 = vmul.u32 %v3776, %v3779
    %v3782 = vmul.u32 %v3777, %v3778
    %v3783 = vmul.u32 %v3777, %v3779
    %v3784 = vshll.u32 %v3781, 16
    %v3785 = vshrl.u32 %v3781, 16
    %v3786 = vshll.u32 %v3782, 16
    %v3787 = vshrl.u32 %v3782, 16
    %vm3788 = vc.u32 %v3780, %v3784
    %v3789 = vsel %vm3788, 1, 0
    %v3790 = vadd.s32 %v3780, %v3784
    %v3791 = vadd.s32 %v3783, %v3789
    %vm3792 = vc.u32 %v3790, %v3786
    %v3793 = vsel %vm3792, 1, 0
    %v3794 = vadd.s32 %v3790, %v3786
    %v3795 = vadd.s32 %v3791, %v3793
    %v3796 = vadd.s32 %v3795, %v3785
    %v3797 = vadd.s32 %v3796, %v3787
    %v3798 = vand.u32 %v3775, 65535
    %v3799 = vshrl.u32 %v3775, 16
    %v3800 = vand.u32 %v3770, 65535
    %v3801 = vshrl.u32 %v3770, 16
    %v3802 = vmul.u32 %v3798, %v3800
    %v3803 = vmul.u32 %v3798, %v3801
    %v3804 = vmul.u32 %v3799, %v3800
    %v3805 = vmul.u32 %v3799, %v3801
    %v3806 = vshll.u32 %v3803, 16
    %v3807 = vshrl.u32 %v3803, 16
    %v3808 = vshll.u32 %v3804, 16
    %v3809 = vshrl.u32 %v3804, 16
    %vm3810 = vc.u32 %v3802, %v3806
    %v3811 = vsel %vm3810, 1, 0
    %v3812 = vadd.s32 %v3802, %v3806
    %v3813 = vadd.s32 %v3805, %v3811
    %vm3814 = vc.u32 %v3812, %v3808
    %v3815 = vsel %vm3814, 1, 0
    %v3816 = vadd.s32 %v3812, %v3808
    %v3817 = vadd.s32 %v3813, %v3815
    %v3818 = vadd.s32 %v3817, %v3807
    %v3819 = vadd.s32 %v3818, %v3809
    %v3820 = vmul.u32 %v3775, %v3766
    %v3821 = vadd.s32 %v3797, %v3816
    %vm3822 = vc.u32 %v3797, %v3816
    %v3823 = vadd.s32 %v3819, 1
    %v3824 = vsel %vm3822, %v3823, %v3819
    %v3825 = vadd.s32 %v3820, %v3824
    %v3826 = vadd.s32 %v3825, 536870912
    %v3827 = vshrl.u32 %v3826, 30
    %v3828 = vshll.u32 %v3827, 30
    %v3829 = vsub.s32 %v3825, %v3828
    %vm3830 = vcmp.lt.s32.totalorder %v3829, 0
    %v3831 = vsub.s32 0, %v3829
    %v3832 = vsel %vm3830, %v3831, %v3829
    %v3833 = vclz %v3832
    %v3834 = vsub.s32 %v3833, 2
    %vm3835 = vcmp.gt.s32.totalorder 0, %v3834
    %v3836 = vsel %vm3835, 0, %v3834
    %v3837 = vsub.s32 32, %v3836
    %v3838 = vshll.u32 %v3829, %v3836
    %v3839 = vshrl.u32 %v3821, %v3837
    %v3840 = vor.u32 %v3838, %v3839
    %v3841 = vsub.s32 4294967266, %v3836
    %v3842 = vadd.s32 %v3841, 127
    %v3843 = vshll.u32 %v3842, 23
    %v3844 = vor.u32 4788187, %v3843
    %v3845 = vand.u32 2147483647, %v3844
    %v3847 = vcvt.s32.f32 %v3840
    %v3848 = vmul.f32 %v3847, %v3845
    %v3849 = vxor.u32 %v3848, 2147483648
    %v3850 = vsel %vm3729, %v3849, %v3848
    %v3851 = vsub.s32 4, %v3827
    %v3852 = vsel %vm3729, %v3851, %v3827
    %v3853 = vsel %vm3728, %v2272, %v3850
    %v3854 = vsel %vm3728, 0, %v3852
    %v3855 = vmul.f32 %v3853, %v3853
    %v3856 = vmul.f32 %v3855, -0.001358992
    %v3857 = vadd.f32 %v3856, 0.041655596
    %v3858 = vmul.f32 %v3855, %v3857
    %v3859 = vadd.f32 %v3858, -0.4999988
    %v3860 = vmul.f32 %v3855, %v3859
    %v3861 = vadd.f32 1.0, %v3860
    %v3862 = vmul.f32 %v3853, %v3853
    %v3863 = vmul.f32 %v3862, -0.00019511016
    %v3864 = vadd.f32 %v3863, 0.008332121
    %v3865 = vmul.f32 %v3862, %v3864
    %v3866 = vadd.f32 %v3865, -0.16666654
    %v3867 = vmul.f32 %v3862, %v3866
    %v3868 = vadd.f32 %v3867, 1.0
    %v3869 = vmul.f32 %v3868, %v3853
    %vm3870 = vweird.f32 %v2272
    %v3871 = vadd.s32 %v3854, 3
    %v3872 = vand.u32 %v3871, 3
    %vm3873 = vcmp.lt.s32.totalorder %v3872, 2
    %vm3874 = vcmp.eq.s32.totalorder %v3872, 0
    %v3875 = vxor.u32 %v3869, 2147483648
    %v3876 = vsel %vm3874, %v3861, %v3875
    %vm3877 = vcmp.eq.s32.totalorder %v3872, 2
    %v3878 = vxor.u32 %v3861, 2147483648
    %v3879 = vsel %vm3877, %v3878, %v3869
    %v3880 = vsel %vm3873, %v3876, %v3879
    %v3881 = vsel %vm3870, nan, %v3880
    %v3882 = vand.u32 2147483647, %v2301
    %vm3883 = vcmp.le.f32.partialorder %v3882, 0.7853982
    %vm3884 = vcmp.lt.s32.totalorder %v2301, 0
    %v3885 = vand.u32 %v2301, 2139095040
    %v3886 = vshrl.u32 %v3885, 23
    %v3887 = vsub.s32 %v3886, 127
    %v3888 = vand.u32 2147483647, %v2301
    %v3889 = vand.u32 %v3888, 8388607
    %v3890 = vor.u32 %v3889, 8388608
    %v3891 = vsub.s32 0, %v3890
    %v3892 = vadd.s32 %v3887, 1
    %vm3893 = vcmp.gt.s32.totalorder %v3892, 0
    %v3894 = vsel %vm3893, %v3892, 0
    %v3895 = vshrl.u32 %v3894, 5
    %v3896 = vand.u32 %v3894, 31
    %v3897 = vsub.s32 32, %v3896
    %v3898 = vshrl.u32 683565275, %v3897
    %v3899 = vshll.u32 683565275, %v3896
    %v3900 = vshrl.u32 2475754826, %v3897
    %v3901 = vor.u32 %v3899, %v3900
    %v3902 = vshll.u32 2475754826, %v3896
    %v3903 = vshrl.u32 2131351028, %v3897
    %v3904 = vor.u32 %v3902, %v3903
    %v3905 = vshll.u32 2131351028, %v3896
    %v3906 = vshrl.u32 2102212464, %v3897
    %v3907 = vor.u32 %v3905, %v3906
    %v3908 = vshll.u32 2102212464, %v3896
    %v3909 = vshrl.u32 920167782, %v3897
    %v3910 = vor.u32 %v3908, %v3909
    %v3911 = vshll.u32 920167782, %v3896
    %v3912 = vshrl.u32 1326507024, %v3897
    %v3913 = vor.u32 %v3911, %v3912
    %vm3914 = vcmp.lt.s32.totalorder %v3895, 1
    %vm3915 = vcmp.lt.s32.totalorder %v3895, 2
    %vm3916 = vcmp.lt.s32.totalorder %v3895, 3
    %vm3917 = vcmp.lt.s32.totalorder %v3895, 4
    %v3918 = vsel %vm3914, %v3898, %v3901
    %v3919 = vsel %vm3917, %v3907, 2102212464
    %v3920 = vsel %vm3916, %v3904, %v3919
    %v3921 = vsel %vm3915, %v3918, %v3920
    %v3922 = vsel %vm3914, %v3901, %v3904
    %v3923 = vsel %vm3917, %v3910, 920167782
    %v3924 = vsel %vm3916, %v3907, %v3923
    %v3925 = vsel %vm3915, %v3922, %v3924
    %v3926 = vsel %vm3914, %v3904, %v3907
    %v3927 = vsel %vm3917, %v3913, 1326507024
    %v3928 = vsel %vm3916, %v3910, %v3927
    %v3929 = vsel %vm3915, %v3926, %v3928
    %v3930 = vshll.u32 %v3890, 8
    %v3931 = vand.u32 %v3930, 65535
    %v3932 = vshrl.u32 %v3930, 16
    %v3933 = vand.u32 %v3929, 65535
    %v3934 = vshrl.u32 %v3929, 16
    %v3935 = vmul.u32 %v3931, %v3933
    %v3936 = vmul.u32 %v3931, %v3934
    %v3937 = vmul.u32 %v3932, %v3933
    %v3938 = vmul.u32 %v3932, %v3934
    %v3939 = vshll.u32 %v3936, 16
    %v3940 = vshrl.u32 %v3936, 16
    %v3941 = vshll.u32 %v3937, 16
    %v3942 = vshrl.u32 %v3937, 16
    %vm3943 = vc.u32 %v3935, %v3939
    %v3944 = vsel %vm3943, 1, 0
    %v3945 = vadd.s32 %v3935, %v3939
    %v3946 = vadd.s32 %v3938, %v3944
    %vm3947 = vc.u32 %v3945, %v3941
    %v3948 = vsel %vm3947, 1, 0
    %v3949 = vadd.s32 %v3945, %v3941
    %v3950 = vadd.s32 %v3946, %v3948
    %v3951 = vadd.s32 %v3950, %v3940
    %v3952 = vadd.s32 %v3951, %v3942
    %v3953 = vand.u32 %v3930, 65535
    %v3954 = vshrl.u32 %v3930, 16
    %v3955 = vand.u32 %v3925, 65535
    %v3956 = vshrl.u32 %v3925, 16
    %v3957 = vmul.u32 %v3953, %v3955
    %v3958 = vmul.u32 %v3953, %v3956
    %v3959 = vmul.u32 %v3954, %v3955
    %v3960 = vmul.u32 %v3954, %v3956
    %v3961 = vshll.u32 %v3958, 16
    %v3962 = vshrl.u32 %v3958, 16
    %v3963 = vshll.u32 %v3959, 16
    %v3964 = vshrl.u32 %v3959, 16
    %vm3965 = vc.u32 %v3957, %v3961
    %v3966 = vsel %vm3965, 1, 0
    %v3967 = vadd.s32 %v3957, %v3961
    %v3968 = vadd.s32 %v3960, %v3966
    %vm3969 = vc.u32 %v3967, %v3963
    %v3970 = vsel %vm3969, 1, 0
    %v3971 = vadd.s32 %v3967, %v3963
    %v3972 = vadd.s32 %v3968, %v3970
    %v3973 = vadd.s32 %v3972, %v3962
    %v3974 = vadd.s32 %v3973, %v3964
    %v3975 = vmul.u32 %v3930, %v3921
    %v3976 = vadd.s32 %v3952, %v3971
    %vm3977 = vc.u32 %v3952, %v3971
    %v3978 = vadd.s32 %v3974, 1
    %v3979 = vsel %vm3977, %v3978, %v3974
    %v3980 = vadd.s32 %v3975, %v3979
    %v3981 = vadd.s32 %v3980, 536870912
    %v3982 = vshrl.u32 %v3981, 30
    %v3983 = vshll.u32 %v3982, 30
    %v3984 = vsub.s32 %v3980, %v3983
    %vm3985 = vcmp.lt.s32.totalorder %v3984, 0
    %v3986 = vsub.s32 0, %v3984
    %v3987 = vsel %vm3985, %v3986, %v3984
    %v3988 = vclz %v3987
    %v3989 = vsub.s32 %v3988, 2
    %vm3990 = vcmp.gt.s32.totalorder 0, %v3989
    %v3991 = vsel %vm3990, 0, %v3989
    %v3992 = vsub.s32 32, %v3991
    %v3993 = vshll.u32 %v3984, %v3991
    %v3994 = vshrl.u32 %v3976, %v3992
    %v3995 = vor.u32 %v3993, %v3994
    %v3996 = vsub.s32 4294967266, %v3991
    %v3997 = vadd.s32 %v3996, 127
    %v3998 = vshll.u32 %v3997, 23
    %v3999 = vor.u32 4788187, %v3998
    %v4000 = vand.u32 2147483647, %v3999
    %v4002 = vcvt.s32.f32 %v3995
    %v4003 = vmul.f32 %v4002, %v4000
    %v4004 = vxor.u32 %v4003, 2147483648
    %v4005 = vsel %vm3884, %v4004, %v4003
    %v4006 = vsub.s32 4, %v3982
    %v4007 = vsel %vm3884, %v4006, %v3982
    %v4008 = vsel %vm3883, %v2301, %v4005
    %v4009 = vsel %vm3883, 0, %v4007
    %v4010 = vmul.f32 %v4008, %v4008
    %v4011 = vmul.f32 %v4010, -0.001358992
    %v4012 = vadd.f32 %v4011, 0.041655596
    %v4013 = vmul.f32 %v4010, %v4012
    %v4014 = vadd.f32 %v4013, -0.4999988
    %v4015 = vmul.f32 %v4010, %v4014
    %v4016 = vadd.f32 1.0, %v4015
    %v4017 = vmul.f32 %v4008, %v4008
    %v4018 = vmul.f32 %v4017, -0.00019511016
    %v4019 = vadd.f32 %v4018, 0.008332121
    %v4020 = vmul.f32 %v4017, %v4019
    %v4021 = vadd.f32 %v4020, -0.16666654
    %v4022 = vmul.f32 %v4017, %v4021
    %v4023 = vadd.f32 %v4022, 1.0
    %v4024 = vmul.f32 %v4023, %v4008
    %vm4025 = vweird.f32 %v2301
    %v4026 = vadd.s32 %v4009, 3
    %v4027 = vand.u32 %v4026, 3
    %vm4028 = vcmp.lt.s32.totalorder %v4027, 2
    %vm4029 = vcmp.eq.s32.totalorder %v4027, 0
    %v4030 = vxor.u32 %v4024, 2147483648
    %v4031 = vsel %vm4029, %v4016, %v4030
    %vm4032 = vcmp.eq.s32.totalorder %v4027, 2
    %v4033 = vxor.u32 %v4016, 2147483648
    %v4034 = vsel %vm4032, %v4033, %v4024
    %v4035 = vsel %vm4028, %v4031, %v4034
    %v4036 = vsel %vm4025, nan, %v4035
    %v4037 = vand.u32 2147483647, %v2330
    %vm4038 = vcmp.le.f32.partialorder %v4037, 0.7853982
    %vm4039 = vcmp.lt.s32.totalorder %v2330, 0
    %v4040 = vand.u32 %v2330, 2139095040
    %v4041 = vshrl.u32 %v4040, 23
    %v4042 = vsub.s32 %v4041, 127
    %v4043 = vand.u32 2147483647, %v2330
    %v4044 = vand.u32 %v4043, 8388607
    %v4045 = vor.u32 %v4044, 8388608
    %v4046 = vsub.s32 0, %v4045
    %v4047 = vadd.s32 %v4042, 1
    %vm4048 = vcmp.gt.s32.totalorder %v4047, 0
    %v4049 = vsel %vm4048, %v4047, 0
    %v4050 = vshrl.u32 %v4049, 5
    %v4051 = vand.u32 %v4049, 31
    %v4052 = vsub.s32 32, %v4051
    %v4053 = vshrl.u32 683565275, %v4052
    %v4054 = vshll.u32 683565275, %v4051
    %v4055 = vshrl.u32 2475754826, %v4052
    %v4056 = vor.u32 %v4054, %v4055
    %v4057 = vshll.u32 2475754826, %v4051
    %v4058 = vshrl.u32 2131351028, %v4052
    %v4059 = vor.u32 %v4057, %v4058
    %v4060 = vshll.u32 2131351028, %v4051
    %v4061 = vshrl.u32 2102212464, %v4052
    %v4062 = vor.u32 %v4060, %v4061
    %v4063 = vshll.u32 2102212464, %v4051
    %v4064 = vshrl.u32 920167782, %v4052
    %v4065 = vor.u32 %v4063, %v4064
    %v4066 = vshll.u32 920167782, %v4051
    %v4067 = vshrl.u32 1326507024, %v4052
    %v4068 = vor.u32 %v4066, %v4067
    %vm4069 = vcmp.lt.s32.totalorder %v4050, 1
    %vm4070 = vcmp.lt.s32.totalorder %v4050, 2
    %vm4071 = vcmp.lt.s32.totalorder %v4050, 3
    %vm4072 = vcmp.lt.s32.totalorder %v4050, 4
    %v4073 = vsel %vm4069, %v4053, %v4056
    %v4074 = vsel %vm4072, %v4062, 2102212464
    %v4075 = vsel %vm4071, %v4059, %v4074
    %v4076 = vsel %vm4070, %v4073, %v4075
    %v4077 = vsel %vm4069, %v4056, %v4059
    %v4078 = vsel %vm4072, %v4065, 920167782
    %v4079 = vsel %vm4071, %v4062, %v4078
    %v4080 = vsel %vm4070, %v4077, %v4079
    %v4081 = vsel %vm4069, %v4059, %v4062
    %v4082 = vsel %vm4072, %v4068, 1326507024
    %v4083 = vsel %vm4071, %v4065, %v4082
    %v4084 = vsel %vm4070, %v4081, %v4083
    %v4085 = vshll.u32 %v4045, 8
    %v4086 = vand.u32 %v4085, 65535
    %v4087 = vshrl.u32 %v4085, 16
    %v4088 = vand.u32 %v4084, 65535
    %v4089 = vshrl.u32 %v4084, 16
    %v4090 = vmul.u32 %v4086, %v4088
    %v4091 = vmul.u32 %v4086, %v4089
    %v4092 = vmul.u32 %v4087, %v4088
    %v4093 = vmul.u32 %v4087, %v4089
    %v4094 = vshll.u32 %v4091, 16
    %v4095 = vshrl.u32 %v4091, 16
    %v4096 = vshll.u32 %v4092, 16
    %v4097 = vshrl.u32 %v4092, 16
    %vm4098 = vc.u32 %v4090, %v4094
    %v4099 = vsel %vm4098, 1, 0
    %v4100 = vadd.s32 %v4090, %v4094
    %v4101 = vadd.s32 %v4093, %v4099
    %vm4102 = vc.u32 %v4100, %v4096
    %v4103 = vsel %vm4102, 1, 0
    %v4104 = vadd.s32 %v4100, %v4096
    %v4105 = vadd.s32 %v4101, %v4103
    %v4106 = vadd.s32 %v4105, %v4095
    %v4107 = vadd.s32 %v4106, %v4097
    %v4108 = vand.u32 %v4085, 65535
    %v4109 = vshrl.u32 %v4085, 16
    %v4110 = vand.u32 %v4080, 65535
    %v4111 = vshrl.u32 %v4080, 16
    %v4112 = vmul.u32 %v4108, %v4110
    %v4113 = vmul.u32 %v4108, %v4111
    %v4114 = vmul.u32 %v4109, %v4110
    %v4115 = vmul.u32 %v4109, %v4111
    %v4116 = vshll.u32 %v4113, 16
    %v4117 = vshrl.u32 %v4113, 16
    %v4118 = vshll.u32 %v4114, 16
    %v4119 = vshrl.u32 %v4114, 16
    %vm4120 = vc.u32 %v4112, %v4116
    %v4121 = vsel %vm4120, 1, 0
    %v4122 = vadd.s32 %v4112, %v4116
    %v4123 = vadd.s32 %v4115, %v4121
    %vm4124 = vc.u32 %v4122, %v4118
    %v4125 = vsel %vm4124, 1, 0
    %v4126 = vadd.s32 %v4122, %v4118
    %v4127 = vadd.s32 %v4123, %v4125
    %v4128 = vadd.s32 %v4127, %v4117
    %v4129 = vadd.s32 %v4128, %v4119
    %v4130 = vmul.u32 %v4085, %v4076
    %v4131 = vadd.s32 %v4107, %v4126
    %vm4132 = vc.u32 %v4107, %v4126
    %v4133 = vadd.s32 %v4129, 1
    %v4134 = vsel %vm4132, %v4133, %v4129
    %v4135 = vadd.s32 %v4130, %v4134
    %v4136 = vadd.s32 %v4135, 536870912
    %v4137 = vshrl.u32 %v4136, 30
    %v4138 = vshll.u32 %v4137, 30
    %v4139 = vsub.s32 %v4135, %v4138
    %vm4140 = vcmp.lt.s32.totalorder %v4139, 0
    %v4141 = vsub.s32 0, %v4139
    %v4142 = vsel %vm4140, %v4141, %v4139
    %v4143 = vclz %v4142
    %v4144 = vsub.s32 %v4143, 2
    %vm4145 = vcmp.gt.s32.totalorder 0, %v4144
    %v4146 = vsel %vm4145, 0, %v4144
    %v4147 = vsub.s32 32, %v4146
    %v4148 = vshll.u32 %v4139, %v4146
    %v4149 = vshrl.u32 %v4131, %v4147
    %v4150 = vor.u32 %v4148, %v4149
    %v4151 = vsub.s32 4294967266, %v4146
    %v4152 = vadd.s32 %v4151, 127
    %v4153 = vshll.u32 %v4152, 23
    %v4154 = vor.u32 4788187, %v4153
    %v4155 = vand.u32 2147483647, %v4154
    %v4157 = vcvt.s32.f32 %v4150
    %v4158 = vmul.f32 %v4157, %v4155
    %v4159 = vxor.u32 %v4158, 2147483648
    %v4160 = vsel %vm4039, %v4159, %v4158
    %v4161 = vsub.s32 4, %v4137
    %v4162 = vsel %vm4039, %v4161, %v4137
    %v4163 = vsel %vm4038, %v2330, %v4160
    %v4164 = vsel %vm4038, 0, %v4162
    %v4165 = vmul.f32 %v4163, %v4163
    %v4166 = vmul.f32 %v4165, -0.001358992
    %v4167 = vadd.f32 %v4166, 0.041655596
    %v4168 = vmul.f32 %v4165, %v4167
    %v4169 = vadd.f32 %v4168, -0.4999988
    %v4170 = vmul.f32 %v4165, %v4169
    %v4171 = vadd.f32 1.0, %v4170
    %v4172 = vmul.f32 %v4163, %v4163
    %v4173 = vmul.f32 %v4172, -0.00019511016
    %v4174 = vadd.f32 %v4173, 0.008332121
    %v4175 = vmul.f32 %v4172, %v4174
    %v4176 = vadd.f32 %v4175, -0.16666654
    %v4177 = vmul.f32 %v4172, %v4176
    %v4178 = vadd.f32 %v4177, 1.0
    %v4179 = vmul.f32 %v4178, %v4163
    %vm4180 = vweird.f32 %v2330
    %v4181 = vadd.s32 %v4164, 3
    %v4182 = vand.u32 %v4181, 3
    %vm4183 = vcmp.lt.s32.totalorder %v4182, 2
    %vm4184 = vcmp.eq.s32.totalorder %v4182, 0
    %v4185 = vxor.u32 %v4179, 2147483648
    %v4186 = vsel %vm4184, %v4171, %v4185
    %vm4187 = vcmp.eq.s32.totalorder %v4182, 2
    %v4188 = vxor.u32 %v4171, 2147483648
    %v4189 = vsel %vm4187, %v4188, %v4179
    %v4190 = vsel %vm4183, %v4186, %v4189
    %v4191 = vsel %vm4180, nan, %v4190
    %v4192 = vld [vmem:[%s9] sm:$0x7]
    %v4193 = vld [vmem:[%s10] sm:$0x7]
    %4195 = vset.pattern.permute.xlu0 0
    %4196 = vperm.xlu0 %4195, %v4193
    %v4197 = vpop.permute.xlu0 %4196
    %v4200 = vsel %vm2232, %v4192, 0
    %4202 = vmatpush.msra.mxu0 0.0
    %4203 = vmatpush.msra.mxu0 0.0
    %4204 = vmatpush.msra.mxu0 0.0
    %4205 = vmatpush.msra.mxu0 0.0
    %4206 = vmatpush.msra.mxu0 0.0
    %4207 = vmatpush.msra.mxu0 0.0
    %4208 = vmatpush.msra.mxu0 0.0
    %4209 = vmatpush.msra.mxu0 0.0
    %4210 = vmatpush.msra.mxu0 0.0
    %4211 = vmatpush.msra.mxu0 0.0
    %4212 = vmatpush.msra.mxu0 0.0
    %4213 = vmatpush.msra.mxu0 0.0
    %4214 = vmatpush.msra.mxu0 %v3881
    %4215 = vmatpush.msra.mxu0 %v3416
    %4216 = vmatpush.msra.mxu0 %v2951
    %4217 = vmatpush.msra.mxu0 %v2486
    %4218 = vmatmul.f32.gmra.mxu0 %v4200
    %v4219 = vpop.f32.mrf.mxu0
    %v4220 = vadd.f32 %v4197, %v4219
    %4221 = vdwg.mxu0
    %4222 = vmatpush.msra.mxu0 0.0
    %4223 = vmatpush.msra.mxu0 0.0
    %4224 = vmatpush.msra.mxu0 0.0
    %4225 = vmatpush.msra.mxu0 0.0
    %4226 = vmatpush.msra.mxu0 0.0
    %4227 = vmatpush.msra.mxu0 0.0
    %4228 = vmatpush.msra.mxu0 0.0
    %4229 = vmatpush.msra.mxu0 0.0
    %4230 = vmatpush.msra.mxu0 0.0
    %4231 = vmatpush.msra.mxu0 0.0
    %4232 = vmatpush.msra.mxu0 0.0
    %4233 = vmatpush.msra.mxu0 0.0
    %4234 = vmatpush.msra.mxu0 %v4036
    %4235 = vmatpush.msra.mxu0 %v3571
    %4236 = vmatpush.msra.mxu0 %v3106
    %4237 = vmatpush.msra.mxu0 %v2641
    %4238 = vmatmul.f32.gmra.mxu0 %v4200
    %v4239 = vpop.f32.mrf.mxu0
    %v4240 = vadd.f32 %v4197, %v4239
    %4241 = vdwg.mxu0
    %4242 = vmatpush.msra.mxu0 0.0
    %4243 = vmatpush.msra.mxu0 0.0
    %4244 = vmatpush.msra.mxu0 0.0
    %4245 = vmatpush.msra.mxu0 0.0
    %4246 = vmatpush.msra.mxu0 0.0
    %4247 = vmatpush.msra.mxu0 0.0
    %4248 = vmatpush.msra.mxu0 0.0
    %4249 = vmatpush.msra.mxu0 0.0
    %4250 = vmatpush.msra.mxu0 0.0
    %4251 = vmatpush.msra.mxu0 0.0
    %4252 = vmatpush.msra.mxu0 0.0
    %4253 = vmatpush.msra.mxu0 0.0
    %4254 = vmatpush.msra.mxu0 %v4191
    %4255 = vmatpush.msra.mxu0 %v3726
    %4256 = vmatpush.msra.mxu0 %v3261
    %4257 = vmatpush.msra.mxu0 %v2796
    %4258 = vmatmul.f32.gmra.mxu0 %v4200
    %v4259 = vpop.f32.mrf.mxu0
    %v4260 = vadd.f32 %v4197, %v4259
    %4261 = vdwg.mxu0
    %v4262 = vtanh.pop %v4220
    %v4263 = vtanh.pop %v4240
    %v4264 = vtanh.pop %v4260
    %v4267 = vrot.slane %v4263, 4
    %vm4268 = vcmask 1043456
    %v4269 = vsel %vm4268, %v4262, %v4267
    %4271 = vst [vmem:[#allocation2] sm:$0x77] %v4269
    %4272 = vst [vmem:[#allocation2 + $0x8] sm:$0x7] %v4264
    // Predicated region
    $region46: #{tpu_custom_call.1} parent=1 // pred_check
      _
    $region47: #{tpu_custom_call.1} parent=1 // pred_check_branch
      %4274 = sbr.rel (0) target = $region49
    $region48: #{tpu_custom_call.1} parent=1 // pred_region
      %4276 = vsyncadd [#allocation3], 0
      %s4278 = sshll.u32 [#allocation2], 4
      %s4279 = int_to_ptr.vmem [resolvable:$true] %s4278
      %s4280 = sshll.u32 %s11, 4
      %s4281 = int_to_ptr.hbm [resolvable:$true] %s4280
      %4283 = dma.vmem_to_hbm [thread:$0]  %s4279, 192, %s4281, [#allocation3]
    $region49: #{tpu_custom_call.1} parent=1 // pred_fallthru
      _
    // Predicated region
    $region50: #{tpu_custom_call.1} parent=1 // pred_check
      _
    $region51: #{tpu_custom_call.1} parent=1 // pred_check_branch
      %4285 = sbr.rel (0) target = $region53
    $region52: #{tpu_custom_call.1} parent=1 // pred_region
      %4287 = dma.done [#allocation3], 192
    $region53: #{tpu_custom_call.1} parent=1 // pred_fallthru
      _
    %4288 = vsyncpa [#allocation3], 1

</llo_original>
